<compile_context>
chip_gen: v7x
topology: tpu7x:2x2x1
jax: 0.10.0
libtpu: 0.0.40
codegen_flags: <defaults>
</compile_context>

<pallas_src>
import functools
import math

import jax
import jax.numpy as jnp
from jax.experimental import pallas as pl
from jax.experimental.pallas import tpu as pltpu

BN_EPS = 1e-5


# ----------------------------------------------------------------------------- kernel

def _vqvae_kernel(comb_size, batch, tb,
                  x_ref, w1_ref, b1_ref, w2_ref, b2_ref, erw_ref, erb_ref,
                  edist_ref, e2_ref, eq_ref,
                  drw_ref, drb_ref, wd_ref, bd_ref,
                  recon_ref, stats_ref):
    f32 = jnp.float32
    bf16 = jnp.bfloat16

    def mm(a, w):
        # MLP matmuls in bf16 (MXU-native), f32 accumulate; quantizer stays f32.
        return jnp.dot(a.astype(bf16), w, preferred_element_type=f32)

    # ---- encoder: Linear -> BN(eval, folded) -> ReLU -> Linear -> ResBlock x2 ----
    h = mm(x_ref[...], w1_ref[...]) + b1_ref[...]
    h = jnp.maximum(h, 0.0)
    h = mm(h, w2_ref[...]) + b2_ref[...]
    for i in range(erw_ref.shape[0]):                      # 2 ResBlocks (static)
        r = jnp.maximum(h, 0.0)
        h = h + mm(r, erw_ref[i]) + erb_ref[i]             # Dropout(eval)=id, BN folded
    z = h                                                  # (tb, emb_dim), f32

    # ---- vector quantizer: one block-diagonal distance matmul ----
    # edist = blockdiag(-2 * e^T): dist_all[:, g*K+k] = |e_k|^2 - 2 <z_g, e_k>
    # (|z_g|^2 dropped: per-row constant -> argmin-invariant)
    dist_all = jnp.dot(z, edist_ref[...], preferred_element_type=f32) + e2_ref[...]
    num_codes = dist_all.shape[1] // comb_size

    iota = jax.lax.broadcasted_iota(jnp.int32, (tb, num_codes), 1)   # hoisted, shared
    oh_groups = []
    oh_sum = jnp.zeros((tb, num_codes), f32)
    for g in range(comb_size):                             # static, lane-aligned slices
        dist_g = dist_all[:, g * num_codes:(g + 1) * num_codes]
        dmin = jnp.min(dist_g, axis=1, keepdims=True)
        # first index achieving the minimum (torch.argmin tie-break), compared on
        # the same materialized dist_g tensor
        idx = jnp.min(jnp.where(dist_g == dmin, iota, num_codes),
                      axis=1, keepdims=True)
        oh = (iota == idx).astype(f32)
        oh_groups.append(oh)
        oh_sum = oh_sum + oh
    onehot_all = jnp.concatenate(oh_groups, axis=1)        # (tb, comb_size*K)

    # quantize: one matmul against blockdiag(e) -> lane-contiguous (tb, emb_dim)
    q = jnp.dot(onehot_all, eq_ref[...], preferred_element_type=f32)

    # ---- masked loss / code-count partials (mask applied once) ----
    row = pl.program_id(0) * tb + jax.lax.broadcasted_iota(jnp.int32, (tb, 1), 0)
    valid = (row < batch).astype(f32)                      # (tb, 1)
    diff = (q - z) * valid
    sse = jnp.sum(diff * diff, keepdims=True)              # (1, 1)
    counts = jnp.sum(oh_sum * valid, axis=0, keepdims=True)  # (1, K)

    # ---- decoder: ResBlock x3 -> Linear -> Sigmoid ----
    h = q
    for i in range(drw_ref.shape[0]):                      # 3 ResBlocks (static)
        r = jnp.maximum(h, 0.0)
        h = h + mm(r, drw_ref[i]) + drb_ref[i]
    y = mm(h, wd_ref[...]) + bd_ref[...]
    recon_ref[...] = jax.nn.sigmoid(y)

    # single per-tile stats tile: lanes [0:K) = code counts, lanes [K:K+128) = SSE
    stats_ref[...] = jnp.concatenate(
        [jnp.broadcast_to(counts, (8, num_codes)),
         jnp.broadcast_to(sse, (8, 128))], axis=1)


# ----------------------------------------------------------------------------- wrapper

def _round_up(a, m):
    return (a + m - 1) // m * m


def _resident_spec(a):
    nd = a.ndim
    return pl.BlockSpec(a.shape, lambda *_: (0,) * nd)     # stays in VMEM, no re-DMA


@functools.partial(jax.jit,
                   static_argnames=("comb_size", "commitment_cost", "block_rows"))
def vqvae_forward(params, x, comb_size, commitment_cost=0.25, block_rows=256):
    f32, bf16 = jnp.float32, jnp.bfloat16
    B, input_dim = x.shape
    code_dim, K = params["emb_t"].shape
    emb_dim = code_dim * comb_size
    kc = comb_size * K

    # batch tiling: aim for >= 2 grid steps so v7x's 2nd TensorCore gets work
    # (extra grid-step cost on v5e/v6e is ~0.35 us -> negligible)
    b8 = _round_up(B, 8)
    target = _round_up((b8 + 1) // 2, 8) if b8 >= 16 else b8
    tb = max(8, min(block_rows, target))
    b_pad = _round_up(B, tb)
    num_tiles = b_pad // tb
    if b_pad != B:
        x = jnp.pad(x, ((0, b_pad - B), (0, 0)))

    # fold eval-mode BatchNorm affine into the preceding Linear; bf16 MLP weights
    def fold(w, b, s, t):
        return (w * s).astype(bf16), (b * s + t).astype(f32)

    w1, b1 = fold(params["enc_w1"], params["enc_b1"],
                  params["bn1_scale"], params["bn1_shift"])
    w2 = params["enc_w2"].astype(bf16)
    b2 = params["enc_b2"]
    erw, erb = fold(params["enc_res_w"], params["enc_res_b"],
                    params["enc_res_s"], params["enc_res_t"])
    drw, drb = fold(params["dec_res_w"], params["dec_res_b"],
                    params["dec_res_s"], params["dec_res_t"])
    wd = params["dec_w"].astype(bf16)
    bd = params["dec_b"]

    # quantizer operands (f32): block-diagonal codebook with -2 and |e|^2 pre-folded
    et = params["emb_t"].astype(f32)                                    # (code_dim, K)
    eye = jnp.eye(comb_size, dtype=f32)
    e_dist = jnp.einsum("gh,dk->gdhk", eye, -2.0 * et).reshape(emb_dim, kc)
    e2_all = jnp.tile(jnp.sum(et * et, axis=0), comb_size).reshape(1, kc)
    e_q = jnp.einsum("gh,kd->gkhd", eye, et.T).reshape(kc, emb_dim)

    kernel = functools.partial(_vqvae_kernel, comb_size, B, tb)

    in_arrays = (x, w1, b1, w2, b2, erw, erb, e_dist, e2_all, e_q, drw, drb, wd, bd)
    in_specs = [pl.BlockSpec((tb, input_dim), lambda i: (i, 0))]
    in_specs += [_resident_spec(a) for a in in_arrays[1:]]

    out_shape = (
        jax.ShapeDtypeStruct((b_pad, input_dim), f32),                  # reconstruction
        jax.ShapeDtypeStruct((num_tiles, 8, K + 128), f32),             # counts | sse
    )
    out_specs = (
        pl.BlockSpec((tb, input_dim), lambda i: (i, 0)),
        pl.BlockSpec((None, 8, K + 128), lambda i: (i, 0, 0)),
    )

    # explicit VMEM budget (derived rather than inheriting per-generation defaults;
    # v7x = 64 MiB physical per TC, v5e scoped default = 16 MiB)
    resident = sum(int(a.size) * a.dtype.itemsize for a in in_arrays[1:])
    est = (2 * resident                                   # double-buffered residents
           + 4 * tb * input_dim * 4                       # x / recon tiles (x2 buffers)
           + 2 * 8 * (K + 128) * 4                        # stats tiles
           + 8 * tb * kc * 4                              # quantizer intermediates
           + (4 << 20))                                   # headroom
    vmem_limit = int(min(32 << 20, max(est, 8 << 20)))

    recon, stats = pl.pallas_call(
        kernel,
        grid=(num_tiles,),
        out_shape=out_shape,
        in_specs=in_specs,
        out_specs=out_specs,
        compiler_params=pltpu.CompilerParams(
            dimension_semantics=("parallel",),
            vmem_limit_bytes=vmem_limit),
    )(*in_arrays)

    # tiny final reduction over per-tile partials (XLA, O(num_tiles * K))
    n_flat = B * comb_size
    counts = jnp.sum(stats[:, 0, :K], axis=0)
    sse_total = jnp.sum(stats[:, 0, K])
    # q_latent_loss + commitment_cost * e_latent_loss == (1 + cc) * mse in forward
    loss = (1.0 + commitment_cost) * sse_total / float(n_flat * code_dim)
    avg = counts / float(n_flat)
    perplexity = jnp.exp(-jnp.sum(avg * jnp.log(avg + 1e-10)))
    return loss, recon[:B], perplexity


# ----------------------------------------------------------------------------- params

def _xavier_uniform(key, fan_in, fan_out):
    bound = math.sqrt(6.0 / (fan_in + fan_out))
    return jax.random.uniform(key, (fan_in, fan_out), jnp.float32, -bound, bound)


def init_params(key, input_dim, emb_dim, K, comb_size):
    code_dim = emb_dim // comb_size
    bn_scale_val = 1.0 / math.sqrt(1.0 + BN_EPS)   # eval-mode BN with default stats
    k_e1, k_e2, k_er, k_emb, k_dr, k_dw = jax.random.split(key, 6)

    def res_params(k, n):
        ks = jax.random.split(k, n)
        w = jnp.stack([_xavier_uniform(ks[i], emb_dim, emb_dim) for i in range(n)])
        b = jnp.zeros((n, 1, emb_dim), jnp.float32)
        s = jnp.full((n, 1, emb_dim), bn_scale_val, jnp.float32)
        t = jnp.zeros((n, 1, emb_dim), jnp.float32)
        return w, b, s, t

    erw, erb, ers, ert = res_params(k_er, 2)
    drw, drb, drs, drt = res_params(k_dr, 3)

    return {
        "enc_w1": _xavier_uniform(k_e1, input_dim, emb_dim),
        "enc_b1": jnp.zeros((1, emb_dim), jnp.float32),
        "bn1_scale": jnp.full((1, emb_dim), bn_scale_val, jnp.float32),
        "bn1_shift": jnp.zeros((1, emb_dim), jnp.float32),
        "enc_w2": _xavier_uniform(k_e2, emb_dim, emb_dim),
        "enc_b2": jnp.zeros((1, emb_dim), jnp.float32),
        "enc_res_w": erw, "enc_res_b": erb, "enc_res_s": ers, "enc_res_t": ert,
        # codebook stored lane-major: (code_dim, K)
        "emb_t": jax.random.uniform(k_emb, (code_dim, K), jnp.float32, -1.0 / K, 1.0 / K),
        "dec_res_w": drw, "dec_res_b": drb, "dec_res_s": drs, "dec_res_t": drt,
        "dec_w": _xavier_uniform(k_dw, emb_dim, input_dim),
        "dec_b": jnp.zeros((1, input_dim), jnp.float32),
    }


# ----------------------------------------------------------------------------- reference

def reference_forward(params, x, comb_size, commitment_cost=0.25):
    hp = jax.lax.Precision.HIGHEST
    h = jnp.dot(x, params["enc_w1"], precision=hp) + params["enc_b1"]
    h = h * params["bn1_scale"] + params["bn1_shift"]
    h = jax.nn.relu(h)
    h = jnp.dot(h, params["enc_w2"], precision=hp) + params["enc_b2"]
    for i in range(2):
        r = jax.nn.relu(h)
        r = jnp.dot(r, params["enc_res_w"][i], precision=hp) + params["enc_res_b"][i]
        r = r * params["enc_res_s"][i] + params["enc_res_t"][i]
        h = h + r
    B, emb_dim = h.shape
    code_dim = emb_dim // comb_size
    z = h.reshape(B * comb_size, code_dim)
    e = params["emb_t"].T                                        # (K, code_dim)
    dist = (jnp.sum(z ** 2, axis=1, keepdims=True) + jnp.sum(e ** 2, axis=1)
            - 2.0 * jnp.dot(z, e.T, precision=hp))
    idx = jnp.argmin(dist, axis=1)
    onehot = jax.nn.one_hot(idx, e.shape[0], dtype=jnp.float32)
    q = jnp.dot(onehot, e, precision=hp)
    loss = (1.0 + commitment_cost) * jnp.mean((q - z) ** 2)
    avg = jnp.mean(onehot, axis=0)
    perp = jnp.exp(-jnp.sum(avg * jnp.log(avg + 1e-10)))
    h = q.reshape(B, emb_dim)
    for i in range(3):
        r = jax.nn.relu(h)
        r = jnp.dot(r, params["dec_res_w"][i], precision=hp) + params["dec_res_b"][i]
        r = r * params["dec_res_s"][i] + params["dec_res_t"][i]
        h = h + r
    y = jnp.dot(h, params["dec_w"], precision=hp) + params["dec_b"]
    return loss, jax.nn.sigmoid(y), perp


# ----------------------------------------------------------------------------- main

if __name__ == "__main__":
    input_dim, emb_dim, K, comb_size = 32, 32, 512, 4
    batch = 20   # deliberately not a tile multiple -> exercises padding + row masking

    key = jax.random.PRNGKey(0)
    k_x, k_p = jax.random.split(key)
    params = init_params(k_p, input_dim, emb_dim, K, comb_size)
    x = jax.random.uniform(k_x, (batch, input_dim), jnp.float32)

    ref_loss, ref_recon, ref_perp = reference_forward(params, x, comb_size, 0.25)

    # block_rows=8   -> 3 batch tiles (multi-step grid, masked tail)
    # block_rows=256 -> 2 batch tiles (core-aware split for v7x megacore)
    for block_rows in (8, 256):
        loss, x_recon, perplexity = jax.block_until_ready(
            vqvae_forward(params, x, comb_size=comb_size,
                          commitment_cost=0.25, block_rows=block_rows))
        assert x_recon.shape == (batch, input_dim)
        assert bool(jnp.isfinite(loss)) and bool(jnp.isfinite(perplexity))
        assert jnp.allclose(x_recon, ref_recon, atol=5e-2, rtol=5e-2)
        assert jnp.allclose(loss, ref_loss, atol=5e-2, rtol=5e-2)
        assert jnp.allclose(perplexity, ref_perp, atol=1.0, rtol=5e-2)

    print("KERNEL_OK")
</pallas_src>

<mosaic_0001>
module attributes {stable_mosaic.version = 11 : i64} {
  func.func @_vqvae_kernel(%arg0: i32, %arg1: memref<8x32xf32, #tpu.memory_space<vmem>>, %arg2: memref<32x32xbf16, #tpu.memory_space<vmem>>, %arg3: memref<1x32xf32, #tpu.memory_space<vmem>>, %arg4: memref<32x32xbf16, #tpu.memory_space<vmem>>, %arg5: memref<1x32xf32, #tpu.memory_space<vmem>>, %arg6: memref<2x32x32xbf16, #tpu.memory_space<vmem>>, %arg7: memref<2x1x32xf32, #tpu.memory_space<vmem>>, %arg8: memref<32x2048xf32, #tpu.memory_space<vmem>>, %arg9: memref<1x2048xf32, #tpu.memory_space<vmem>>, %arg10: memref<2048x32xf32, #tpu.memory_space<vmem>>, %arg11: memref<3x32x32xbf16, #tpu.memory_space<vmem>>, %arg12: memref<3x1x32xf32, #tpu.memory_space<vmem>>, %arg13: memref<32x32xbf16, #tpu.memory_space<vmem>>, %arg14: memref<1x32xf32, #tpu.memory_space<vmem>>, %arg15: memref<8x32xf32, #tpu.memory_space<vmem>>, %arg16: memref<1x8x640xf32, #tpu.memory_space<vmem>>) attributes {dimension_semantics = [#tpu.dimension_semantics<parallel>], iteration_bounds = array<i64: 3>, scalar_prefetch = 0 : i64, scratch_operands = 0 : i64, tpu.core_type = #tpu.core_type<tc>, window_params = [{transform_indices = @transform_0, window_bounds = array<i64: 8, 32>}, {pipeline_mode = #tpu.pipeline_mode<synchronous>, transform_indices = @transform_1, window_bounds = array<i64: 32, 32>}, {pipeline_mode = #tpu.pipeline_mode<synchronous>, transform_indices = @transform_2, window_bounds = array<i64: 1, 32>}, {pipeline_mode = #tpu.pipeline_mode<synchronous>, transform_indices = @transform_3, window_bounds = array<i64: 32, 32>}, {pipeline_mode = #tpu.pipeline_mode<synchronous>, transform_indices = @transform_4, window_bounds = array<i64: 1, 32>}, {pipeline_mode = #tpu.pipeline_mode<synchronous>, transform_indices = @transform_5, window_bounds = array<i64: 2, 32, 32>}, {pipeline_mode = #tpu.pipeline_mode<synchronous>, transform_indices = @transform_6, window_bounds = array<i64: 2, 1, 32>}, {pipeline_mode = #tpu.pipeline_mode<synchronous>, transform_indices = @transform_7, window_bounds = array<i64: 32, 2048>}, {pipeline_mode = #tpu.pipeline_mode<synchronous>, transform_indices = @transform_8, window_bounds = array<i64: 1, 2048>}, {pipeline_mode = #tpu.pipeline_mode<synchronous>, transform_indices = @transform_9, window_bounds = array<i64: 2048, 32>}, {pipeline_mode = #tpu.pipeline_mode<synchronous>, transform_indices = @transform_10, window_bounds = array<i64: 3, 32, 32>}, {pipeline_mode = #tpu.pipeline_mode<synchronous>, transform_indices = @transform_11, window_bounds = array<i64: 3, 1, 32>}, {pipeline_mode = #tpu.pipeline_mode<synchronous>, transform_indices = @transform_12, window_bounds = array<i64: 32, 32>}, {pipeline_mode = #tpu.pipeline_mode<synchronous>, transform_indices = @transform_13, window_bounds = array<i64: 1, 32>}, {transform_indices = @transform_14, window_bounds = array<i64: 8, 32>}, {transform_indices = @transform_15, window_bounds = array<i64: 1, 8, 640>}]} {
    %c0 = arith.constant 0 : index
    %c0_0 = arith.constant 0 : index
    %0 = vector.load %arg1[%c0, %c0_0] : memref<8x32xf32, #tpu.memory_space<vmem>>, vector<8x32xf32>
    %c0_1 = arith.constant 0 : index
    %c0_2 = arith.constant 0 : index
    %1 = vector.load %arg2[%c0_1, %c0_2] : memref<32x32xbf16, #tpu.memory_space<vmem>>, vector<32x32xbf16>
    %2 = arith.truncf %0 : vector<8x32xf32> to vector<8x32xbf16>
    %cst = arith.constant dense<0.000000e+00> : vector<8x32xf32>
    %3 = tpu.matmul %2, %1, %cst {dimension_numbers = #tpu.dot_dimension_numbers<[1], [0], [0], [1], [0, 0, 1, 1], [], []>} : vector<8x32xbf16>, vector<32x32xbf16>, vector<8x32xf32> -> vector<8x32xf32>
    %c0_3 = arith.constant 0 : index
    %c0_4 = arith.constant 0 : index
    %4 = vector.load %arg3[%c0_3, %c0_4] : memref<1x32xf32, #tpu.memory_space<vmem>>, vector<1x32xf32>
    %5 = vector.broadcast %4 : vector<1x32xf32> to vector<8x32xf32>
    %6 = arith.addf %3, %5 : vector<8x32xf32>
    %cst_5 = arith.constant 0.000000e+00 : f32
    %7 = vector.broadcast %cst_5 : f32 to vector<8x32xf32>
    %8 = arith.maximumf %6, %7 : vector<8x32xf32>
    %c0_6 = arith.constant 0 : index
    %c0_7 = arith.constant 0 : index
    %9 = vector.load %arg4[%c0_6, %c0_7] : memref<32x32xbf16, #tpu.memory_space<vmem>>, vector<32x32xbf16>
    %10 = arith.truncf %8 : vector<8x32xf32> to vector<8x32xbf16>
    %cst_8 = arith.constant dense<0.000000e+00> : vector<8x32xf32>
    %11 = tpu.matmul %10, %9, %cst_8 {dimension_numbers = #tpu.dot_dimension_numbers<[1], [0], [0], [1], [0, 0, 1, 1], [], []>} : vector<8x32xbf16>, vector<32x32xbf16>, vector<8x32xf32> -> vector<8x32xf32>
    %c0_9 = arith.constant 0 : index
    %c0_10 = arith.constant 0 : index
    %12 = vector.load %arg5[%c0_9, %c0_10] : memref<1x32xf32, #tpu.memory_space<vmem>>, vector<1x32xf32>
    %13 = vector.broadcast %12 : vector<1x32xf32> to vector<8x32xf32>
    %14 = arith.addf %11, %13 : vector<8x32xf32>
    %cst_11 = arith.constant 0.000000e+00 : f32
    %15 = vector.broadcast %cst_11 : f32 to vector<8x32xf32>
    %16 = arith.maximumf %14, %15 : vector<8x32xf32>
    %c0_12 = arith.constant 0 : index
    %c0_13 = arith.constant 0 : index
    %c0_14 = arith.constant 0 : index
    %17 = vector.load %arg6[%c0_12, %c0_13, %c0_14] : memref<2x32x32xbf16, #tpu.memory_space<vmem>>, vector<1x32x32xbf16>
    %18 = vector.shape_cast %17 : vector<1x32x32xbf16> to vector<32x32xbf16>
    %19 = arith.truncf %16 : vector<8x32xf32> to vector<8x32xbf16>
    %cst_15 = arith.constant dense<0.000000e+00> : vector<8x32xf32>
    %20 = tpu.matmul %19, %18, %cst_15 {dimension_numbers = #tpu.dot_dimension_numbers<[1], [0], [0], [1], [0, 0, 1, 1], [], []>} : vector<8x32xbf16>, vector<32x32xbf16>, vector<8x32xf32> -> vector<8x32xf32>
    %21 = arith.addf %14, %20 : vector<8x32xf32>
    %c0_16 = arith.constant 0 : index
    %c0_17 = arith.constant 0 : index
    %c0_18 = arith.constant 0 : index
    %22 = vector.load %arg7[%c0_16, %c0_17, %c0_18] : memref<2x1x32xf32, #tpu.memory_space<vmem>>, vector<1x1x32xf32>
    %23 = vector.shape_cast %22 : vector<1x1x32xf32> to vector<1x32xf32>
    %24 = vector.broadcast %23 : vector<1x32xf32> to vector<8x32xf32>
    %25 = arith.addf %21, %24 : vector<8x32xf32>
    %cst_19 = arith.constant 0.000000e+00 : f32
    %26 = vector.broadcast %cst_19 : f32 to vector<8x32xf32>
    %27 = arith.maximumf %25, %26 : vector<8x32xf32>
    %c1 = arith.constant 1 : index
    %c0_20 = arith.constant 0 : index
    %c0_21 = arith.constant 0 : index
    %28 = vector.load %arg6[%c1, %c0_20, %c0_21] : memref<2x32x32xbf16, #tpu.memory_space<vmem>>, vector<1x32x32xbf16>
    %29 = vector.shape_cast %28 : vector<1x32x32xbf16> to vector<32x32xbf16>
    %30 = arith.truncf %27 : vector<8x32xf32> to vector<8x32xbf16>
    %cst_22 = arith.constant dense<0.000000e+00> : vector<8x32xf32>
    %31 = tpu.matmul %30, %29, %cst_22 {dimension_numbers = #tpu.dot_dimension_numbers<[1], [0], [0], [1], [0, 0, 1, 1], [], []>} : vector<8x32xbf16>, vector<32x32xbf16>, vector<8x32xf32> -> vector<8x32xf32>
    %32 = arith.addf %25, %31 : vector<8x32xf32>
    %c1_23 = arith.constant 1 : index
    %c0_24 = arith.constant 0 : index
    %c0_25 = arith.constant 0 : index
    %33 = vector.load %arg7[%c1_23, %c0_24, %c0_25] : memref<2x1x32xf32, #tpu.memory_space<vmem>>, vector<1x1x32xf32>
    %34 = vector.shape_cast %33 : vector<1x1x32xf32> to vector<1x32xf32>
    %35 = vector.broadcast %34 : vector<1x32xf32> to vector<8x32xf32>
    %36 = arith.addf %32, %35 : vector<8x32xf32>
    %c0_26 = arith.constant 0 : index
    %c0_27 = arith.constant 0 : index
    %37 = vector.load %arg8[%c0_26, %c0_27] : memref<32x2048xf32, #tpu.memory_space<vmem>>, vector<32x2048xf32>
    %cst_28 = arith.constant dense<0.000000e+00> : vector<8x2048xf32>
    %38 = tpu.matmul %36, %37, %cst_28 {dimension_numbers = #tpu.dot_dimension_numbers<[1], [0], [0], [1], [0, 0, 1, 1], [], []>} : vector<8x32xf32>, vector<32x2048xf32>, vector<8x2048xf32> -> vector<8x2048xf32>
    %c0_29 = arith.constant 0 : index
    %c0_30 = arith.constant 0 : index
    %39 = vector.load %arg9[%c0_29, %c0_30] : memref<1x2048xf32, #tpu.memory_space<vmem>>, vector<1x2048xf32>
    %40 = vector.broadcast %39 : vector<1x2048xf32> to vector<8x2048xf32>
    %41 = arith.addf %38, %40 : vector<8x2048xf32>
    %42 = tpu.iota {dimensions = array<i32: 1>} : vector<8x512xi32>
    %cst_31 = arith.constant 0.000000e+00 : f32
    %43 = vector.broadcast %cst_31 : f32 to vector<8x512xf32>
    %44 = vector.extract_strided_slice %41 {offsets = [0, 0], sizes = [8, 512], strides = [1, 1]} : vector<8x2048xf32> to vector<8x512xf32>
    %cst_32 = arith.constant dense<0x7F800000> : vector<8xf32>
    %45 = vector.multi_reduction <minimumf>, %44, %cst_32 [1] : vector<8x512xf32> to vector<8xf32>
    %46 = vector.shape_cast %45 : vector<8xf32> to vector<8x1xf32>
    %47 = vector.broadcast %46 : vector<8x1xf32> to vector<8x512xf32>
    %48 = arith.cmpf oeq, %44, %47 : vector<8x512xf32>
    %c512_i32 = arith.constant 512 : i32
    %49 = vector.broadcast %c512_i32 : i32 to vector<8x512xi32>
    %50 = arith.select %48, %42, %49 : vector<8x512xi1>, vector<8x512xi32>
    %cst_33 = arith.constant dense<2147483647> : vector<8xi32>
    %51 = vector.multi_reduction <minsi>, %50, %cst_33 [1] : vector<8x512xi32> to vector<8xi32>
    %52 = vector.shape_cast %51 : vector<8xi32> to vector<8x1xi32>
    %53 = vector.broadcast %52 : vector<8x1xi32> to vector<8x512xi32>
    %54 = arith.cmpi eq, %42, %53 : vector<8x512xi32>
    %55 = arith.extui %54 : vector<8x512xi1> to vector<8x512xi32>
    %56 = arith.sitofp %55 : vector<8x512xi32> to vector<8x512xf32>
    %57 = arith.addf %43, %56 : vector<8x512xf32>
    %58 = vector.extract_strided_slice %41 {offsets = [0, 512], sizes = [8, 512], strides = [1, 1]} : vector<8x2048xf32> to vector<8x512xf32>
    %cst_34 = arith.constant dense<0x7F800000> : vector<8xf32>
    %59 = vector.multi_reduction <minimumf>, %58, %cst_34 [1] : vector<8x512xf32> to vector<8xf32>
    %60 = vector.shape_cast %59 : vector<8xf32> to vector<8x1xf32>
    %61 = vector.broadcast %60 : vector<8x1xf32> to vector<8x512xf32>
    %62 = arith.cmpf oeq, %58, %61 : vector<8x512xf32>
    %c512_i32_35 = arith.constant 512 : i32
    %63 = vector.broadcast %c512_i32_35 : i32 to vector<8x512xi32>
    %64 = arith.select %62, %42, %63 : vector<8x512xi1>, vector<8x512xi32>
    %cst_36 = arith.constant dense<2147483647> : vector<8xi32>
    %65 = vector.multi_reduction <minsi>, %64, %cst_36 [1] : vector<8x512xi32> to vector<8xi32>
    %66 = vector.shape_cast %65 : vector<8xi32> to vector<8x1xi32>
    %67 = vector.broadcast %66 : vector<8x1xi32> to vector<8x512xi32>
    %68 = arith.cmpi eq, %42, %67 : vector<8x512xi32>
    %69 = arith.extui %68 : vector<8x512xi1> to vector<8x512xi32>
    %70 = arith.sitofp %69 : vector<8x512xi32> to vector<8x512xf32>
    %71 = arith.addf %57, %70 : vector<8x512xf32>
    %72 = vector.extract_strided_slice %41 {offsets = [0, 1024], sizes = [8, 512], strides = [1, 1]} : vector<8x2048xf32> to vector<8x512xf32>
    %cst_37 = arith.constant dense<0x7F800000> : vector<8xf32>
    %73 = vector.multi_reduction <minimumf>, %72, %cst_37 [1] : vector<8x512xf32> to vector<8xf32>
    %74 = vector.shape_cast %73 : vector<8xf32> to vector<8x1xf32>
    %75 = vector.broadcast %74 : vector<8x1xf32> to vector<8x512xf32>
    %76 = arith.cmpf oeq, %72, %75 : vector<8x512xf32>
    %c512_i32_38 = arith.constant 512 : i32
    %77 = vector.broadcast %c512_i32_38 : i32 to vector<8x512xi32>
    %78 = arith.select %76, %42, %77 : vector<8x512xi1>, vector<8x512xi32>
    %cst_39 = arith.constant dense<2147483647> : vector<8xi32>
    %79 = vector.multi_reduction <minsi>, %78, %cst_39 [1] : vector<8x512xi32> to vector<8xi32>
    %80 = vector.shape_cast %79 : vector<8xi32> to vector<8x1xi32>
    %81 = vector.broadcast %80 : vector<8x1xi32> to vector<8x512xi32>
    %82 = arith.cmpi eq, %42, %81 : vector<8x512xi32>
    %83 = arith.extui %82 : vector<8x512xi1> to vector<8x512xi32>
    %84 = arith.sitofp %83 : vector<8x512xi32> to vector<8x512xf32>
    %85 = arith.addf %71, %84 : vector<8x512xf32>
    %86 = vector.extract_strided_slice %41 {offsets = [0, 1536], sizes = [8, 512], strides = [1, 1]} : vector<8x2048xf32> to vector<8x512xf32>
    %cst_40 = arith.constant dense<0x7F800000> : vector<8xf32>
    %87 = vector.multi_reduction <minimumf>, %86, %cst_40 [1] : vector<8x512xf32> to vector<8xf32>
    %88 = vector.shape_cast %87 : vector<8xf32> to vector<8x1xf32>
    %89 = vector.broadcast %88 : vector<8x1xf32> to vector<8x512xf32>
    %90 = arith.cmpf oeq, %86, %89 : vector<8x512xf32>
    %c512_i32_41 = arith.constant 512 : i32
    %91 = vector.broadcast %c512_i32_41 : i32 to vector<8x512xi32>
    %92 = arith.select %90, %42, %91 : vector<8x512xi1>, vector<8x512xi32>
    %cst_42 = arith.constant dense<2147483647> : vector<8xi32>
    %93 = vector.multi_reduction <minsi>, %92, %cst_42 [1] : vector<8x512xi32> to vector<8xi32>
    %94 = vector.shape_cast %93 : vector<8xi32> to vector<8x1xi32>
    %95 = vector.broadcast %94 : vector<8x1xi32> to vector<8x512xi32>
    %96 = arith.cmpi eq, %42, %95 : vector<8x512xi32>
    %97 = arith.extui %96 : vector<8x512xi1> to vector<8x512xi32>
    %98 = arith.sitofp %97 : vector<8x512xi32> to vector<8x512xf32>
    %99 = arith.addf %85, %98 : vector<8x512xf32>
    %100 = tpu.concatenate %56, %70, %84, %98 in 1 : vector<8x512xf32>, vector<8x512xf32>, vector<8x512xf32>, vector<8x512xf32> -> vector<8x2048xf32>
    %c0_43 = arith.constant 0 : index
    %c0_44 = arith.constant 0 : index
    %101 = vector.load %arg10[%c0_43, %c0_44] : memref<2048x32xf32, #tpu.memory_space<vmem>>, vector<2048x32xf32>
    %cst_45 = arith.constant dense<0.000000e+00> : vector<8x32xf32>
    %102 = tpu.matmul %100, %101, %cst_45 {dimension_numbers = #tpu.dot_dimension_numbers<[1], [0], [0], [1], [0, 0, 1, 1], [], []>} : vector<8x2048xf32>, vector<2048x32xf32>, vector<8x32xf32> -> vector<8x32xf32>
    %c8_i32 = arith.constant 8 : i32
    %103 = arith.muli %arg0, %c8_i32 : i32
    %104 = tpu.iota {dimensions = array<i32: 0>} : vector<8x1xi32>
    %105 = vector.broadcast %103 : i32 to vector<8x1xi32>
    %106 = arith.addi %105, %104 : vector<8x1xi32>
    %c20_i32 = arith.constant 20 : i32
    %107 = vector.broadcast %c20_i32 : i32 to vector<8x1xi32>
    %108 = arith.cmpi slt, %106, %107 : vector<8x1xi32>
    %109 = arith.extui %108 : vector<8x1xi1> to vector<8x1xi32>
    %110 = arith.sitofp %109 : vector<8x1xi32> to vector<8x1xf32>
    %111 = arith.subf %102, %36 : vector<8x32xf32>
    %112 = vector.broadcast %110 : vector<8x1xf32> to vector<8x32xf32>
    %113 = arith.mulf %111, %112 : vector<8x32xf32>
    %114 = arith.mulf %113, %113 : vector<8x32xf32>
    %115 = vector.shape_cast %114 : vector<8x32xf32> to vector<1x8x32xf32>
    %cst_46 = arith.constant dense<0.000000e+00> : vector<1xf32>
    %116 = vector.multi_reduction <add>, %115, %cst_46 [1, 2] : vector<1x8x32xf32> to vector<1xf32>
    %117 = vector.shape_cast %116 : vector<1xf32> to vector<1x1x1xf32>
    %118 = vector.extract %117[0, 0, 0] : f32 from vector<1x1x1xf32>
    %119 = vector.broadcast %118 : f32 to vector<1x1xf32>
    %120 = vector.broadcast %110 : vector<8x1xf32> to vector<8x512xf32>
    %121 = arith.mulf %99, %120 : vector<8x512xf32>
    %cst_47 = arith.constant dense<0.000000e+00> : vector<512xf32>
    %122 = vector.multi_reduction <add>, %121, %cst_47 [0] : vector<8x512xf32> to vector<512xf32>
    %123 = vector.shape_cast %122 : vector<512xf32> to vector<1x512xf32>
    %cst_48 = arith.constant 0.000000e+00 : f32
    %124 = vector.broadcast %cst_48 : f32 to vector<8x32xf32>
    %125 = arith.maximumf %102, %124 : vector<8x32xf32>
    %c0_49 = arith.constant 0 : index
    %c0_50 = arith.constant 0 : index
    %c0_51 = arith.constant 0 : index
    %126 = vector.load %arg11[%c0_49, %c0_50, %c0_51] : memref<3x32x32xbf16, #tpu.memory_space<vmem>>, vector<1x32x32xbf16>
    %127 = vector.shape_cast %126 : vector<1x32x32xbf16> to vector<32x32xbf16>
    %128 = arith.truncf %125 : vector<8x32xf32> to vector<8x32xbf16>
    %cst_52 = arith.constant dense<0.000000e+00> : vector<8x32xf32>
    %129 = tpu.matmul %128, %127, %cst_52 {dimension_numbers = #tpu.dot_dimension_numbers<[1], [0], [0], [1], [0, 0, 1, 1], [], []>} : vector<8x32xbf16>, vector<32x32xbf16>, vector<8x32xf32> -> vector<8x32xf32>
    %130 = arith.addf %102, %129 : vector<8x32xf32>
    %c0_53 = arith.constant 0 : index
    %c0_54 = arith.constant 0 : index
    %c0_55 = arith.constant 0 : index
    %131 = vector.load %arg12[%c0_53, %c0_54, %c0_55] : memref<3x1x32xf32, #tpu.memory_space<vmem>>, vector<1x1x32xf32>
    %132 = vector.shape_cast %131 : vector<1x1x32xf32> to vector<1x32xf32>
    %133 = vector.broadcast %132 : vector<1x32xf32> to vector<8x32xf32>
    %134 = arith.addf %130, %133 : vector<8x32xf32>
    %cst_56 = arith.constant 0.000000e+00 : f32
    %135 = vector.broadcast %cst_56 : f32 to vector<8x32xf32>
    %136 = arith.maximumf %134, %135 : vector<8x32xf32>
    %c1_57 = arith.constant 1 : index
    %c0_58 = arith.constant 0 : index
    %c0_59 = arith.constant 0 : index
    %137 = vector.load %arg11[%c1_57, %c0_58, %c0_59] : memref<3x32x32xbf16, #tpu.memory_space<vmem>>, vector<1x32x32xbf16>
    %138 = vector.shape_cast %137 : vector<1x32x32xbf16> to vector<32x32xbf16>
    %139 = arith.truncf %136 : vector<8x32xf32> to vector<8x32xbf16>
    %cst_60 = arith.constant dense<0.000000e+00> : vector<8x32xf32>
    %140 = tpu.matmul %139, %138, %cst_60 {dimension_numbers = #tpu.dot_dimension_numbers<[1], [0], [0], [1], [0, 0, 1, 1], [], []>} : vector<8x32xbf16>, vector<32x32xbf16>, vector<8x32xf32> -> vector<8x32xf32>
    %141 = arith.addf %134, %140 : vector<8x32xf32>
    %c1_61 = arith.constant 1 : index
    %c0_62 = arith.constant 0 : index
    %c0_63 = arith.constant 0 : index
    %142 = vector.load %arg12[%c1_61, %c0_62, %c0_63] : memref<3x1x32xf32, #tpu.memory_space<vmem>>, vector<1x1x32xf32>
    %143 = vector.shape_cast %142 : vector<1x1x32xf32> to vector<1x32xf32>
    %144 = vector.broadcast %143 : vector<1x32xf32> to vector<8x32xf32>
    %145 = arith.addf %141, %144 : vector<8x32xf32>
    %cst_64 = arith.constant 0.000000e+00 : f32
    %146 = vector.broadcast %cst_64 : f32 to vector<8x32xf32>
    %147 = arith.maximumf %145, %146 : vector<8x32xf32>
    %c2 = arith.constant 2 : index
    %c0_65 = arith.constant 0 : index
    %c0_66 = arith.constant 0 : index
    %148 = vector.load %arg11[%c2, %c0_65, %c0_66] : memref<3x32x32xbf16, #tpu.memory_space<vmem>>, vector<1x32x32xbf16>
    %149 = vector.shape_cast %148 : vector<1x32x32xbf16> to vector<32x32xbf16>
    %150 = arith.truncf %147 : vector<8x32xf32> to vector<8x32xbf16>
    %cst_67 = arith.constant dense<0.000000e+00> : vector<8x32xf32>
    %151 = tpu.matmul %150, %149, %cst_67 {dimension_numbers = #tpu.dot_dimension_numbers<[1], [0], [0], [1], [0, 0, 1, 1], [], []>} : vector<8x32xbf16>, vector<32x32xbf16>, vector<8x32xf32> -> vector<8x32xf32>
    %152 = arith.addf %145, %151 : vector<8x32xf32>
    %c2_68 = arith.constant 2 : index
    %c0_69 = arith.constant 0 : index
    %c0_70 = arith.constant 0 : index
    %153 = vector.load %arg12[%c2_68, %c0_69, %c0_70] : memref<3x1x32xf32, #tpu.memory_space<vmem>>, vector<1x1x32xf32>
    %154 = vector.shape_cast %153 : vector<1x1x32xf32> to vector<1x32xf32>
    %155 = vector.broadcast %154 : vector<1x32xf32> to vector<8x32xf32>
    %156 = arith.addf %152, %155 : vector<8x32xf32>
    %c0_71 = arith.constant 0 : index
    %c0_72 = arith.constant 0 : index
    %157 = vector.load %arg13[%c0_71, %c0_72] : memref<32x32xbf16, #tpu.memory_space<vmem>>, vector<32x32xbf16>
    %158 = arith.truncf %156 : vector<8x32xf32> to vector<8x32xbf16>
    %cst_73 = arith.constant dense<0.000000e+00> : vector<8x32xf32>
    %159 = tpu.matmul %158, %157, %cst_73 {dimension_numbers = #tpu.dot_dimension_numbers<[1], [0], [0], [1], [0, 0, 1, 1], [], []>} : vector<8x32xbf16>, vector<32x32xbf16>, vector<8x32xf32> -> vector<8x32xf32>
    %c0_74 = arith.constant 0 : index
    %c0_75 = arith.constant 0 : index
    %160 = vector.load %arg14[%c0_74, %c0_75] : memref<1x32xf32, #tpu.memory_space<vmem>>, vector<1x32xf32>
    %161 = vector.broadcast %160 : vector<1x32xf32> to vector<8x32xf32>
    %162 = arith.addf %159, %161 : vector<8x32xf32>
    %163 = arith.negf %162 : vector<8x32xf32>
    %164 = math.exp %163 : vector<8x32xf32>
    %cst_76 = arith.constant 1.000000e+00 : f32
    %165 = vector.broadcast %cst_76 : f32 to vector<8x32xf32>
    %166 = arith.addf %165, %164 : vector<8x32xf32>
    %167 = arith.divf %165, %166 : vector<8x32xf32>
    %c0_77 = arith.constant 0 : index
    %c0_78 = arith.constant 0 : index
    %168 = vector.load %arg15[%c0_77, %c0_78] : memref<8x32xf32, #tpu.memory_space<vmem>>, vector<8x32xf32>
    tpu.vector_store %arg15[%c0_77, %c0_78], %167 {strides = array<i32>} : memref<8x32xf32, #tpu.memory_space<vmem>>, vector<8x32xf32>,
    %169 = vector.shape_cast %123 : vector<1x512xf32> to vector<1x512xf32>
    %170 = vector.broadcast %169 : vector<1x512xf32> to vector<8x512xf32>
    %171 = vector.shape_cast %119 : vector<1x1xf32> to vector<1x1xf32>
    %172 = vector.broadcast %171 : vector<1x1xf32> to vector<8x128xf32>
    %173 = tpu.concatenate %170, %172 in 1 : vector<8x512xf32>, vector<8x128xf32> -> vector<8x640xf32>
    %c0_79 = arith.constant 0 : index
    %c0_80 = arith.constant 0 : index
    %c0_81 = arith.constant 0 : index
    %174 = vector.load %arg16[%c0_79, %c0_80, %c0_81] : memref<1x8x640xf32, #tpu.memory_space<vmem>>, vector<1x8x640xf32>
    %175 = vector.shape_cast %174 : vector<1x8x640xf32> to vector<8x640xf32>
    %176 = vector.shape_cast %173 : vector<8x640xf32> to vector<1x8x640xf32>
    tpu.vector_store %arg16[%c0_79, %c0_80, %c0_81], %176 {strides = array<i32>} : memref<1x8x640xf32, #tpu.memory_space<vmem>>, vector<1x8x640xf32>,
    return
  }
  func.func @transform_0(%arg0: i32) -> (i32, i32) {
    %c0_i32 = arith.constant 0 : i32
    %c0_i32_0 = arith.constant 0 : i32
    return %arg0, %c0_i32 : i32, i32
  }
  func.func @transform_1(%arg0: i32) -> (i32, i32) {
    %c0_i32 = arith.constant 0 : i32
    %c0_i32_0 = arith.constant 0 : i32
    %c0_i32_1 = arith.constant 0 : i32
    return %c0_i32, %c0_i32_0 : i32, i32
  }
  func.func @transform_2(%arg0: i32) -> (i32, i32) {
    %c0_i32 = arith.constant 0 : i32
    %c0_i32_0 = arith.constant 0 : i32
    %c0_i32_1 = arith.constant 0 : i32
    return %c0_i32, %c0_i32_0 : i32, i32
  }
  func.func @transform_3(%arg0: i32) -> (i32, i32) {
    %c0_i32 = arith.constant 0 : i32
    %c0_i32_0 = arith.constant 0 : i32
    %c0_i32_1 = arith.constant 0 : i32
    return %c0_i32, %c0_i32_0 : i32, i32
  }
  func.func @transform_4(%arg0: i32) -> (i32, i32) {
    %c0_i32 = arith.constant 0 : i32
    %c0_i32_0 = arith.constant 0 : i32
    %c0_i32_1 = arith.constant 0 : i32
    return %c0_i32, %c0_i32_0 : i32, i32
  }
  func.func @transform_5(%arg0: i32) -> (i32, i32, i32) {
    %c0_i32 = arith.constant 0 : i32
    %c0_i32_0 = arith.constant 0 : i32
    %c0_i32_1 = arith.constant 0 : i32
    %c0_i32_2 = arith.constant 0 : i32
    return %c0_i32, %c0_i32_0, %c0_i32_1 : i32, i32, i32
  }
  func.func @transform_6(%arg0: i32) -> (i32, i32, i32) {
    %c0_i32 = arith.constant 0 : i32
    %c0_i32_0 = arith.constant 0 : i32
    %c0_i32_1 = arith.constant 0 : i32
    %c0_i32_2 = arith.constant 0 : i32
    return %c0_i32, %c0_i32_0, %c0_i32_1 : i32, i32, i32
  }
  func.func @transform_7(%arg0: i32) -> (i32, i32) {
    %c0_i32 = arith.constant 0 : i32
    %c0_i32_0 = arith.constant 0 : i32
    %c0_i32_1 = arith.constant 0 : i32
    return %c0_i32, %c0_i32_0 : i32, i32
  }
  func.func @transform_8(%arg0: i32) -> (i32, i32) {
    %c0_i32 = arith.constant 0 : i32
    %c0_i32_0 = arith.constant 0 : i32
    %c0_i32_1 = arith.constant 0 : i32
    return %c0_i32, %c0_i32_0 : i32, i32
  }
  func.func @transform_9(%arg0: i32) -> (i32, i32) {
    %c0_i32 = arith.constant 0 : i32
    %c0_i32_0 = arith.constant 0 : i32
    %c0_i32_1 = arith.constant 0 : i32
    return %c0_i32, %c0_i32_0 : i32, i32
  }
  func.func @transform_10(%arg0: i32) -> (i32, i32, i32) {
    %c0_i32 = arith.constant 0 : i32
    %c0_i32_0 = arith.constant 0 : i32
    %c0_i32_1 = arith.constant 0 : i32
    %c0_i32_2 = arith.constant 0 : i32
    return %c0_i32, %c0_i32_0, %c0_i32_1 : i32, i32, i32
  }
  func.func @transform_11(%arg0: i32) -> (i32, i32, i32) {
    %c0_i32 = arith.constant 0 : i32
    %c0_i32_0 = arith.constant 0 : i32
    %c0_i32_1 = arith.constant 0 : i32
    %c0_i32_2 = arith.constant 0 : i32
    return %c0_i32, %c0_i32_0, %c0_i32_1 : i32, i32, i32
  }
  func.func @transform_12(%arg0: i32) -> (i32, i32) {
    %c0_i32 = arith.constant 0 : i32
    %c0_i32_0 = arith.constant 0 : i32
    %c0_i32_1 = arith.constant 0 : i32
    return %c0_i32, %c0_i32_0 : i32, i32
  }
  func.func @transform_13(%arg0: i32) -> (i32, i32) {
    %c0_i32 = arith.constant 0 : i32
    %c0_i32_0 = arith.constant 0 : i32
    %c0_i32_1 = arith.constant 0 : i32
    return %c0_i32, %c0_i32_0 : i32, i32
  }
  func.func @transform_14(%arg0: i32) -> (i32, i32) {
    %c0_i32 = arith.constant 0 : i32
    %c0_i32_0 = arith.constant 0 : i32
    return %arg0, %c0_i32 : i32, i32
  }
  func.func @transform_15(%arg0: i32) -> (i32, i32, i32) {
    %c0_i32 = arith.constant 0 : i32
    %c0_i32_0 = arith.constant 0 : i32
    %c0_i32_1 = arith.constant 0 : i32
    return %arg0, %c0_i32, %c0_i32_0 : i32, i32, i32
  }
}

</mosaic_0001>

<llo_original>
// kernel: vqvae_forward.1
$region0: #{vqvae_forward.1}
  #allocation0 [shape = 'u32[]', space=smem, size = 0x4, offset = 0x4, fixed_abs, tag = 'smem constant byte address 0x4 - core index']
  #allocation1 [shape = 'u32[144,128]{1,0:T(1,128)}', space=vmem, size = 0x12000, scoped, tag = 'internal scratch']
  %s0 = inlined_call_operand.vmem [shape: f32[24,32], index: 0, kind: input, shape index: {}]
  %s1 = inlined_call_operand.vmem [shape: bf16[32,32], index: 1, kind: input, shape index: {}]
  %s2 = inlined_call_operand.vmem [shape: f32[1,32], index: 2, kind: input, shape index: {}]
  %s3 = inlined_call_operand.vmem [shape: bf16[32,32], index: 3, kind: input, shape index: {}]
  %s4 = inlined_call_operand.vmem [shape: f32[1,32], index: 4, kind: input, shape index: {}]
  %s5 = inlined_call_operand.vmem [shape: bf16[2,32,32], index: 5, kind: input, shape index: {}]
  %s6 = inlined_call_operand.vmem [shape: f32[2,1,32], index: 6, kind: input, shape index: {}]
  %s7 = inlined_call_operand.vmem [shape: f32[32,2048], index: 7, kind: input, shape index: {}]
  %s8 = inlined_call_operand.vmem [shape: f32[1,2048], index: 8, kind: input, shape index: {}]
  %s9 = inlined_call_operand.vmem [shape: f32[2048,32], index: 9, kind: input, shape index: {}]
  %s10 = inlined_call_operand.vmem [shape: bf16[3,32,32], index: 10, kind: input, shape index: {}]
  %s11 = inlined_call_operand.vmem [shape: f32[3,1,32], index: 11, kind: input, shape index: {}]
  %s12 = inlined_call_operand.vmem [shape: bf16[32,32], index: 12, kind: input, shape index: {}]
  %s13 = inlined_call_operand.vmem [shape: f32[1,32], index: 13, kind: input, shape index: {}]
  %s14 = inlined_call_operand.hbm [shape: f32[24,32], index: 14, kind: output, shape index: {0}]
  %s15 = inlined_call_operand.vmem [shape: f32[3,8,640], index: 15, kind: output, shape index: {1}]
  %16 = xla_tuple %s14, %s15
  %s17 = sld [smem:[#allocation0]]
  $region97: #{vqvae_forward.1} parent=0
    _
  %s19 = ssub.s32 1, %s17
  %s20 = scalar_select 0, %s19, %s17
  $region1: #{vqvae_forward.1} parent=0
    #allocation2 [shape = 'u8[8192]{0}', space=vmem, size = 0x2000, scoped, tag = 'output window, operand 0']
    #allocation3 [shape = 's32[2]{0}', space=sflag, size = 0x8, scoped, tag = 'scoped memory for vqvae_forward.1']
    %21 = vsyncpa [#allocation3], 0
    %s22 = scalar_lea.sflag [#allocation3], 1
    %23 = vsyncpa %s22, 0
    loop: start=0, step=1, limit=5
    $region2: #{vqvae_forward.1} parent=1 // loop_pre_header
      _
    $region3: #{vqvae_forward.1} parent=1 // loop_header
      %s25 = sphi 0, %s29
      %p26 = scmp.ge.s32.totalorder %s25, 5
      %s35 = sphi 0, %s37
      %s38 = sphi 0, %s35
      %s39 = sphi 0, %s38
      %s55 = sphi 0, %s39
      %s59 = sphi 0, %s59
      %s61 = sphi 0, %s59
      %s62 = sphi 0, %s61
      %s76 = sphi 0, %s62
      %s80 = sphi 0, %s80
      %s82 = sphi 0, %s80
      %s83 = sphi 0, %s82
      %s97 = sphi 0, %s83
      %s101 = sphi 0, %s101
      %s103 = sphi 0, %s101
      %s104 = sphi 0, %s103
      %s118 = sphi 0, %s104
      %s122 = sphi 0, %s122
      %s124 = sphi 0, %s122
      %s125 = sphi 0, %s124
      %s139 = sphi 0, %s125
      %s143 = sphi 0, %s143
      %s145 = sphi 0, %s143
      %s146 = sphi 0, %s145
      %s160 = sphi 0, %s146
      %s164 = sphi 0, %s164
      %s166 = sphi 0, %s164
      %s167 = sphi 0, %s166
      %s181 = sphi 0, %s167
      %s185 = sphi 0, %s185
      %s187 = sphi 0, %s185
      %s188 = sphi 0, %s187
      %s202 = sphi 0, %s188
      %s206 = sphi 0, %s206
      %s208 = sphi 0, %s206
      %s209 = sphi 0, %s208
      %s223 = sphi 0, %s209
      %s227 = sphi 0, %s227
      %s229 = sphi 0, %s227
      %s230 = sphi 0, %s229
      %s244 = sphi 0, %s230
      %s248 = sphi 0, %s248
      %s250 = sphi 0, %s248
      %s251 = sphi 0, %s250
      %s265 = sphi 0, %s251
      %s269 = sphi 0, %s269
      %s271 = sphi 0, %s269
      %s272 = sphi 0, %s271
      %s286 = sphi 0, %s272
      %s290 = sphi 0, %s290
      %s292 = sphi 0, %s290
      %s293 = sphi 0, %s292
      %s307 = sphi 0, %s293
      %s311 = sphi 0, %s311
      %s313 = sphi 0, %s311
      %s314 = sphi 0, %s313
      %s328 = sphi 0, %s314
      %s334 = sphi 0, %s336
      %s337 = sphi 0, %s334
      %s338 = sphi 0, %s337
      %s354 = sphi 0, %s338
      %s360 = sphi 0, %s362
      %s363 = sphi 0, %s360
      %s364 = sphi 0, %s363
      %s380 = sphi 0, %s364
    $region4: #{vqvae_forward.1} parent=1 // loop_header_branch
      %28 = sbr.rel (%p26) target = $region8
    $region5: #{vqvae_forward.1} parent=1 // loop_body
      %s30 = ssub.s32 %s25, 1
      %s31 = ssub.s32 %s25, 2
      %s32 = sadd.s32 %s25, 1
      %s33 = ssub.s32 %s25, %s32
      %p34 = scmp.eq.s32.totalorder %s33, 0
      %s36 = sadd.s32 %s35, 1
      %s37 = scalar_select %p34, %s35, %s36
      %p40 = pneg %p34
      %p41 = scmp.eq.s32.totalorder %s25, 2
      %p42 = por %p40, %p41
      %p43 = scmp.ne.s32.totalorder %s35, %s38
      %p44 = scmp.eq.s32.totalorder %s25, 0
      %p45 = por %p43, %p44
      %p46 = scmp.ne.s32.totalorder %s35, %s38
      %p47 = scmp.eq.s32.totalorder %s30, 2
      %p48 = por %p46, %p47
      %p49 = scmp.ne.s32.totalorder %s38, %s39
      %p50 = scmp.eq.s32.totalorder %s30, 0
      %p51 = por %p49, %p50
      %p52 = scmp.ne.s32.totalorder %s38, %s39
      %p53 = scmp.eq.s32.totalorder %s31, 2
      %p54 = por %p52, %p53
      %p56 = scmp.ne.s32.totalorder %s39, %s55
      %p57 = scmp.eq.s32.totalorder %s31, 0
      %p58 = por %p56, %p57
      %s60 = sadd.s32 %s59, 1
      %p63 = scmp.eq.s32.totalorder %s25, 2
      %p64 = scmp.ne.s32.totalorder %s59, %s61
      %p65 = scmp.eq.s32.totalorder %s25, 0
      %p66 = por %p64, %p65
      %p67 = scmp.ne.s32.totalorder %s59, %s61
      %p68 = scmp.eq.s32.totalorder %s30, 2
      %p69 = por %p67, %p68
      %p70 = scmp.ne.s32.totalorder %s61, %s62
      %p71 = scmp.eq.s32.totalorder %s30, 0
      %p72 = por %p70, %p71
      %p73 = scmp.ne.s32.totalorder %s61, %s62
      %p74 = scmp.eq.s32.totalorder %s31, 2
      %p75 = por %p73, %p74
      %p77 = scmp.ne.s32.totalorder %s62, %s76
      %p78 = scmp.eq.s32.totalorder %s31, 0
      %p79 = por %p77, %p78
      %s81 = sadd.s32 %s80, 1
      %p84 = scmp.eq.s32.totalorder %s25, 2
      %p85 = scmp.ne.s32.totalorder %s80, %s82
      %p86 = scmp.eq.s32.totalorder %s25, 0
      %p87 = por %p85, %p86
      %p88 = scmp.ne.s32.totalorder %s80, %s82
      %p89 = scmp.eq.s32.totalorder %s30, 2
      %p90 = por %p88, %p89
      %p91 = scmp.ne.s32.totalorder %s82, %s83
      %p92 = scmp.eq.s32.totalorder %s30, 0
      %p93 = por %p91, %p92
      %p94 = scmp.ne.s32.totalorder %s82, %s83
      %p95 = scmp.eq.s32.totalorder %s31, 2
      %p96 = por %p94, %p95
      %p98 = scmp.ne.s32.totalorder %s83, %s97
      %p99 = scmp.eq.s32.totalorder %s31, 0
      %p100 = por %p98, %p99
      %s102 = sadd.s32 %s101, 1
      %p105 = scmp.eq.s32.totalorder %s25, 2
      %p106 = scmp.ne.s32.totalorder %s101, %s103
      %p107 = scmp.eq.s32.totalorder %s25, 0
      %p108 = por %p106, %p107
      %p109 = scmp.ne.s32.totalorder %s101, %s103
      %p110 = scmp.eq.s32.totalorder %s30, 2
      %p111 = por %p109, %p110
      %p112 = scmp.ne.s32.totalorder %s103, %s104
      %p113 = scmp.eq.s32.totalorder %s30, 0
      %p114 = por %p112, %p113
      %p115 = scmp.ne.s32.totalorder %s103, %s104
      %p116 = scmp.eq.s32.totalorder %s31, 2
      %p117 = por %p115, %p116
      %p119 = scmp.ne.s32.totalorder %s104, %s118
      %p120 = scmp.eq.s32.totalorder %s31, 0
      %p121 = por %p119, %p120
      %s123 = sadd.s32 %s122, 1
      %p126 = scmp.eq.s32.totalorder %s25, 2
      %p127 = scmp.ne.s32.totalorder %s122, %s124
      %p128 = scmp.eq.s32.totalorder %s25, 0
      %p129 = por %p127, %p128
      %p130 = scmp.ne.s32.totalorder %s122, %s124
      %p131 = scmp.eq.s32.totalorder %s30, 2
      %p132 = por %p130, %p131
      %p133 = scmp.ne.s32.totalorder %s124, %s125
      %p134 = scmp.eq.s32.totalorder %s30, 0
      %p135 = por %p133, %p134
      %p136 = scmp.ne.s32.totalorder %s124, %s125
      %p137 = scmp.eq.s32.totalorder %s31, 2
      %p138 = por %p136, %p137
      %p140 = scmp.ne.s32.totalorder %s125, %s139
      %p141 = scmp.eq.s32.totalorder %s31, 0
      %p142 = por %p140, %p141
      %s144 = sadd.s32 %s143, 1
      %p147 = scmp.eq.s32.totalorder %s25, 2
      %p148 = scmp.ne.s32.totalorder %s143, %s145
      %p149 = scmp.eq.s32.totalorder %s25, 0
      %p150 = por %p148, %p149
      %p151 = scmp.ne.s32.totalorder %s143, %s145
      %p152 = scmp.eq.s32.totalorder %s30, 2
      %p153 = por %p151, %p152
      %p154 = scmp.ne.s32.totalorder %s145, %s146
      %p155 = scmp.eq.s32.totalorder %s30, 0
      %p156 = por %p154, %p155
      %p157 = scmp.ne.s32.totalorder %s145, %s146
      %p158 = scmp.eq.s32.totalorder %s31, 2
      %p159 = por %p157, %p158
      %p161 = scmp.ne.s32.totalorder %s146, %s160
      %p162 = scmp.eq.s32.totalorder %s31, 0
      %p163 = por %p161, %p162
      %s165 = sadd.s32 %s164, 1
      %p168 = scmp.eq.s32.totalorder %s25, 2
      %p169 = scmp.ne.s32.totalorder %s164, %s166
      %p170 = scmp.eq.s32.totalorder %s25, 0
      %p171 = por %p169, %p170
      %p172 = scmp.ne.s32.totalorder %s164, %s166
      %p173 = scmp.eq.s32.totalorder %s30, 2
      %p174 = por %p172, %p173
      %p175 = scmp.ne.s32.totalorder %s166, %s167
      %p176 = scmp.eq.s32.totalorder %s30, 0
      %p177 = por %p175, %p176
      %p178 = scmp.ne.s32.totalorder %s166, %s167
      %p179 = scmp.eq.s32.totalorder %s31, 2
      %p180 = por %p178, %p179
      %p182 = scmp.ne.s32.totalorder %s167, %s181
      %p183 = scmp.eq.s32.totalorder %s31, 0
      %p184 = por %p182, %p183
      %s186 = sadd.s32 %s185, 1
      %p189 = scmp.eq.s32.totalorder %s25, 2
      %p190 = scmp.ne.s32.totalorder %s185, %s187
      %p191 = scmp.eq.s32.totalorder %s25, 0
      %p192 = por %p190, %p191
      %p193 = scmp.ne.s32.totalorder %s185, %s187
      %p194 = scmp.eq.s32.totalorder %s30, 2
      %p195 = por %p193, %p194
      %p196 = scmp.ne.s32.totalorder %s187, %s188
      %p197 = scmp.eq.s32.totalorder %s30, 0
      %p198 = por %p196, %p197
      %p199 = scmp.ne.s32.totalorder %s187, %s188
      %p200 = scmp.eq.s32.totalorder %s31, 2
      %p201 = por %p199, %p200
      %p203 = scmp.ne.s32.totalorder %s188, %s202
      %p204 = scmp.eq.s32.totalorder %s31, 0
      %p205 = por %p203, %p204
      %s207 = sadd.s32 %s206, 1
      %p210 = scmp.eq.s32.totalorder %s25, 2
      %p211 = scmp.ne.s32.totalorder %s206, %s208
      %p212 = scmp.eq.s32.totalorder %s25, 0
      %p213 = por %p211, %p212
      %p214 = scmp.ne.s32.totalorder %s206, %s208
      %p215 = scmp.eq.s32.totalorder %s30, 2
      %p216 = por %p214, %p215
      %p217 = scmp.ne.s32.totalorder %s208, %s209
      %p218 = scmp.eq.s32.totalorder %s30, 0
      %p219 = por %p217, %p218
      %p220 = scmp.ne.s32.totalorder %s208, %s209
      %p221 = scmp.eq.s32.totalorder %s31, 2
      %p222 = por %p220, %p221
      %p224 = scmp.ne.s32.totalorder %s209, %s223
      %p225 = scmp.eq.s32.totalorder %s31, 0
      %p226 = por %p224, %p225
      %s228 = sadd.s32 %s227, 1
      %p231 = scmp.eq.s32.totalorder %s25, 2
      %p232 = scmp.ne.s32.totalorder %s227, %s229
      %p233 = scmp.eq.s32.totalorder %s25, 0
      %p234 = por %p232, %p233
      %p235 = scmp.ne.s32.totalorder %s227, %s229
      %p236 = scmp.eq.s32.totalorder %s30, 2
      %p237 = por %p235, %p236
      %p238 = scmp.ne.s32.totalorder %s229, %s230
      %p239 = scmp.eq.s32.totalorder %s30, 0
      %p240 = por %p238, %p239
      %p241 = scmp.ne.s32.totalorder %s229, %s230
      %p242 = scmp.eq.s32.totalorder %s31, 2
      %p243 = por %p241, %p242
      %p245 = scmp.ne.s32.totalorder %s230, %s244
      %p246 = scmp.eq.s32.totalorder %s31, 0
      %p247 = por %p245, %p246
      %s249 = sadd.s32 %s248, 1
      %p252 = scmp.eq.s32.totalorder %s25, 2
      %p253 = scmp.ne.s32.totalorder %s248, %s250
      %p254 = scmp.eq.s32.totalorder %s25, 0
      %p255 = por %p253, %p254
      %p256 = scmp.ne.s32.totalorder %s248, %s250
      %p257 = scmp.eq.s32.totalorder %s30, 2
      %p258 = por %p256, %p257
      %p259 = scmp.ne.s32.totalorder %s250, %s251
      %p260 = scmp.eq.s32.totalorder %s30, 0
      %p261 = por %p259, %p260
      %p262 = scmp.ne.s32.totalorder %s250, %s251
      %p263 = scmp.eq.s32.totalorder %s31, 2
      %p264 = por %p262, %p263
      %p266 = scmp.ne.s32.totalorder %s251, %s265
      %p267 = scmp.eq.s32.totalorder %s31, 0
      %p268 = por %p266, %p267
      %s270 = sadd.s32 %s269, 1
      %p273 = scmp.eq.s32.totalorder %s25, 2
      %p274 = scmp.ne.s32.totalorder %s269, %s271
      %p275 = scmp.eq.s32.totalorder %s25, 0
      %p276 = por %p274, %p275
      %p277 = scmp.ne.s32.totalorder %s269, %s271
      %p278 = scmp.eq.s32.totalorder %s30, 2
      %p279 = por %p277, %p278
      %p280 = scmp.ne.s32.totalorder %s271, %s272
      %p281 = scmp.eq.s32.totalorder %s30, 0
      %p282 = por %p280, %p281
      %p283 = scmp.ne.s32.totalorder %s271, %s272
      %p284 = scmp.eq.s32.totalorder %s31, 2
      %p285 = por %p283, %p284
      %p287 = scmp.ne.s32.totalorder %s272, %s286
      %p288 = scmp.eq.s32.totalorder %s31, 0
      %p289 = por %p287, %p288
      %s291 = sadd.s32 %s290, 1
      %p294 = scmp.eq.s32.totalorder %s25, 2
      %p295 = scmp.ne.s32.totalorder %s290, %s292
      %p296 = scmp.eq.s32.totalorder %s25, 0
      %p297 = por %p295, %p296
      %p298 = scmp.ne.s32.totalorder %s290, %s292
      %p299 = scmp.eq.s32.totalorder %s30, 2
      %p300 = por %p298, %p299
      %p301 = scmp.ne.s32.totalorder %s292, %s293
      %p302 = scmp.eq.s32.totalorder %s30, 0
      %p303 = por %p301, %p302
      %p304 = scmp.ne.s32.totalorder %s292, %s293
      %p305 = scmp.eq.s32.totalorder %s31, 2
      %p306 = por %p304, %p305
      %p308 = scmp.ne.s32.totalorder %s293, %s307
      %p309 = scmp.eq.s32.totalorder %s31, 0
      %p310 = por %p308, %p309
      %s312 = sadd.s32 %s311, 1
      %p315 = scmp.eq.s32.totalorder %s25, 2
      %p316 = scmp.ne.s32.totalorder %s311, %s313
      %p317 = scmp.eq.s32.totalorder %s25, 0
      %p318 = por %p316, %p317
      %p319 = scmp.ne.s32.totalorder %s311, %s313
      %p320 = scmp.eq.s32.totalorder %s30, 2
      %p321 = por %p319, %p320
      %p322 = scmp.ne.s32.totalorder %s313, %s314
      %p323 = scmp.eq.s32.totalorder %s30, 0
      %p324 = por %p322, %p323
      %p325 = scmp.ne.s32.totalorder %s313, %s314
      %p326 = scmp.eq.s32.totalorder %s31, 2
      %p327 = por %p325, %p326
      %p329 = scmp.ne.s32.totalorder %s314, %s328
      %p330 = scmp.eq.s32.totalorder %s31, 0
      %p331 = por %p329, %p330
      %s332 = ssub.s32 %s25, %s32
      %p333 = scmp.eq.s32.totalorder %s332, 0
      %s335 = sadd.s32 %s334, 1
      %s336 = scalar_select %p333, %s334, %s335
      %p339 = pneg %p333
      %p340 = scmp.eq.s32.totalorder %s25, 2
      %p341 = por %p339, %p340
      %p342 = scmp.ne.s32.totalorder %s334, %s337
      %p343 = scmp.eq.s32.totalorder %s25, 0
      %p344 = por %p342, %p343
      %p345 = scmp.ne.s32.totalorder %s334, %s337
      %p346 = scmp.eq.s32.totalorder %s30, 2
      %p347 = por %p345, %p346
      %p348 = scmp.ne.s32.totalorder %s337, %s338
      %p349 = scmp.eq.s32.totalorder %s30, 0
      %p350 = por %p348, %p349
      %p351 = scmp.ne.s32.totalorder %s337, %s338
      %p352 = scmp.eq.s32.totalorder %s31, 2
      %p353 = por %p351, %p352
      %p355 = scmp.ne.s32.totalorder %s338, %s354
      %p356 = scmp.eq.s32.totalorder %s31, 0
      %p357 = por %p355, %p356
      %s358 = ssub.s32 %s25, %s32
      %p359 = scmp.eq.s32.totalorder %s358, 0
      %s361 = sadd.s32 %s360, 1
      %s362 = scalar_select %p359, %s360, %s361
      %p365 = pneg %p359
      %p366 = scmp.eq.s32.totalorder %s25, 2
      %p367 = por %p365, %p366
      %p368 = scmp.ne.s32.totalorder %s360, %s363
      %p369 = scmp.eq.s32.totalorder %s25, 0
      %p370 = por %p368, %p369
      %p371 = scmp.ne.s32.totalorder %s360, %s363
      %p372 = scmp.eq.s32.totalorder %s30, 2
      %p373 = por %p371, %p372
      %p374 = scmp.ne.s32.totalorder %s363, %s364
      %p375 = scmp.eq.s32.totalorder %s30, 0
      %p376 = por %p374, %p375
      %p377 = scmp.ne.s32.totalorder %s363, %s364
      %p378 = scmp.eq.s32.totalorder %s31, 2
      %p379 = por %p377, %p378
      %p381 = scmp.ne.s32.totalorder %s364, %s380
      %p382 = scmp.eq.s32.totalorder %s31, 0
      %p383 = por %p381, %p382
      %p384 = scmp.le.s32.totalorder 1, %s25
      %p385 = scmp.lt.s32.totalorder %s25, 4
      %p386 = pnand %p384, %p385
      %p387 = pneg %p386
      // Predicated region
      $region9: #{vqvae_forward.1} parent=5 // pred_check
        _
      $region10: #{vqvae_forward.1} parent=5 // pred_check_branch
        %389 = sbr.rel (%p386) target = $region12
      $region11: #{vqvae_forward.1} parent=5 // pred_region
        %s390 = ssub.s32 %s25, 1
        // Predicated region
        $region13: #{vqvae_forward.1} parent=11 // pred_check
          %p391 = pneg %p72
        $region14: #{vqvae_forward.1} parent=11 // pred_check_branch
          %393 = sbr.rel (%p391) target = $region16
        $region15: #{vqvae_forward.1} parent=11 // pred_region
          _
        $region16: #{vqvae_forward.1} parent=11 // pred_fallthru
          _
        // Predicated region
        $region17: #{vqvae_forward.1} parent=11 // pred_check
          %p394 = pneg %p93
        $region18: #{vqvae_forward.1} parent=11 // pred_check_branch
          %396 = sbr.rel (%p394) target = $region20
        $region19: #{vqvae_forward.1} parent=11 // pred_region
          _
        $region20: #{vqvae_forward.1} parent=11 // pred_fallthru
          _
        // Predicated region
        $region21: #{vqvae_forward.1} parent=11 // pred_check
          %p397 = pneg %p114
        $region22: #{vqvae_forward.1} parent=11 // pred_check_branch
          %399 = sbr.rel (%p397) target = $region24
        $region23: #{vqvae_forward.1} parent=11 // pred_region
          _
        $region24: #{vqvae_forward.1} parent=11 // pred_fallthru
          _
        // Predicated region
        $region25: #{vqvae_forward.1} parent=11 // pred_check
          %p400 = pneg %p135
        $region26: #{vqvae_forward.1} parent=11 // pred_check_branch
          %402 = sbr.rel (%p400) target = $region28
        $region27: #{vqvae_forward.1} parent=11 // pred_region
          _
        $region28: #{vqvae_forward.1} parent=11 // pred_fallthru
          _
        // Predicated region
        $region29: #{vqvae_forward.1} parent=11 // pred_check
          %p403 = pneg %p156
        $region30: #{vqvae_forward.1} parent=11 // pred_check_branch
          %405 = sbr.rel (%p403) target = $region32
        $region31: #{vqvae_forward.1} parent=11 // pred_region
          _
        $region32: #{vqvae_forward.1} parent=11 // pred_fallthru
          _
        // Predicated region
        $region33: #{vqvae_forward.1} parent=11 // pred_check
          %p406 = pneg %p177
        $region34: #{vqvae_forward.1} parent=11 // pred_check_branch
          %408 = sbr.rel (%p406) target = $region36
        $region35: #{vqvae_forward.1} parent=11 // pred_region
          _
        $region36: #{vqvae_forward.1} parent=11 // pred_fallthru
          _
        // Predicated region
        $region37: #{vqvae_forward.1} parent=11 // pred_check
          %p409 = pneg %p198
        $region38: #{vqvae_forward.1} parent=11 // pred_check_branch
          %411 = sbr.rel (%p409) target = $region40
        $region39: #{vqvae_forward.1} parent=11 // pred_region
          _
        $region40: #{vqvae_forward.1} parent=11 // pred_fallthru
          _
        // Predicated region
        $region41: #{vqvae_forward.1} parent=11 // pred_check
          %p412 = pneg %p219
        $region42: #{vqvae_forward.1} parent=11 // pred_check_branch
          %414 = sbr.rel (%p412) target = $region44
        $region43: #{vqvae_forward.1} parent=11 // pred_region
          _
        $region44: #{vqvae_forward.1} parent=11 // pred_fallthru
          _
        // Predicated region
        $region45: #{vqvae_forward.1} parent=11 // pred_check
          %p415 = pneg %p240
        $region46: #{vqvae_forward.1} parent=11 // pred_check_branch
          %417 = sbr.rel (%p415) target = $region48
        $region47: #{vqvae_forward.1} parent=11 // pred_region
          _
        $region48: #{vqvae_forward.1} parent=11 // pred_fallthru
          _
        // Predicated region
        $region49: #{vqvae_forward.1} parent=11 // pred_check
          %p418 = pneg %p261
        $region50: #{vqvae_forward.1} parent=11 // pred_check_branch
          %420 = sbr.rel (%p418) target = $region52
        $region51: #{vqvae_forward.1} parent=11 // pred_region
          _
        $region52: #{vqvae_forward.1} parent=11 // pred_fallthru
          _
        // Predicated region
        $region53: #{vqvae_forward.1} parent=11 // pred_check
          %p421 = pneg %p282
        $region54: #{vqvae_forward.1} parent=11 // pred_check_branch
          %423 = sbr.rel (%p421) target = $region56
        $region55: #{vqvae_forward.1} parent=11 // pred_region
          _
        $region56: #{vqvae_forward.1} parent=11 // pred_fallthru
          _
        // Predicated region
        $region57: #{vqvae_forward.1} parent=11 // pred_check
          %p424 = pneg %p303
        $region58: #{vqvae_forward.1} parent=11 // pred_check_branch
          %426 = sbr.rel (%p424) target = $region60
        $region59: #{vqvae_forward.1} parent=11 // pred_region
          _
        $region60: #{vqvae_forward.1} parent=11 // pred_fallthru
          _
        // Predicated region
        $region61: #{vqvae_forward.1} parent=11 // pred_check
          %p427 = pneg %p324
        $region62: #{vqvae_forward.1} parent=11 // pred_check_branch
          %429 = sbr.rel (%p427) target = $region64
        $region63: #{vqvae_forward.1} parent=11 // pred_region
          _
        $region64: #{vqvae_forward.1} parent=11 // pred_fallthru
          _
      $region12: #{vqvae_forward.1} parent=5 // pred_fallthru
        _
      %p430 = scmp.lt.s32.totalorder %s25, 3
      // Predicated region
      $region65: #{vqvae_forward.1} parent=5 // pred_check
        %p431 = pneg %p430
      $region66: #{vqvae_forward.1} parent=5 // pred_check_branch
        %433 = sbr.rel (%p431) target = $region68
      $region67: #{vqvae_forward.1} parent=5 // pred_region
        // Predicated region
        $region69: #{vqvae_forward.1} parent=67 // pred_check
          %p434 = pneg %p45
        $region70: #{vqvae_forward.1} parent=67 // pred_check_branch
          %436 = sbr.rel (%p434) target = $region72
        $region71: #{vqvae_forward.1} parent=67 // pred_region
          %p437 = scmp.lt.s32.totalorder %s25, 2
          %s438 = scalar_select %p437, %s25, 2
          %s439 = smul.addr %s438, 8
          %s440 = scalar_lea.vmem %s0, %s439
        $region72: #{vqvae_forward.1} parent=67 // pred_fallthru
          _
      $region68: #{vqvae_forward.1} parent=5 // pred_fallthru
        _
      %p441 = scmp.le.s32.totalorder 1, %s25
      %p442 = scmp.lt.s32.totalorder %s25, 4
      %p443 = pnand %p441, %p442
      %p444 = pneg %p443
      // Predicated region
      $region73: #{vqvae_forward.1} parent=5 // pred_check
        _
      $region74: #{vqvae_forward.1} parent=5 // pred_check_branch
        %446 = sbr.rel (%p443) target = $region76
      $region75: #{vqvae_forward.1} parent=5 // pred_region
        %s447 = ssub.s32 %s25, 1
        %p448 = scmp.lt.s32.totalorder %s30, 2
        %s449 = scalar_select %p448, %s30, 2
        %s450 = smul.addr %s449, 8
        %s451 = scalar_lea.vmem %s0, %s450
        %p452 = pneg %p51
        %p453 = pneg %p48
        %p454 = pneg %p72
        %p455 = pneg %p69
        %p456 = pneg %p93
        %p457 = pneg %p90
        %p458 = pneg %p114
        %p459 = pneg %p111
        %p460 = pneg %p135
        %p461 = pneg %p132
        %p462 = pneg %p156
        %p463 = pneg %p153
        %p464 = pneg %p177
        %p465 = pneg %p174
        %p466 = pneg %p198
        %p467 = pneg %p195
        %p468 = pneg %p219
        %p469 = pneg %p216
        %p470 = pneg %p240
        %p471 = pneg %p237
        %p472 = pneg %p261
        %p473 = pneg %p258
        %p474 = pneg %p282
        %p475 = pneg %p279
        %p476 = pneg %p303
        %p477 = pneg %p300
        %p478 = pneg %p324
        %p479 = pneg %p321
        %p480 = pneg %p350
        %p481 = pneg %p347
        %s482 = sand.u32 %s337, 1
        %s483 = scalar_lea.sflag [#allocation3], %s482
        %s484 = sand.u32 %s337, 1
        %s485 = smul.addr %s484, 8
        %s486 = scalar_lea.vmem [#allocation2], %s485
        %p487 = pneg %p376
        %p488 = pneg %p373
        %p489 = scmp.lt.s32.totalorder %s30, 2
        %s490 = scalar_select %p489, %s30, 2
        %s491 = smul.addr %s490, 5
        %s492 = smul.addr %s491, 8
        %s493 = scalar_lea.vmem %s15, %s492
        %p494 = scmp.lt.s32.totalorder %s30, 2
        %s495 = scalar_select %p494, %s30, 2
        %s496 = smul.addr %s495, 8
        %s497 = scalar_lea.vmem %s0, %s496
        %p498 = scmp.lt.s32.totalorder %s30, 2
        %s499 = scalar_select %p498, %s30, 2
        %s500 = smul.addr %s499, 5
        %s501 = smul.addr %s500, 8
        %s502 = scalar_lea.vmem %s15, %s501
        %v504 = vld [vmem:[%s497] sm:$0xff]
        %v505 = vld [vmem:[%s1] sm:$0xf]
        %v506 = vld [vmem:[%s1 + $0x4] sm:$0xf]
        %v507 = vld [vmem:[%s1 + $0x8] sm:$0xf]
        %v508 = vld [vmem:[%s1 + $0xc] sm:$0xf]
        %v509 = vpack.c.bf16 %v504, %v504
        %v510 = vld [vmem:[%s2] sm:$0x1]
        %v512 = vlaneseq
        %v513 = vshrl.u32 %v512, 7
        %v514 = vsub.s32 0, %v513
        %v515 = vrot.slane %v510, %v514
        %v521 = vunpack.c.l.b16 %v505
        %v522 = vunpack.c.l.b16 %v506
        %v523 = vunpack.c.l.b16 %v507
        %v524 = vunpack.c.l.b16 %v508
        %v525 = vpack.c.b16 %v522, %v521
        %v526 = vpack.c.b16 %v524, %v523
        %vm529 = vcmask 261120
        %v531 = vsel %vm529, %v509, 0
        %533 = vmatprep.subr.bf16.mxu0 0
        %534 = vmatpush1.bf16.msra.mxu0 %v525
        %535 = vmatprep.subr.bf16.mxu0 0
        %536 = vmatpush1.bf16.msra.mxu0 %v526
        %537 = vmatprep.subr.bf16.mxu0 0
        %538 = vmatpush1.bf16.msra.mxu0 0
        %539 = vmatprep.subr.bf16.mxu0 0
        %540 = vmatpush1.bf16.msra.mxu0 0
        %541 = vmatprep.subr.bf16.mxu0 0
        %542 = vmatpush1.bf16.msra.mxu0 0
        %543 = vmatprep.subr.bf16.mxu0 0
        %544 = vmatpush1.bf16.msra.mxu0 0
        %545 = vmatprep.subr.bf16.mxu0 0
        %546 = vmatpush1.bf16.msra.mxu0 0
        %547 = vmatprep.subr.bf16.mxu0 0
        %548 = vmatpush1.bf16.msra.mxu0 0
        %549 = vmatprep.subr.bf16.mxu0 0
        %550 = vmatpush1.bf16.msra.mxu0 0
        %551 = vmatprep.subr.bf16.mxu0 0
        %552 = vmatpush1.bf16.msra.mxu0 0
        %553 = vmatprep.subr.bf16.mxu0 0
        %554 = vmatpush1.bf16.msra.mxu0 0
        %555 = vmatprep.subr.bf16.mxu0 0
        %556 = vmatpush1.bf16.msra.mxu0 0
        %557 = vmatprep.subr.bf16.mxu0 0
        %558 = vmatpush1.bf16.msra.mxu0 0
        %559 = vmatprep.subr.bf16.mxu0 0
        %560 = vmatpush1.bf16.msra.mxu0 0
        %561 = vmatprep.subr.bf16.mxu0 0
        %562 = vmatpush1.bf16.msra.mxu0 0
        %563 = vmatprep.subr.bf16.mxu0 0
        %564 = vmatpush1.bf16.msra.mxu0 0
        %565 = vmatprep.mubr.bf16.mxu0 0
        %566 = vmatmul.mubr.bf16.gmra.mrb[0].mxu0 %v531
        %v567 = vpop.f32.mrb[0].mxu0
        %v568 = vadd.f32 %v515, %v567
        %v569 = vpop.f32.mrb[0].mxu0
        %v570 = vpop.f32.mrb[0].mxu0
        %v571 = vpop.f32.mrb[0].mxu0
        %572 = vdwg.mxu0
        %v573 = vmax.f32 %v568, 0.0
        %v574 = vld [vmem:[%s3] sm:$0xf]
        %v575 = vld [vmem:[%s3 + $0x4] sm:$0xf]
        %v576 = vld [vmem:[%s3 + $0x8] sm:$0xf]
        %v577 = vld [vmem:[%s3 + $0xc] sm:$0xf]
        %v578 = vpack.c.bf16 %v573, %v573
        %v579 = vld [vmem:[%s4] sm:$0x1]
        %v581 = vlaneseq
        %v582 = vshrl.u32 %v581, 7
        %v583 = vsub.s32 0, %v582
        %v584 = vrot.slane %v579, %v583
        %v590 = vunpack.c.l.b16 %v574
        %v591 = vunpack.c.l.b16 %v575
        %v592 = vunpack.c.l.b16 %v576
        %v593 = vunpack.c.l.b16 %v577
        %v594 = vpack.c.b16 %v591, %v590
        %v595 = vpack.c.b16 %v593, %v592
        %v599 = vsel %vm529, %v578, 0
        %601 = vmatprep.subr.bf16.mxu0 0
        %602 = vmatpush1.bf16.msra.mxu0 %v594
        %603 = vmatprep.subr.bf16.mxu0 0
        %604 = vmatpush1.bf16.msra.mxu0 %v595
        %605 = vmatprep.subr.bf16.mxu0 0
        %606 = vmatpush1.bf16.msra.mxu0 0
        %607 = vmatprep.subr.bf16.mxu0 0
        %608 = vmatpush1.bf16.msra.mxu0 0
        %609 = vmatprep.subr.bf16.mxu0 0
        %610 = vmatpush1.bf16.msra.mxu0 0
        %611 = vmatprep.subr.bf16.mxu0 0
        %612 = vmatpush1.bf16.msra.mxu0 0
        %613 = vmatprep.subr.bf16.mxu0 0
        %614 = vmatpush1.bf16.msra.mxu0 0
        %615 = vmatprep.subr.bf16.mxu0 0
        %616 = vmatpush1.bf16.msra.mxu0 0
        %617 = vmatprep.subr.bf16.mxu0 0
        %618 = vmatpush1.bf16.msra.mxu0 0
        %619 = vmatprep.subr.bf16.mxu0 0
        %620 = vmatpush1.bf16.msra.mxu0 0
        %621 = vmatprep.subr.bf16.mxu0 0
        %622 = vmatpush1.bf16.msra.mxu0 0
        %623 = vmatprep.subr.bf16.mxu0 0
        %624 = vmatpush1.bf16.msra.mxu0 0
        %625 = vmatprep.subr.bf16.mxu0 0
        %626 = vmatpush1.bf16.msra.mxu0 0
        %627 = vmatprep.subr.bf16.mxu0 0
        %628 = vmatpush1.bf16.msra.mxu0 0
        %629 = vmatprep.subr.bf16.mxu0 0
        %630 = vmatpush1.bf16.msra.mxu0 0
        %631 = vmatprep.subr.bf16.mxu0 0
        %632 = vmatpush1.bf16.msra.mxu0 0
        %633 = vmatprep.mubr.bf16.mxu0 0
        %634 = vmatmul.mubr.bf16.gmra.mrb[0].mxu0 %v599
        %v635 = vpop.f32.mrb[0].mxu0
        %v636 = vadd.f32 %v584, %v635
        %v637 = vpop.f32.mrb[0].mxu0
        %v638 = vpop.f32.mrb[0].mxu0
        %v639 = vpop.f32.mrb[0].mxu0
        %640 = vdwg.mxu0
        %v641 = vmax.f32 %v636, 0.0
        %v642 = vld [vmem:[%s5] sm:$0xf]
        %v643 = vld [vmem:[%s5 + $0x4] sm:$0xf]
        %v644 = vld [vmem:[%s5 + $0x8] sm:$0xf]
        %v645 = vld [vmem:[%s5 + $0xc] sm:$0xf]
        %v646 = vpack.c.bf16 %v641, %v641
        %v651 = vunpack.c.l.b16 %v642
        %v652 = vunpack.c.l.b16 %v643
        %v653 = vunpack.c.l.b16 %v644
        %v654 = vunpack.c.l.b16 %v645
        %v655 = vpack.c.b16 %v652, %v651
        %v656 = vpack.c.b16 %v654, %v653
        %v660 = vsel %vm529, %v646, 0
        %662 = vmatprep.subr.bf16.mxu0 0
        %663 = vmatpush1.bf16.msra.mxu0 %v655
        %664 = vmatprep.subr.bf16.mxu0 0
        %665 = vmatpush1.bf16.msra.mxu0 %v656
        %666 = vmatprep.subr.bf16.mxu0 0
        %667 = vmatpush1.bf16.msra.mxu0 0
        %668 = vmatprep.subr.bf16.mxu0 0
        %669 = vmatpush1.bf16.msra.mxu0 0
        %670 = vmatprep.subr.bf16.mxu0 0
        %671 = vmatpush1.bf16.msra.mxu0 0
        %672 = vmatprep.subr.bf16.mxu0 0
        %673 = vmatpush1.bf16.msra.mxu0 0
        %674 = vmatprep.subr.bf16.mxu0 0
        %675 = vmatpush1.bf16.msra.mxu0 0
        %676 = vmatprep.subr.bf16.mxu0 0
        %677 = vmatpush1.bf16.msra.mxu0 0
        %678 = vmatprep.subr.bf16.mxu0 0
        %679 = vmatpush1.bf16.msra.mxu0 0
        %680 = vmatprep.subr.bf16.mxu0 0
        %681 = vmatpush1.bf16.msra.mxu0 0
        %682 = vmatprep.subr.bf16.mxu0 0
        %683 = vmatpush1.bf16.msra.mxu0 0
        %684 = vmatprep.subr.bf16.mxu0 0
        %685 = vmatpush1.bf16.msra.mxu0 0
        %686 = vmatprep.subr.bf16.mxu0 0
        %687 = vmatpush1.bf16.msra.mxu0 0
        %688 = vmatprep.subr.bf16.mxu0 0
        %689 = vmatpush1.bf16.msra.mxu0 0
        %690 = vmatprep.subr.bf16.mxu0 0
        %691 = vmatpush1.bf16.msra.mxu0 0
        %692 = vmatprep.subr.bf16.mxu0 0
        %693 = vmatpush1.bf16.msra.mxu0 0
        %694 = vmatprep.mubr.bf16.mxu0 0
        %695 = vmatmul.mubr.bf16.gmra.mrb[0].mxu0 %v660
        %v696 = vpop.f32.mrb[0].mxu0
        %v697 = vadd.f32 0.0, %v696
        %v698 = vpop.f32.mrb[0].mxu0
        %v699 = vpop.f32.mrb[0].mxu0
        %v700 = vpop.f32.mrb[0].mxu0
        %701 = vdwg.mxu0
        %v702 = vadd.f32 %v636, %v697
        %v703 = vld [vmem:[%s6] sm:$0x1]
        %v705 = vlaneseq
        %v706 = vshrl.u32 %v705, 7
        %v707 = vsub.s32 0, %v706
        %v708 = vrot.slane %v703, %v707
        %v710 = vadd.f32 %v702, %v708
        %v711 = vmax.f32 %v710, 0.0
        %s712 = scalar_lea.vmem %s5, 16
        %v713 = vld [vmem:[%s712] sm:$0xf]
        %v714 = vld [vmem:[%s712 + $0x4] sm:$0xf]
        %v715 = vld [vmem:[%s712 + $0x8] sm:$0xf]
        %v716 = vld [vmem:[%s712 + $0xc] sm:$0xf]
        %v717 = vpack.c.bf16 %v711, %v711
        %v722 = vunpack.c.l.b16 %v713
        %v723 = vunpack.c.l.b16 %v714
        %v724 = vunpack.c.l.b16 %v715
        %v725 = vunpack.c.l.b16 %v716
        %v726 = vpack.c.b16 %v723, %v722
        %v727 = vpack.c.b16 %v725, %v724
        %v731 = vsel %vm529, %v717, 0
        %733 = vmatprep.subr.bf16.mxu0 0
        %734 = vmatpush1.bf16.msra.mxu0 %v726
        %735 = vmatprep.subr.bf16.mxu0 0
        %736 = vmatpush1.bf16.msra.mxu0 %v727
        %737 = vmatprep.subr.bf16.mxu0 0
        %738 = vmatpush1.bf16.msra.mxu0 0
        %739 = vmatprep.subr.bf16.mxu0 0
        %740 = vmatpush1.bf16.msra.mxu0 0
        %741 = vmatprep.subr.bf16.mxu0 0
        %742 = vmatpush1.bf16.msra.mxu0 0
        %743 = vmatprep.subr.bf16.mxu0 0
        %744 = vmatpush1.bf16.msra.mxu0 0
        %745 = vmatprep.subr.bf16.mxu0 0
        %746 = vmatpush1.bf16.msra.mxu0 0
        %747 = vmatprep.subr.bf16.mxu0 0
        %748 = vmatpush1.bf16.msra.mxu0 0
        %749 = vmatprep.subr.bf16.mxu0 0
        %750 = vmatpush1.bf16.msra.mxu0 0
        %751 = vmatprep.subr.bf16.mxu0 0
        %752 = vmatpush1.bf16.msra.mxu0 0
        %753 = vmatprep.subr.bf16.mxu0 0
        %754 = vmatpush1.bf16.msra.mxu0 0
        %755 = vmatprep.subr.bf16.mxu0 0
        %756 = vmatpush1.bf16.msra.mxu0 0
        %757 = vmatprep.subr.bf16.mxu0 0
        %758 = vmatpush1.bf16.msra.mxu0 0
        %759 = vmatprep.subr.bf16.mxu0 0
        %760 = vmatpush1.bf16.msra.mxu0 0
        %761 = vmatprep.subr.bf16.mxu0 0
        %762 = vmatpush1.bf16.msra.mxu0 0
        %763 = vmatprep.subr.bf16.mxu0 0
        %764 = vmatpush1.bf16.msra.mxu0 0
        %765 = vmatprep.mubr.bf16.mxu0 0
        %766 = vmatmul.mubr.bf16.gmra.mrb[0].mxu0 %v731
        %v767 = vpop.f32.mrb[0].mxu0
        %v768 = vadd.f32 0.0, %v767
        %v769 = vpop.f32.mrb[0].mxu0
        %v770 = vpop.f32.mrb[0].mxu0
        %v771 = vpop.f32.mrb[0].mxu0
        %772 = vdwg.mxu0
        %v773 = vadd.f32 %v710, %v768
        %s774 = scalar_lea.vmem %s6, 1
        %v775 = vld [vmem:[%s774] sm:$0x1]
        %v777 = vlaneseq
        %v778 = vshrl.u32 %v777, 7
        %v779 = vsub.s32 0, %v778
        %v780 = vrot.slane %v775, %v779
        %v782 = vadd.f32 %v773, %v780
        %v783 = vld [vmem:[%s7] sm:$0xff]
        %v784 = vld [vmem:[%s7 + $0x8] sm:$0xff]
        %v785 = vld [vmem:[%s7 + $0x10] sm:$0xff]
        %v786 = vld [vmem:[%s7 + $0x18] sm:$0xff]
        %v787 = vld [vmem:[%s7 + $0x20] sm:$0xff]
        %v788 = vld [vmem:[%s7 + $0x28] sm:$0xff]
        %v789 = vld [vmem:[%s7 + $0x30] sm:$0xff]
        %v790 = vld [vmem:[%s7 + $0x38] sm:$0xff]
        %v791 = vld [vmem:[%s7 + $0x40] sm:$0xff]
        %v792 = vld [vmem:[%s7 + $0x48] sm:$0xff]
        %v793 = vld [vmem:[%s7 + $0x50] sm:$0xff]
        %v794 = vld [vmem:[%s7 + $0x58] sm:$0xff]
        %v795 = vld [vmem:[%s7 + $0x60] sm:$0xff]
        %v796 = vld [vmem:[%s7 + $0x68] sm:$0xff]
        %v797 = vld [vmem:[%s7 + $0x70] sm:$0xff]
        %v798 = vld [vmem:[%s7 + $0x78] sm:$0xff]
        %v799 = vld [vmem:[%s7 + $0x80] sm:$0xff]
        %v800 = vld [vmem:[%s7 + $0x88] sm:$0xff]
        %v801 = vld [vmem:[%s7 + $0x90] sm:$0xff]
        %v802 = vld [vmem:[%s7 + $0x98] sm:$0xff]
        %v803 = vld [vmem:[%s7 + $0xa0] sm:$0xff]
        %v804 = vld [vmem:[%s7 + $0xa8] sm:$0xff]
        %v805 = vld [vmem:[%s7 + $0xb0] sm:$0xff]
        %v806 = vld [vmem:[%s7 + $0xb8] sm:$0xff]
        %v807 = vld [vmem:[%s7 + $0xc0] sm:$0xff]
        %v808 = vld [vmem:[%s7 + $0xc8] sm:$0xff]
        %v809 = vld [vmem:[%s7 + $0xd0] sm:$0xff]
        %v810 = vld [vmem:[%s7 + $0xd8] sm:$0xff]
        %v811 = vld [vmem:[%s7 + $0xe0] sm:$0xff]
        %v812 = vld [vmem:[%s7 + $0xe8] sm:$0xff]
        %v813 = vld [vmem:[%s7 + $0xf0] sm:$0xff]
        %v814 = vld [vmem:[%s7 + $0xf8] sm:$0xff]
        %v815 = vld [vmem:[%s7 + $0x100] sm:$0xff]
        %v816 = vld [vmem:[%s7 + $0x108] sm:$0xff]
        %v817 = vld [vmem:[%s7 + $0x110] sm:$0xff]
        %v818 = vld [vmem:[%s7 + $0x118] sm:$0xff]
        %v819 = vld [vmem:[%s7 + $0x120] sm:$0xff]
        %v820 = vld [vmem:[%s7 + $0x128] sm:$0xff]
        %v821 = vld [vmem:[%s7 + $0x130] sm:$0xff]
        %v822 = vld [vmem:[%s7 + $0x138] sm:$0xff]
        %v823 = vld [vmem:[%s7 + $0x140] sm:$0xff]
        %v824 = vld [vmem:[%s7 + $0x148] sm:$0xff]
        %v825 = vld [vmem:[%s7 + $0x150] sm:$0xff]
        %v826 = vld [vmem:[%s7 + $0x158] sm:$0xff]
        %v827 = vld [vmem:[%s7 + $0x160] sm:$0xff]
        %v828 = vld [vmem:[%s7 + $0x168] sm:$0xff]
        %v829 = vld [vmem:[%s7 + $0x170] sm:$0xff]
        %v830 = vld [vmem:[%s7 + $0x178] sm:$0xff]
        %v831 = vld [vmem:[%s7 + $0x180] sm:$0xff]
        %v832 = vld [vmem:[%s7 + $0x188] sm:$0xff]
        %v833 = vld [vmem:[%s7 + $0x190] sm:$0xff]
        %v834 = vld [vmem:[%s7 + $0x198] sm:$0xff]
        %v835 = vld [vmem:[%s7 + $0x1a0] sm:$0xff]
        %v836 = vld [vmem:[%s7 + $0x1a8] sm:$0xff]
        %v837 = vld [vmem:[%s7 + $0x1b0] sm:$0xff]
        %v838 = vld [vmem:[%s7 + $0x1b8] sm:$0xff]
        %v839 = vld [vmem:[%s7 + $0x1c0] sm:$0xff]
        %v840 = vld [vmem:[%s7 + $0x1c8] sm:$0xff]
        %v841 = vld [vmem:[%s7 + $0x1d0] sm:$0xff]
        %v842 = vld [vmem:[%s7 + $0x1d8] sm:$0xff]
        %v843 = vld [vmem:[%s7 + $0x1e0] sm:$0xff]
        %v844 = vld [vmem:[%s7 + $0x1e8] sm:$0xff]
        %v845 = vld [vmem:[%s7 + $0x1f0] sm:$0xff]
        %v846 = vld [vmem:[%s7 + $0x1f8] sm:$0xff]
        %v847 = vld [vmem:[%s8] sm:$0xff]
        %v848 = vld [vmem:[%s8 + $0x8] sm:$0xff]
        %v851 = vlaneseq
        %v852 = vshrl.u32 %v851, 7
        %v853 = vsub.s32 0, %v852
        %v854 = vrot.slane %v847, %v853
        %v855 = vlaneseq
        %v856 = vshrl.u32 %v855, 7
        %v857 = vsub.s32 1, %v856
        %v858 = vrot.slane %v847, %v857
        %v859 = vlaneseq
        %v860 = vshrl.u32 %v859, 7
        %v861 = vsub.s32 2, %v860
        %v862 = vrot.slane %v847, %v861
        %v863 = vlaneseq
        %v864 = vshrl.u32 %v863, 7
        %v865 = vsub.s32 3, %v864
        %v866 = vrot.slane %v847, %v865
        %v867 = vlaneseq
        %v868 = vshrl.u32 %v867, 7
        %v869 = vsub.s32 4, %v868
        %v870 = vrot.slane %v847, %v869
        %v871 = vlaneseq
        %v872 = vshrl.u32 %v871, 7
        %v873 = vsub.s32 5, %v872
        %v874 = vrot.slane %v847, %v873
        %v875 = vlaneseq
        %v876 = vshrl.u32 %v875, 7
        %v877 = vsub.s32 6, %v876
        %v878 = vrot.slane %v847, %v877
        %v879 = vlaneseq
        %v880 = vshrl.u32 %v879, 7
        %v881 = vsub.s32 7, %v880
        %v882 = vrot.slane %v847, %v881
        %v883 = vlaneseq
        %v884 = vshrl.u32 %v883, 7
        %v885 = vsub.s32 0, %v884
        %v886 = vrot.slane %v848, %v885
        %v887 = vlaneseq
        %v888 = vshrl.u32 %v887, 7
        %v889 = vsub.s32 1, %v888
        %v890 = vrot.slane %v848, %v889
        %v891 = vlaneseq
        %v892 = vshrl.u32 %v891, 7
        %v893 = vsub.s32 2, %v892
        %v894 = vrot.slane %v848, %v893
        %v895 = vlaneseq
        %v896 = vshrl.u32 %v895, 7
        %v897 = vsub.s32 3, %v896
        %v898 = vrot.slane %v848, %v897
        %v899 = vlaneseq
        %v900 = vshrl.u32 %v899, 7
        %v901 = vsub.s32 4, %v900
        %v902 = vrot.slane %v848, %v901
        %v903 = vlaneseq
        %v904 = vshrl.u32 %v903, 7
        %v905 = vsub.s32 5, %v904
        %v906 = vrot.slane %v848, %v905
        %v907 = vlaneseq
        %v908 = vshrl.u32 %v907, 7
        %v909 = vsub.s32 6, %v908
        %v910 = vrot.slane %v848, %v909
        %v911 = vlaneseq
        %v912 = vshrl.u32 %v911, 7
        %v913 = vsub.s32 7, %v912
        %v914 = vrot.slane %v848, %v913
        %v932 = vsel %vm529, %v782, 0
        %934 = vmatprep.subr.mxu0 %v784
        %935 = vmatpush1.msra.mxu0 %v783
        %936 = vmatprep.subr.mxu0 %v800
        %937 = vmatpush1.msra.mxu0 %v799
        %938 = vmatprep.subr.mxu0 %v816
        %939 = vmatpush1.msra.mxu0 %v815
        %940 = vmatprep.subr.mxu0 %v832
        %941 = vmatpush1.msra.mxu0 %v831
        %942 = vmatprep.subr.mxu0 0.0
        %943 = vmatpush1.msra.mxu0 0.0
        %944 = vmatprep.subr.mxu0 0.0
        %945 = vmatpush1.msra.mxu0 0.0
        %946 = vmatprep.subr.mxu0 0.0
        %947 = vmatpush1.msra.mxu0 0.0
        %948 = vmatprep.subr.mxu0 0.0
        %949 = vmatpush1.msra.mxu0 0.0
        %950 = vmatprep.subr.mxu0 0.0
        %951 = vmatpush1.msra.mxu0 0.0
        %952 = vmatprep.subr.mxu0 0.0
        %953 = vmatpush1.msra.mxu0 0.0
        %954 = vmatprep.subr.mxu0 0.0
        %955 = vmatpush1.msra.mxu0 0.0
        %956 = vmatprep.subr.mxu0 0.0
        %957 = vmatpush1.msra.mxu0 0.0
        %958 = vmatprep.subr.mxu0 0.0
        %959 = vmatpush1.msra.mxu0 0.0
        %960 = vmatprep.subr.mxu0 0.0
        %961 = vmatpush1.msra.mxu0 0.0
        %962 = vmatprep.subr.mxu0 0.0
        %963 = vmatpush1.msra.mxu0 0.0
        %964 = vmatprep.subr.mxu0 0.0
        %965 = vmatpush1.msra.mxu0 0.0
        %966 = vmatprep.subr.mxu0 0.0
        %967 = vmatpush1.msra.mxu0 0.0
        %968 = vmatprep.subr.mxu0 0.0
        %969 = vmatpush1.msra.mxu0 0.0
        %970 = vmatprep.subr.mxu0 0.0
        %971 = vmatpush1.msra.mxu0 0.0
        %972 = vmatprep.subr.mxu0 0.0
        %973 = vmatpush1.msra.mxu0 0.0
        %974 = vmatprep.subr.mxu0 0.0
        %975 = vmatpush1.msra.mxu0 0.0
        %976 = vmatprep.subr.mxu0 0.0
        %977 = vmatpush1.msra.mxu0 0.0
        %978 = vmatprep.subr.mxu0 0.0
        %979 = vmatpush1.msra.mxu0 0.0
        %980 = vmatprep.subr.mxu0 0.0
        %981 = vmatpush1.msra.mxu0 0.0
        %982 = vmatprep.subr.mxu0 0.0
        %983 = vmatpush1.msra.mxu0 0.0
        %984 = vmatprep.subr.mxu0 0.0
        %985 = vmatpush1.msra.mxu0 0.0
        %986 = vmatprep.subr.mxu0 0.0
        %987 = vmatpush1.msra.mxu0 0.0
        %988 = vmatprep.subr.mxu0 0.0
        %989 = vmatpush1.msra.mxu0 0.0
        %990 = vmatprep.subr.mxu0 0.0
        %991 = vmatpush1.msra.mxu0 0.0
        %992 = vmatprep.subr.mxu0 0.0
        %993 = vmatpush1.msra.mxu0 0.0
        %994 = vmatprep.subr.mxu0 0.0
        %995 = vmatpush1.msra.mxu0 0.0
        %996 = vmatprep.subr.mxu0 0.0
        %997 = vmatpush1.msra.mxu0 0.0
        %998 = vmatprep.mubr.f32.mxu0 0.0
        %999 = vmatmul.mubr.f32.gmra.mrb[0].mxu0 %v932
        %v1000 = vpop.f32.mrb[0].mxu0
        %v1001 = vadd.f32 %v854, %v1000
        %v1002 = vpop.f32.mrb[0].mxu0
        %v1003 = vadd.f32 %v858, %v1002
        %1004 = vdwg.mxu0
        %1005 = vmatprep.subr.mxu0 %v786
        %1006 = vmatpush1.msra.mxu0 %v785
        %1007 = vmatprep.subr.mxu0 %v802
        %1008 = vmatpush1.msra.mxu0 %v801
        %1009 = vmatprep.subr.mxu0 %v818
        %1010 = vmatpush1.msra.mxu0 %v817
        %1011 = vmatprep.subr.mxu0 %v834
        %1012 = vmatpush1.msra.mxu0 %v833
        %1013 = vmatprep.subr.mxu0 0.0
        %1014 = vmatpush1.msra.mxu0 0.0
        %1015 = vmatprep.subr.mxu0 0.0
        %1016 = vmatpush1.msra.mxu0 0.0
        %1017 = vmatprep.subr.mxu0 0.0
        %1018 = vmatpush1.msra.mxu0 0.0
        %1019 = vmatprep.subr.mxu0 0.0
        %1020 = vmatpush1.msra.mxu0 0.0
        %1021 = vmatprep.subr.mxu0 0.0
        %1022 = vmatpush1.msra.mxu0 0.0
        %1023 = vmatprep.subr.mxu0 0.0
        %1024 = vmatpush1.msra.mxu0 0.0
        %1025 = vmatprep.subr.mxu0 0.0
        %1026 = vmatpush1.msra.mxu0 0.0
        %1027 = vmatprep.subr.mxu0 0.0
        %1028 = vmatpush1.msra.mxu0 0.0
        %1029 = vmatprep.subr.mxu0 0.0
        %1030 = vmatpush1.msra.mxu0 0.0
        %1031 = vmatprep.subr.mxu0 0.0
        %1032 = vmatpush1.msra.mxu0 0.0
        %1033 = vmatprep.subr.mxu0 0.0
        %1034 = vmatpush1.msra.mxu0 0.0
        %1035 = vmatprep.subr.mxu0 0.0
        %1036 = vmatpush1.msra.mxu0 0.0
        %1037 = vmatprep.subr.mxu0 0.0
        %1038 = vmatpush1.msra.mxu0 0.0
        %1039 = vmatprep.subr.mxu0 0.0
        %1040 = vmatpush1.msra.mxu0 0.0
        %1041 = vmatprep.subr.mxu0 0.0
        %1042 = vmatpush1.msra.mxu0 0.0
        %1043 = vmatprep.subr.mxu0 0.0
        %1044 = vmatpush1.msra.mxu0 0.0
        %1045 = vmatprep.subr.mxu0 0.0
        %1046 = vmatpush1.msra.mxu0 0.0
        %1047 = vmatprep.subr.mxu0 0.0
        %1048 = vmatpush1.msra.mxu0 0.0
        %1049 = vmatprep.subr.mxu0 0.0
        %1050 = vmatpush1.msra.mxu0 0.0
        %1051 = vmatprep.subr.mxu0 0.0
        %1052 = vmatpush1.msra.mxu0 0.0
        %1053 = vmatprep.subr.mxu0 0.0
        %1054 = vmatpush1.msra.mxu0 0.0
        %1055 = vmatprep.subr.mxu0 0.0
        %1056 = vmatpush1.msra.mxu0 0.0
        %1057 = vmatprep.subr.mxu0 0.0
        %1058 = vmatpush1.msra.mxu0 0.0
        %1059 = vmatprep.subr.mxu0 0.0
        %1060 = vmatpush1.msra.mxu0 0.0
        %1061 = vmatprep.subr.mxu0 0.0
        %1062 = vmatpush1.msra.mxu0 0.0
        %1063 = vmatprep.subr.mxu0 0.0
        %1064 = vmatpush1.msra.mxu0 0.0
        %1065 = vmatprep.subr.mxu0 0.0
        %1066 = vmatpush1.msra.mxu0 0.0
        %1067 = vmatprep.subr.mxu0 0.0
        %1068 = vmatpush1.msra.mxu0 0.0
        %1069 = vmatprep.mubr.f32.mxu0 0.0
        %1070 = vmatmul.mubr.f32.gmra.mrb[0].mxu0 %v932
        %v1071 = vpop.f32.mrb[0].mxu0
        %v1072 = vadd.f32 %v862, %v1071
        %v1073 = vpop.f32.mrb[0].mxu0
        %v1074 = vadd.f32 %v866, %v1073
        %1075 = vdwg.mxu0
        %1076 = vmatprep.subr.mxu0 %v788
        %1077 = vmatpush1.msra.mxu0 %v787
        %1078 = vmatprep.subr.mxu0 %v804
        %1079 = vmatpush1.msra.mxu0 %v803
        %1080 = vmatprep.subr.mxu0 %v820
        %1081 = vmatpush1.msra.mxu0 %v819
        %1082 = vmatprep.subr.mxu0 %v836
        %1083 = vmatpush1.msra.mxu0 %v835
        %1084 = vmatprep.subr.mxu0 0.0
        %1085 = vmatpush1.msra.mxu0 0.0
        %1086 = vmatprep.subr.mxu0 0.0
        %1087 = vmatpush1.msra.mxu0 0.0
        %1088 = vmatprep.subr.mxu0 0.0
        %1089 = vmatpush1.msra.mxu0 0.0
        %1090 = vmatprep.subr.mxu0 0.0
        %1091 = vmatpush1.msra.mxu0 0.0
        %1092 = vmatprep.subr.mxu0 0.0
        %1093 = vmatpush1.msra.mxu0 0.0
        %1094 = vmatprep.subr.mxu0 0.0
        %1095 = vmatpush1.msra.mxu0 0.0
        %1096 = vmatprep.subr.mxu0 0.0
        %1097 = vmatpush1.msra.mxu0 0.0
        %1098 = vmatprep.subr.mxu0 0.0
        %1099 = vmatpush1.msra.mxu0 0.0
        %1100 = vmatprep.subr.mxu0 0.0
        %1101 = vmatpush1.msra.mxu0 0.0
        %1102 = vmatprep.subr.mxu0 0.0
        %1103 = vmatpush1.msra.mxu0 0.0
        %1104 = vmatprep.subr.mxu0 0.0
        %1105 = vmatpush1.msra.mxu0 0.0
        %1106 = vmatprep.subr.mxu0 0.0
        %1107 = vmatpush1.msra.mxu0 0.0
        %1108 = vmatprep.subr.mxu0 0.0
        %1109 = vmatpush1.msra.mxu0 0.0
        %1110 = vmatprep.subr.mxu0 0.0
        %1111 = vmatpush1.msra.mxu0 0.0
        %1112 = vmatprep.subr.mxu0 0.0
        %1113 = vmatpush1.msra.mxu0 0.0
        %1114 = vmatprep.subr.mxu0 0.0
        %1115 = vmatpush1.msra.mxu0 0.0
        %1116 = vmatprep.subr.mxu0 0.0
        %1117 = vmatpush1.msra.mxu0 0.0
        %1118 = vmatprep.subr.mxu0 0.0
        %1119 = vmatpush1.msra.mxu0 0.0
        %1120 = vmatprep.subr.mxu0 0.0
        %1121 = vmatpush1.msra.mxu0 0.0
        %1122 = vmatprep.subr.mxu0 0.0
        %1123 = vmatpush1.msra.mxu0 0.0
        %1124 = vmatprep.subr.mxu0 0.0
        %1125 = vmatpush1.msra.mxu0 0.0
        %1126 = vmatprep.subr.mxu0 0.0
        %1127 = vmatpush1.msra.mxu0 0.0
        %1128 = vmatprep.subr.mxu0 0.0
        %1129 = vmatpush1.msra.mxu0 0.0
        %1130 = vmatprep.subr.mxu0 0.0
        %1131 = vmatpush1.msra.mxu0 0.0
        %1132 = vmatprep.subr.mxu0 0.0
        %1133 = vmatpush1.msra.mxu0 0.0
        %1134 = vmatprep.subr.mxu0 0.0
        %1135 = vmatpush1.msra.mxu0 0.0
        %1136 = vmatprep.subr.mxu0 0.0
        %1137 = vmatpush1.msra.mxu0 0.0
        %1138 = vmatprep.subr.mxu0 0.0
        %1139 = vmatpush1.msra.mxu0 0.0
        %1140 = vmatprep.mubr.f32.mxu0 0.0
        %1141 = vmatmul.mubr.f32.gmra.mrb[0].mxu0 %v932
        %v1142 = vpop.f32.mrb[0].mxu0
        %v1143 = vadd.f32 %v870, %v1142
        %v1144 = vpop.f32.mrb[0].mxu0
        %v1145 = vadd.f32 %v874, %v1144
        %1146 = vdwg.mxu0
        %1147 = vmatprep.subr.mxu0 %v790
        %1148 = vmatpush1.msra.mxu0 %v789
        %1149 = vmatprep.subr.mxu0 %v806
        %1150 = vmatpush1.msra.mxu0 %v805
        %1151 = vmatprep.subr.mxu0 %v822
        %1152 = vmatpush1.msra.mxu0 %v821
        %1153 = vmatprep.subr.mxu0 %v838
        %1154 = vmatpush1.msra.mxu0 %v837
        %1155 = vmatprep.subr.mxu0 0.0
        %1156 = vmatpush1.msra.mxu0 0.0
        %1157 = vmatprep.subr.mxu0 0.0
        %1158 = vmatpush1.msra.mxu0 0.0
        %1159 = vmatprep.subr.mxu0 0.0
        %1160 = vmatpush1.msra.mxu0 0.0
        %1161 = vmatprep.subr.mxu0 0.0
        %1162 = vmatpush1.msra.mxu0 0.0
        %1163 = vmatprep.subr.mxu0 0.0
        %1164 = vmatpush1.msra.mxu0 0.0
        %1165 = vmatprep.subr.mxu0 0.0
        %1166 = vmatpush1.msra.mxu0 0.0
        %1167 = vmatprep.subr.mxu0 0.0
        %1168 = vmatpush1.msra.mxu0 0.0
        %1169 = vmatprep.subr.mxu0 0.0
        %1170 = vmatpush1.msra.mxu0 0.0
        %1171 = vmatprep.subr.mxu0 0.0
        %1172 = vmatpush1.msra.mxu0 0.0
        %1173 = vmatprep.subr.mxu0 0.0
        %1174 = vmatpush1.msra.mxu0 0.0
        %1175 = vmatprep.subr.mxu0 0.0
        %1176 = vmatpush1.msra.mxu0 0.0
        %1177 = vmatprep.subr.mxu0 0.0
        %1178 = vmatpush1.msra.mxu0 0.0
        %1179 = vmatprep.subr.mxu0 0.0
        %1180 = vmatpush1.msra.mxu0 0.0
        %1181 = vmatprep.subr.mxu0 0.0
        %1182 = vmatpush1.msra.mxu0 0.0
        %1183 = vmatprep.subr.mxu0 0.0
        %1184 = vmatpush1.msra.mxu0 0.0
        %1185 = vmatprep.subr.mxu0 0.0
        %1186 = vmatpush1.msra.mxu0 0.0
        %1187 = vmatprep.subr.mxu0 0.0
        %1188 = vmatpush1.msra.mxu0 0.0
        %1189 = vmatprep.subr.mxu0 0.0
        %1190 = vmatpush1.msra.mxu0 0.0
        %1191 = vmatprep.subr.mxu0 0.0
        %1192 = vmatpush1.msra.mxu0 0.0
        %1193 = vmatprep.subr.mxu0 0.0
        %1194 = vmatpush1.msra.mxu0 0.0
        %1195 = vmatprep.subr.mxu0 0.0
        %1196 = vmatpush1.msra.mxu0 0.0
        %1197 = vmatprep.subr.mxu0 0.0
        %1198 = vmatpush1.msra.mxu0 0.0
        %1199 = vmatprep.subr.mxu0 0.0
        %1200 = vmatpush1.msra.mxu0 0.0
        %1201 = vmatprep.subr.mxu0 0.0
        %1202 = vmatpush1.msra.mxu0 0.0
        %1203 = vmatprep.subr.mxu0 0.0
        %1204 = vmatpush1.msra.mxu0 0.0
        %1205 = vmatprep.subr.mxu0 0.0
        %1206 = vmatpush1.msra.mxu0 0.0
        %1207 = vmatprep.subr.mxu0 0.0
        %1208 = vmatpush1.msra.mxu0 0.0
        %1209 = vmatprep.subr.mxu0 0.0
        %1210 = vmatpush1.msra.mxu0 0.0
        %1211 = vmatprep.mubr.f32.mxu0 0.0
        %1212 = vmatmul.mubr.f32.gmra.mrb[0].mxu0 %v932
        %v1213 = vpop.f32.mrb[0].mxu0
        %v1214 = vadd.f32 %v878, %v1213
        %v1215 = vpop.f32.mrb[0].mxu0
        %v1216 = vadd.f32 %v882, %v1215
        %1217 = vdwg.mxu0
        %1218 = vmatprep.subr.mxu0 %v792
        %1219 = vmatpush1.msra.mxu0 %v791
        %1220 = vmatprep.subr.mxu0 %v808
        %1221 = vmatpush1.msra.mxu0 %v807
        %1222 = vmatprep.subr.mxu0 %v824
        %1223 = vmatpush1.msra.mxu0 %v823
        %1224 = vmatprep.subr.mxu0 %v840
        %1225 = vmatpush1.msra.mxu0 %v839
        %1226 = vmatprep.subr.mxu0 0.0
        %1227 = vmatpush1.msra.mxu0 0.0
        %1228 = vmatprep.subr.mxu0 0.0
        %1229 = vmatpush1.msra.mxu0 0.0
        %1230 = vmatprep.subr.mxu0 0.0
        %1231 = vmatpush1.msra.mxu0 0.0
        %1232 = vmatprep.subr.mxu0 0.0
        %1233 = vmatpush1.msra.mxu0 0.0
        %1234 = vmatprep.subr.mxu0 0.0
        %1235 = vmatpush1.msra.mxu0 0.0
        %1236 = vmatprep.subr.mxu0 0.0
        %1237 = vmatpush1.msra.mxu0 0.0
        %1238 = vmatprep.subr.mxu0 0.0
        %1239 = vmatpush1.msra.mxu0 0.0
        %1240 = vmatprep.subr.mxu0 0.0
        %1241 = vmatpush1.msra.mxu0 0.0
        %1242 = vmatprep.subr.mxu0 0.0
        %1243 = vmatpush1.msra.mxu0 0.0
        %1244 = vmatprep.subr.mxu0 0.0
        %1245 = vmatpush1.msra.mxu0 0.0
        %1246 = vmatprep.subr.mxu0 0.0
        %1247 = vmatpush1.msra.mxu0 0.0
        %1248 = vmatprep.subr.mxu0 0.0
        %1249 = vmatpush1.msra.mxu0 0.0
        %1250 = vmatprep.subr.mxu0 0.0
        %1251 = vmatpush1.msra.mxu0 0.0
        %1252 = vmatprep.subr.mxu0 0.0
        %1253 = vmatpush1.msra.mxu0 0.0
        %1254 = vmatprep.subr.mxu0 0.0
        %1255 = vmatpush1.msra.mxu0 0.0
        %1256 = vmatprep.subr.mxu0 0.0
        %1257 = vmatpush1.msra.mxu0 0.0
        %1258 = vmatprep.subr.mxu0 0.0
        %1259 = vmatpush1.msra.mxu0 0.0
        %1260 = vmatprep.subr.mxu0 0.0
        %1261 = vmatpush1.msra.mxu0 0.0
        %1262 = vmatprep.subr.mxu0 0.0
        %1263 = vmatpush1.msra.mxu0 0.0
        %1264 = vmatprep.subr.mxu0 0.0
        %1265 = vmatpush1.msra.mxu0 0.0
        %1266 = vmatprep.subr.mxu0 0.0
        %1267 = vmatpush1.msra.mxu0 0.0
        %1268 = vmatprep.subr.mxu0 0.0
        %1269 = vmatpush1.msra.mxu0 0.0
        %1270 = vmatprep.subr.mxu0 0.0
        %1271 = vmatpush1.msra.mxu0 0.0
        %1272 = vmatprep.subr.mxu0 0.0
        %1273 = vmatpush1.msra.mxu0 0.0
        %1274 = vmatprep.subr.mxu0 0.0
        %1275 = vmatpush1.msra.mxu0 0.0
        %1276 = vmatprep.subr.mxu0 0.0
        %1277 = vmatpush1.msra.mxu0 0.0
        %1278 = vmatprep.subr.mxu0 0.0
        %1279 = vmatpush1.msra.mxu0 0.0
        %1280 = vmatprep.subr.mxu0 0.0
        %1281 = vmatpush1.msra.mxu0 0.0
        %1282 = vmatprep.mubr.f32.mxu0 0.0
        %1283 = vmatmul.mubr.f32.gmra.mrb[0].mxu0 %v932
        %v1284 = vpop.f32.mrb[0].mxu0
        %v1285 = vadd.f32 %v886, %v1284
        %v1286 = vpop.f32.mrb[0].mxu0
        %v1287 = vadd.f32 %v890, %v1286
        %1288 = vdwg.mxu0
        %1289 = vmatprep.subr.mxu0 %v794
        %1290 = vmatpush1.msra.mxu0 %v793
        %1291 = vmatprep.subr.mxu0 %v810
        %1292 = vmatpush1.msra.mxu0 %v809
        %1293 = vmatprep.subr.mxu0 %v826
        %1294 = vmatpush1.msra.mxu0 %v825
        %1295 = vmatprep.subr.mxu0 %v842
        %1296 = vmatpush1.msra.mxu0 %v841
        %1297 = vmatprep.subr.mxu0 0.0
        %1298 = vmatpush1.msra.mxu0 0.0
        %1299 = vmatprep.subr.mxu0 0.0
        %1300 = vmatpush1.msra.mxu0 0.0
        %1301 = vmatprep.subr.mxu0 0.0
        %1302 = vmatpush1.msra.mxu0 0.0
        %1303 = vmatprep.subr.mxu0 0.0
        %1304 = vmatpush1.msra.mxu0 0.0
        %1305 = vmatprep.subr.mxu0 0.0
        %1306 = vmatpush1.msra.mxu0 0.0
        %1307 = vmatprep.subr.mxu0 0.0
        %1308 = vmatpush1.msra.mxu0 0.0
        %1309 = vmatprep.subr.mxu0 0.0
        %1310 = vmatpush1.msra.mxu0 0.0
        %1311 = vmatprep.subr.mxu0 0.0
        %1312 = vmatpush1.msra.mxu0 0.0
        %1313 = vmatprep.subr.mxu0 0.0
        %1314 = vmatpush1.msra.mxu0 0.0
        %1315 = vmatprep.subr.mxu0 0.0
        %1316 = vmatpush1.msra.mxu0 0.0
        %1317 = vmatprep.subr.mxu0 0.0
        %1318 = vmatpush1.msra.mxu0 0.0
        %1319 = vmatprep.subr.mxu0 0.0
        %1320 = vmatpush1.msra.mxu0 0.0
        %1321 = vmatprep.subr.mxu0 0.0
        %1322 = vmatpush1.msra.mxu0 0.0
        %1323 = vmatprep.subr.mxu0 0.0
        %1324 = vmatpush1.msra.mxu0 0.0
        %1325 = vmatprep.subr.mxu0 0.0
        %1326 = vmatpush1.msra.mxu0 0.0
        %1327 = vmatprep.subr.mxu0 0.0
        %1328 = vmatpush1.msra.mxu0 0.0
        %1329 = vmatprep.subr.mxu0 0.0
        %1330 = vmatpush1.msra.mxu0 0.0
        %1331 = vmatprep.subr.mxu0 0.0
        %1332 = vmatpush1.msra.mxu0 0.0
        %1333 = vmatprep.subr.mxu0 0.0
        %1334 = vmatpush1.msra.mxu0 0.0
        %1335 = vmatprep.subr.mxu0 0.0
        %1336 = vmatpush1.msra.mxu0 0.0
        %1337 = vmatprep.subr.mxu0 0.0
        %1338 = vmatpush1.msra.mxu0 0.0
        %1339 = vmatprep.subr.mxu0 0.0
        %1340 = vmatpush1.msra.mxu0 0.0
        %1341 = vmatprep.subr.mxu0 0.0
        %1342 = vmatpush1.msra.mxu0 0.0
        %1343 = vmatprep.subr.mxu0 0.0
        %1344 = vmatpush1.msra.mxu0 0.0
        %1345 = vmatprep.subr.mxu0 0.0
        %1346 = vmatpush1.msra.mxu0 0.0
        %1347 = vmatprep.subr.mxu0 0.0
        %1348 = vmatpush1.msra.mxu0 0.0
        %1349 = vmatprep.subr.mxu0 0.0
        %1350 = vmatpush1.msra.mxu0 0.0
        %1351 = vmatprep.subr.mxu0 0.0
        %1352 = vmatpush1.msra.mxu0 0.0
        %1353 = vmatprep.mubr.f32.mxu0 0.0
        %1354 = vmatmul.mubr.f32.gmra.mrb[0].mxu0 %v932
        %v1355 = vpop.f32.mrb[0].mxu0
        %v1356 = vadd.f32 %v894, %v1355
        %v1357 = vpop.f32.mrb[0].mxu0
        %v1358 = vadd.f32 %v898, %v1357
        %1359 = vdwg.mxu0
        %1360 = vmatprep.subr.mxu0 %v796
        %1361 = vmatpush1.msra.mxu0 %v795
        %1362 = vmatprep.subr.mxu0 %v812
        %1363 = vmatpush1.msra.mxu0 %v811
        %1364 = vmatprep.subr.mxu0 %v828
        %1365 = vmatpush1.msra.mxu0 %v827
        %1366 = vmatprep.subr.mxu0 %v844
        %1367 = vmatpush1.msra.mxu0 %v843
        %1368 = vmatprep.subr.mxu0 0.0
        %1369 = vmatpush1.msra.mxu0 0.0
        %1370 = vmatprep.subr.mxu0 0.0
        %1371 = vmatpush1.msra.mxu0 0.0
        %1372 = vmatprep.subr.mxu0 0.0
        %1373 = vmatpush1.msra.mxu0 0.0
        %1374 = vmatprep.subr.mxu0 0.0
        %1375 = vmatpush1.msra.mxu0 0.0
        %1376 = vmatprep.subr.mxu0 0.0
        %1377 = vmatpush1.msra.mxu0 0.0
        %1378 = vmatprep.subr.mxu0 0.0
        %1379 = vmatpush1.msra.mxu0 0.0
        %1380 = vmatprep.subr.mxu0 0.0
        %1381 = vmatpush1.msra.mxu0 0.0
        %1382 = vmatprep.subr.mxu0 0.0
        %1383 = vmatpush1.msra.mxu0 0.0
        %1384 = vmatprep.subr.mxu0 0.0
        %1385 = vmatpush1.msra.mxu0 0.0
        %1386 = vmatprep.subr.mxu0 0.0
        %1387 = vmatpush1.msra.mxu0 0.0
        %1388 = vmatprep.subr.mxu0 0.0
        %1389 = vmatpush1.msra.mxu0 0.0
        %1390 = vmatprep.subr.mxu0 0.0
        %1391 = vmatpush1.msra.mxu0 0.0
        %1392 = vmatprep.subr.mxu0 0.0
        %1393 = vmatpush1.msra.mxu0 0.0
        %1394 = vmatprep.subr.mxu0 0.0
        %1395 = vmatpush1.msra.mxu0 0.0
        %1396 = vmatprep.subr.mxu0 0.0
        %1397 = vmatpush1.msra.mxu0 0.0
        %1398 = vmatprep.subr.mxu0 0.0
        %1399 = vmatpush1.msra.mxu0 0.0
        %1400 = vmatprep.subr.mxu0 0.0
        %1401 = vmatpush1.msra.mxu0 0.0
        %1402 = vmatprep.subr.mxu0 0.0
        %1403 = vmatpush1.msra.mxu0 0.0
        %1404 = vmatprep.subr.mxu0 0.0
        %1405 = vmatpush1.msra.mxu0 0.0
        %1406 = vmatprep.subr.mxu0 0.0
        %1407 = vmatpush1.msra.mxu0 0.0
        %1408 = vmatprep.subr.mxu0 0.0
        %1409 = vmatpush1.msra.mxu0 0.0
        %1410 = vmatprep.subr.mxu0 0.0
        %1411 = vmatpush1.msra.mxu0 0.0
        %1412 = vmatprep.subr.mxu0 0.0
        %1413 = vmatpush1.msra.mxu0 0.0
        %1414 = vmatprep.subr.mxu0 0.0
        %1415 = vmatpush1.msra.mxu0 0.0
        %1416 = vmatprep.subr.mxu0 0.0
        %1417 = vmatpush1.msra.mxu0 0.0
        %1418 = vmatprep.subr.mxu0 0.0
        %1419 = vmatpush1.msra.mxu0 0.0
        %1420 = vmatprep.subr.mxu0 0.0
        %1421 = vmatpush1.msra.mxu0 0.0
        %1422 = vmatprep.subr.mxu0 0.0
        %1423 = vmatpush1.msra.mxu0 0.0
        %1424 = vmatprep.mubr.f32.mxu0 0.0
        %1425 = vmatmul.mubr.f32.gmra.mrb[0].mxu0 %v932
        %v1426 = vpop.f32.mrb[0].mxu0
        %v1427 = vadd.f32 %v902, %v1426
        %v1428 = vpop.f32.mrb[0].mxu0
        %v1429 = vadd.f32 %v906, %v1428
        %1430 = vdwg.mxu0
        %1431 = vmatprep.subr.mxu0 %v798
        %1432 = vmatpush1.msra.mxu0 %v797
        %1433 = vmatprep.subr.mxu0 %v814
        %1434 = vmatpush1.msra.mxu0 %v813
        %1435 = vmatprep.subr.mxu0 %v830
        %1436 = vmatpush1.msra.mxu0 %v829
        %1437 = vmatprep.subr.mxu0 %v846
        %1438 = vmatpush1.msra.mxu0 %v845
        %1439 = vmatprep.subr.mxu0 0.0
        %1440 = vmatpush1.msra.mxu0 0.0
        %1441 = vmatprep.subr.mxu0 0.0
        %1442 = vmatpush1.msra.mxu0 0.0
        %1443 = vmatprep.subr.mxu0 0.0
        %1444 = vmatpush1.msra.mxu0 0.0
        %1445 = vmatprep.subr.mxu0 0.0
        %1446 = vmatpush1.msra.mxu0 0.0
        %1447 = vmatprep.subr.mxu0 0.0
        %1448 = vmatpush1.msra.mxu0 0.0
        %1449 = vmatprep.subr.mxu0 0.0
        %1450 = vmatpush1.msra.mxu0 0.0
        %1451 = vmatprep.subr.mxu0 0.0
        %1452 = vmatpush1.msra.mxu0 0.0
        %1453 = vmatprep.subr.mxu0 0.0
        %1454 = vmatpush1.msra.mxu0 0.0
        %1455 = vmatprep.subr.mxu0 0.0
        %1456 = vmatpush1.msra.mxu0 0.0
        %1457 = vmatprep.subr.mxu0 0.0
        %1458 = vmatpush1.msra.mxu0 0.0
        %1459 = vmatprep.subr.mxu0 0.0
        %1460 = vmatpush1.msra.mxu0 0.0
        %1461 = vmatprep.subr.mxu0 0.0
        %1462 = vmatpush1.msra.mxu0 0.0
        %1463 = vmatprep.subr.mxu0 0.0
        %1464 = vmatpush1.msra.mxu0 0.0
        %1465 = vmatprep.subr.mxu0 0.0
        %1466 = vmatpush1.msra.mxu0 0.0
        %1467 = vmatprep.subr.mxu0 0.0
        %1468 = vmatpush1.msra.mxu0 0.0
        %1469 = vmatprep.subr.mxu0 0.0
        %1470 = vmatpush1.msra.mxu0 0.0
        %1471 = vmatprep.subr.mxu0 0.0
        %1472 = vmatpush1.msra.mxu0 0.0
        %1473 = vmatprep.subr.mxu0 0.0
        %1474 = vmatpush1.msra.mxu0 0.0
        %1475 = vmatprep.subr.mxu0 0.0
        %1476 = vmatpush1.msra.mxu0 0.0
        %1477 = vmatprep.subr.mxu0 0.0
        %1478 = vmatpush1.msra.mxu0 0.0
        %1479 = vmatprep.subr.mxu0 0.0
        %1480 = vmatpush1.msra.mxu0 0.0
        %1481 = vmatprep.subr.mxu0 0.0
        %1482 = vmatpush1.msra.mxu0 0.0
        %1483 = vmatprep.subr.mxu0 0.0
        %1484 = vmatpush1.msra.mxu0 0.0
        %1485 = vmatprep.subr.mxu0 0.0
        %1486 = vmatpush1.msra.mxu0 0.0
        %1487 = vmatprep.subr.mxu0 0.0
        %1488 = vmatpush1.msra.mxu0 0.0
        %1489 = vmatprep.subr.mxu0 0.0
        %1490 = vmatpush1.msra.mxu0 0.0
        %1491 = vmatprep.subr.mxu0 0.0
        %1492 = vmatpush1.msra.mxu0 0.0
        %1493 = vmatprep.subr.mxu0 0.0
        %1494 = vmatpush1.msra.mxu0 0.0
        %1495 = vmatprep.mubr.f32.mxu0 0.0
        %1496 = vmatmul.mubr.f32.gmra.mrb[0].mxu0 %v932
        %v1497 = vpop.f32.mrb[0].mxu0
        %v1498 = vadd.f32 %v910, %v1497
        %v1499 = vpop.f32.mrb[0].mxu0
        %v1500 = vadd.f32 %v914, %v1499
        %1501 = vdwg.mxu0
        %v1502 = vlaneseq
        %v1503 = vand.u32 %v1502, 127
        %v1504 = vadd.s32 %v1503, 128
        %v1505 = vadd.s32 %v1503, 256
        %v1506 = vadd.s32 %v1503, 384
        %v1507 = vmin.f32 %v1001, %v1003
        %v1508 = vmin.f32 %v1072, %v1074
        %v1509 = vmin.f32 %v1507, %v1508
        %1510 = vmin.xlane.f32.xlu0 %v1509
        %v1511 = vpop.xlane.xlu0 %1510
        %vm1512 = vcmp.eq.f32.partialorder %v1001, %v1511
        %vm1513 = vcmp.eq.f32.partialorder %v1003, %v1511
        %vm1514 = vcmp.eq.f32.partialorder %v1072, %v1511
        %vm1515 = vcmp.eq.f32.partialorder %v1074, %v1511
        %v1516 = vsel %vm1512, %v1503, 512
        %v1517 = vsel %vm1513, %v1504, 512
        %v1518 = vsel %vm1514, %v1505, 512
        %v1519 = vsel %vm1515, %v1506, 512
        %vm1520 = vcmp.lt.s32.totalorder %v1516, %v1517
        %v1521 = vsel %vm1520, %v1516, %v1517
        %vm1522 = vcmp.lt.s32.totalorder %v1518, %v1519
        %v1523 = vsel %vm1522, %v1518, %v1519
        %vm1524 = vcmp.lt.s32.totalorder %v1521, %v1523
        %v1525 = vsel %vm1524, %v1521, %v1523
        %v1526 = vand.u32 %v1525, 65535
        %v1527 = vshra.s32 %v1525, 16
        %v1528 = vcvt.s32.f32 %v1526
        %v1529 = vcvt.s32.f32 %v1527
        %1530 = vmin.xlane.f32.xlu0 %v1529
        %v1531 = vpop.xlane.xlu0 %1530
        %vm1532 = vcmp.eq.f32.partialorder %v1529, %v1531
        %v1533 = vsel %vm1532, %v1528, inf
        %1534 = vmin.xlane.f32.xlu0 %v1533
        %v1535 = vpop.xlane.xlu0 %1534
        %v1536 = vcvt.f32.s32 %v1535
        %v1537 = vcvt.f32.s32 %v1531
        %v1538 = vshll.u32 %v1537, 16
        %v1539 = vadd.s32 %v1538, %v1536
        %vm1540 = vcmp.eq.s32.totalorder %v1503, %v1539
        %vm1541 = vcmp.eq.s32.totalorder %v1504, %v1539
        %vm1542 = vcmp.eq.s32.totalorder %v1505, %v1539
        %vm1543 = vcmp.eq.s32.totalorder %v1506, %v1539
        %v1544 = vsel %vm1540, 1, 0
        %v1545 = vsel %vm1541, 1, 0
        %v1546 = vsel %vm1542, 1, 0
        %v1547 = vsel %vm1543, 1, 0
        %v1548 = vcvt.s32.f32 %v1544
        %v1549 = vcvt.s32.f32 %v1545
        %v1550 = vcvt.s32.f32 %v1546
        %v1551 = vcvt.s32.f32 %v1547
        %v1552 = vadd.f32 %v1548, 0.0
        %v1553 = vadd.f32 %v1549, 0.0
        %v1554 = vadd.f32 %v1550, 0.0
        %v1555 = vadd.f32 %v1551, 0.0
        %v1556 = vmin.f32 %v1143, %v1145
        %v1557 = vmin.f32 %v1214, %v1216
        %v1558 = vmin.f32 %v1556, %v1557
        %1559 = vmin.xlane.f32.xlu0 %v1558
        %v1560 = vpop.xlane.xlu0 %1559
        %vm1561 = vcmp.eq.f32.partialorder %v1143, %v1560
        %vm1562 = vcmp.eq.f32.partialorder %v1145, %v1560
        %vm1563 = vcmp.eq.f32.partialorder %v1214, %v1560
        %vm1564 = vcmp.eq.f32.partialorder %v1216, %v1560
        %v1565 = vsel %vm1561, %v1503, 512
        %v1566 = vsel %vm1562, %v1504, 512
        %v1567 = vsel %vm1563, %v1505, 512
        %v1568 = vsel %vm1564, %v1506, 512
        %vm1569 = vcmp.lt.s32.totalorder %v1565, %v1566
        %v1570 = vsel %vm1569, %v1565, %v1566
        %vm1571 = vcmp.lt.s32.totalorder %v1567, %v1568
        %v1572 = vsel %vm1571, %v1567, %v1568
        %vm1573 = vcmp.lt.s32.totalorder %v1570, %v1572
        %v1574 = vsel %vm1573, %v1570, %v1572
        %v1575 = vand.u32 %v1574, 65535
        %v1576 = vshra.s32 %v1574, 16
        %v1577 = vcvt.s32.f32 %v1575
        %v1578 = vcvt.s32.f32 %v1576
        %1579 = vmin.xlane.f32.xlu0 %v1578
        %v1580 = vpop.xlane.xlu0 %1579
        %vm1581 = vcmp.eq.f32.partialorder %v1578, %v1580
        %v1582 = vsel %vm1581, %v1577, inf
        %1583 = vmin.xlane.f32.xlu0 %v1582
        %v1584 = vpop.xlane.xlu0 %1583
        %v1585 = vcvt.f32.s32 %v1584
        %v1586 = vcvt.f32.s32 %v1580
        %v1587 = vshll.u32 %v1586, 16
        %v1588 = vadd.s32 %v1587, %v1585
        %vm1589 = vcmp.eq.s32.totalorder %v1503, %v1588
        %vm1590 = vcmp.eq.s32.totalorder %v1504, %v1588
        %vm1591 = vcmp.eq.s32.totalorder %v1505, %v1588
        %vm1592 = vcmp.eq.s32.totalorder %v1506, %v1588
        %v1593 = vsel %vm1589, 1, 0
        %v1594 = vsel %vm1590, 1, 0
        %v1595 = vsel %vm1591, 1, 0
        %v1596 = vsel %vm1592, 1, 0
        %v1597 = vcvt.s32.f32 %v1593
        %v1598 = vcvt.s32.f32 %v1594
        %v1599 = vcvt.s32.f32 %v1595
        %v1600 = vcvt.s32.f32 %v1596
        %v1601 = vadd.f32 %v1552, %v1597
        %v1602 = vadd.f32 %v1553, %v1598
        %v1603 = vadd.f32 %v1554, %v1599
        %v1604 = vadd.f32 %v1555, %v1600
        %v1605 = vmin.f32 %v1285, %v1287
        %v1606 = vmin.f32 %v1356, %v1358
        %v1607 = vmin.f32 %v1605, %v1606
        %1608 = vmin.xlane.f32.xlu0 %v1607
        %v1609 = vpop.xlane.xlu0 %1608
        %vm1610 = vcmp.eq.f32.partialorder %v1285, %v1609
        %vm1611 = vcmp.eq.f32.partialorder %v1287, %v1609
        %vm1612 = vcmp.eq.f32.partialorder %v1356, %v1609
        %vm1613 = vcmp.eq.f32.partialorder %v1358, %v1609
        %v1614 = vsel %vm1610, %v1503, 512
        %v1615 = vsel %vm1611, %v1504, 512
        %v1616 = vsel %vm1612, %v1505, 512
        %v1617 = vsel %vm1613, %v1506, 512
        %vm1618 = vcmp.lt.s32.totalorder %v1614, %v1615
        %v1619 = vsel %vm1618, %v1614, %v1615
        %vm1620 = vcmp.lt.s32.totalorder %v1616, %v1617
        %v1621 = vsel %vm1620, %v1616, %v1617
        %vm1622 = vcmp.lt.s32.totalorder %v1619, %v1621
        %v1623 = vsel %vm1622, %v1619, %v1621
        %v1624 = vand.u32 %v1623, 65535
        %v1625 = vshra.s32 %v1623, 16
        %v1626 = vcvt.s32.f32 %v1624
        %v1627 = vcvt.s32.f32 %v1625
        %1628 = vmin.xlane.f32.xlu0 %v1627
        %v1629 = vpop.xlane.xlu0 %1628
        %vm1630 = vcmp.eq.f32.partialorder %v1627, %v1629
        %v1631 = vsel %vm1630, %v1626, inf
        %1632 = vmin.xlane.f32.xlu0 %v1631
        %v1633 = vpop.xlane.xlu0 %1632
        %v1634 = vcvt.f32.s32 %v1633
        %v1635 = vcvt.f32.s32 %v1629
        %v1636 = vshll.u32 %v1635, 16
        %v1637 = vadd.s32 %v1636, %v1634
        %vm1638 = vcmp.eq.s32.totalorder %v1503, %v1637
        %vm1639 = vcmp.eq.s32.totalorder %v1504, %v1637
        %vm1640 = vcmp.eq.s32.totalorder %v1505, %v1637
        %vm1641 = vcmp.eq.s32.totalorder %v1506, %v1637
        %v1642 = vsel %vm1638, 1, 0
        %v1643 = vsel %vm1639, 1, 0
        %v1644 = vsel %vm1640, 1, 0
        %v1645 = vsel %vm1641, 1, 0
        %v1646 = vcvt.s32.f32 %v1642
        %v1647 = vcvt.s32.f32 %v1643
        %v1648 = vcvt.s32.f32 %v1644
        %v1649 = vcvt.s32.f32 %v1645
        %v1650 = vadd.f32 %v1601, %v1646
        %v1651 = vadd.f32 %v1602, %v1647
        %v1652 = vadd.f32 %v1603, %v1648
        %v1653 = vadd.f32 %v1604, %v1649
        %v1654 = vmin.f32 %v1427, %v1429
        %v1655 = vmin.f32 %v1498, %v1500
        %v1656 = vmin.f32 %v1654, %v1655
        %1657 = vmin.xlane.f32.xlu0 %v1656
        %v1658 = vpop.xlane.xlu0 %1657
        %vm1659 = vcmp.eq.f32.partialorder %v1427, %v1658
        %vm1660 = vcmp.eq.f32.partialorder %v1429, %v1658
        %vm1661 = vcmp.eq.f32.partialorder %v1498, %v1658
        %vm1662 = vcmp.eq.f32.partialorder %v1500, %v1658
        %v1663 = vsel %vm1659, %v1503, 512
        %v1664 = vsel %vm1660, %v1504, 512
        %v1665 = vsel %vm1661, %v1505, 512
        %v1666 = vsel %vm1662, %v1506, 512
        %vm1667 = vcmp.lt.s32.totalorder %v1663, %v1664
        %v1668 = vsel %vm1667, %v1663, %v1664
        %vm1669 = vcmp.lt.s32.totalorder %v1665, %v1666
        %v1670 = vsel %vm1669, %v1665, %v1666
        %vm1671 = vcmp.lt.s32.totalorder %v1668, %v1670
        %v1672 = vsel %vm1671, %v1668, %v1670
        %v1673 = vand.u32 %v1672, 65535
        %v1674 = vshra.s32 %v1672, 16
        %v1675 = vcvt.s32.f32 %v1673
        %v1676 = vcvt.s32.f32 %v1674
        %1677 = vmin.xlane.f32.xlu0 %v1676
        %v1678 = vpop.xlane.xlu0 %1677
        %vm1679 = vcmp.eq.f32.partialorder %v1676, %v1678
        %v1680 = vsel %vm1679, %v1675, inf
        %1681 = vmin.xlane.f32.xlu0 %v1680
        %v1682 = vpop.xlane.xlu0 %1681
        %v1683 = vcvt.f32.s32 %v1682
        %v1684 = vcvt.f32.s32 %v1678
        %v1685 = vshll.u32 %v1684, 16
        %v1686 = vadd.s32 %v1685, %v1683
        %vm1687 = vcmp.eq.s32.totalorder %v1503, %v1686
        %vm1688 = vcmp.eq.s32.totalorder %v1504, %v1686
        %vm1689 = vcmp.eq.s32.totalorder %v1505, %v1686
        %vm1690 = vcmp.eq.s32.totalorder %v1506, %v1686
        %v1691 = vsel %vm1687, 1, 0
        %v1692 = vsel %vm1688, 1, 0
        %v1693 = vsel %vm1689, 1, 0
        %v1694 = vsel %vm1690, 1, 0
        %v1695 = vcvt.s32.f32 %v1691
        %v1696 = vcvt.s32.f32 %v1692
        %v1697 = vcvt.s32.f32 %v1693
        %v1698 = vcvt.s32.f32 %v1694
        %v1699 = vadd.f32 %v1650, %v1695
        %v1700 = vadd.f32 %v1651, %v1696
        %v1701 = vadd.f32 %v1652, %v1697
        %v1702 = vadd.f32 %v1653, %v1698
        %v1703 = vld [vmem:[%s9] sm:$0xff]
        %v1704 = vld [vmem:[%s9 + $0x8] sm:$0xff]
        %v1705 = vld [vmem:[%s9 + $0x10] sm:$0xff]
        %v1706 = vld [vmem:[%s9 + $0x18] sm:$0xff]
        %v1707 = vld [vmem:[%s9 + $0x20] sm:$0xff]
        %v1708 = vld [vmem:[%s9 + $0x28] sm:$0xff]
        %v1709 = vld [vmem:[%s9 + $0x30] sm:$0xff]
        %v1710 = vld [vmem:[%s9 + $0x38] sm:$0xff]
        %v1711 = vld [vmem:[%s9 + $0x40] sm:$0xff]
        %v1712 = vld [vmem:[%s9 + $0x48] sm:$0xff]
        %v1713 = vld [vmem:[%s9 + $0x50] sm:$0xff]
        %v1714 = vld [vmem:[%s9 + $0x58] sm:$0xff]
        %v1715 = vld [vmem:[%s9 + $0x60] sm:$0xff]
        %v1716 = vld [vmem:[%s9 + $0x68] sm:$0xff]
        %v1717 = vld [vmem:[%s9 + $0x70] sm:$0xff]
        %v1718 = vld [vmem:[%s9 + $0x78] sm:$0xff]
        %v1719 = vld [vmem:[%s9 + $0x80] sm:$0xff]
        %v1720 = vld [vmem:[%s9 + $0x88] sm:$0xff]
        %v1721 = vld [vmem:[%s9 + $0x90] sm:$0xff]
        %v1722 = vld [vmem:[%s9 + $0x98] sm:$0xff]
        %v1723 = vld [vmem:[%s9 + $0xa0] sm:$0xff]
        %v1724 = vld [vmem:[%s9 + $0xa8] sm:$0xff]
        %v1725 = vld [vmem:[%s9 + $0xb0] sm:$0xff]
        %v1726 = vld [vmem:[%s9 + $0xb8] sm:$0xff]
        %v1727 = vld [vmem:[%s9 + $0xc0] sm:$0xff]
        %v1728 = vld [vmem:[%s9 + $0xc8] sm:$0xff]
        %v1729 = vld [vmem:[%s9 + $0xd0] sm:$0xff]
        %v1730 = vld [vmem:[%s9 + $0xd8] sm:$0xff]
        %v1731 = vld [vmem:[%s9 + $0xe0] sm:$0xff]
        %v1732 = vld [vmem:[%s9 + $0xe8] sm:$0xff]
        %v1733 = vld [vmem:[%s9 + $0xf0] sm:$0xff]
        %v1734 = vld [vmem:[%s9 + $0xf8] sm:$0xff]
        %v1735 = vld [vmem:[%s9 + $0x100] sm:$0xff]
        %v1736 = vld [vmem:[%s9 + $0x108] sm:$0xff]
        %v1737 = vld [vmem:[%s9 + $0x110] sm:$0xff]
        %v1738 = vld [vmem:[%s9 + $0x118] sm:$0xff]
        %v1739 = vld [vmem:[%s9 + $0x120] sm:$0xff]
        %v1740 = vld [vmem:[%s9 + $0x128] sm:$0xff]
        %v1741 = vld [vmem:[%s9 + $0x130] sm:$0xff]
        %v1742 = vld [vmem:[%s9 + $0x138] sm:$0xff]
        %v1743 = vld [vmem:[%s9 + $0x140] sm:$0xff]
        %v1744 = vld [vmem:[%s9 + $0x148] sm:$0xff]
        %v1745 = vld [vmem:[%s9 + $0x150] sm:$0xff]
        %v1746 = vld [vmem:[%s9 + $0x158] sm:$0xff]
        %v1747 = vld [vmem:[%s9 + $0x160] sm:$0xff]
        %v1748 = vld [vmem:[%s9 + $0x168] sm:$0xff]
        %v1749 = vld [vmem:[%s9 + $0x170] sm:$0xff]
        %v1750 = vld [vmem:[%s9 + $0x178] sm:$0xff]
        %v1751 = vld [vmem:[%s9 + $0x180] sm:$0xff]
        %v1752 = vld [vmem:[%s9 + $0x188] sm:$0xff]
        %v1753 = vld [vmem:[%s9 + $0x190] sm:$0xff]
        %v1754 = vld [vmem:[%s9 + $0x198] sm:$0xff]
        %v1755 = vld [vmem:[%s9 + $0x1a0] sm:$0xff]
        %v1756 = vld [vmem:[%s9 + $0x1a8] sm:$0xff]
        %v1757 = vld [vmem:[%s9 + $0x1b0] sm:$0xff]
        %v1758 = vld [vmem:[%s9 + $0x1b8] sm:$0xff]
        %v1759 = vld [vmem:[%s9 + $0x1c0] sm:$0xff]
        %v1760 = vld [vmem:[%s9 + $0x1c8] sm:$0xff]
        %v1761 = vld [vmem:[%s9 + $0x1d0] sm:$0xff]
        %v1762 = vld [vmem:[%s9 + $0x1d8] sm:$0xff]
        %v1763 = vld [vmem:[%s9 + $0x1e0] sm:$0xff]
        %v1764 = vld [vmem:[%s9 + $0x1e8] sm:$0xff]
        %v1765 = vld [vmem:[%s9 + $0x1f0] sm:$0xff]
        %v1766 = vld [vmem:[%s9 + $0x1f8] sm:$0xff]
        %v1767 = vld [vmem:[%s9 + $0x200] sm:$0xff]
        %v1768 = vld [vmem:[%s9 + $0x208] sm:$0xff]
        %v1769 = vld [vmem:[%s9 + $0x210] sm:$0xff]
        %v1770 = vld [vmem:[%s9 + $0x218] sm:$0xff]
        %v1771 = vld [vmem:[%s9 + $0x220] sm:$0xff]
        %v1772 = vld [vmem:[%s9 + $0x228] sm:$0xff]
        %v1773 = vld [vmem:[%s9 + $0x230] sm:$0xff]
        %v1774 = vld [vmem:[%s9 + $0x238] sm:$0xff]
        %v1775 = vld [vmem:[%s9 + $0x240] sm:$0xff]
        %v1776 = vld [vmem:[%s9 + $0x248] sm:$0xff]
        %v1777 = vld [vmem:[%s9 + $0x250] sm:$0xff]
        %v1778 = vld [vmem:[%s9 + $0x258] sm:$0xff]
        %v1779 = vld [vmem:[%s9 + $0x260] sm:$0xff]
        %v1780 = vld [vmem:[%s9 + $0x268] sm:$0xff]
        %v1781 = vld [vmem:[%s9 + $0x270] sm:$0xff]
        %v1782 = vld [vmem:[%s9 + $0x278] sm:$0xff]
        %v1783 = vld [vmem:[%s9 + $0x280] sm:$0xff]
        %v1784 = vld [vmem:[%s9 + $0x288] sm:$0xff]
        %v1785 = vld [vmem:[%s9 + $0x290] sm:$0xff]
        %v1786 = vld [vmem:[%s9 + $0x298] sm:$0xff]
        %v1787 = vld [vmem:[%s9 + $0x2a0] sm:$0xff]
        %v1788 = vld [vmem:[%s9 + $0x2a8] sm:$0xff]
        %v1789 = vld [vmem:[%s9 + $0x2b0] sm:$0xff]
        %v1790 = vld [vmem:[%s9 + $0x2b8] sm:$0xff]
        %v1791 = vld [vmem:[%s9 + $0x2c0] sm:$0xff]
        %v1792 = vld [vmem:[%s9 + $0x2c8] sm:$0xff]
        %v1793 = vld [vmem:[%s9 + $0x2d0] sm:$0xff]
        %v1794 = vld [vmem:[%s9 + $0x2d8] sm:$0xff]
        %v1795 = vld [vmem:[%s9 + $0x2e0] sm:$0xff]
        %v1796 = vld [vmem:[%s9 + $0x2e8] sm:$0xff]
        %v1797 = vld [vmem:[%s9 + $0x2f0] sm:$0xff]
        %v1798 = vld [vmem:[%s9 + $0x2f8] sm:$0xff]
        %v1799 = vld [vmem:[%s9 + $0x300] sm:$0xff]
        %v1800 = vld [vmem:[%s9 + $0x308] sm:$0xff]
        %v1801 = vld [vmem:[%s9 + $0x310] sm:$0xff]
        %v1802 = vld [vmem:[%s9 + $0x318] sm:$0xff]
        %v1803 = vld [vmem:[%s9 + $0x320] sm:$0xff]
        %v1804 = vld [vmem:[%s9 + $0x328] sm:$0xff]
        %v1805 = vld [vmem:[%s9 + $0x330] sm:$0xff]
        %v1806 = vld [vmem:[%s9 + $0x338] sm:$0xff]
        %v1807 = vld [vmem:[%s9 + $0x340] sm:$0xff]
        %v1808 = vld [vmem:[%s9 + $0x348] sm:$0xff]
        %v1809 = vld [vmem:[%s9 + $0x350] sm:$0xff]
        %v1810 = vld [vmem:[%s9 + $0x358] sm:$0xff]
        %v1811 = vld [vmem:[%s9 + $0x360] sm:$0xff]
        %v1812 = vld [vmem:[%s9 + $0x368] sm:$0xff]
        %v1813 = vld [vmem:[%s9 + $0x370] sm:$0xff]
        %v1814 = vld [vmem:[%s9 + $0x378] sm:$0xff]
        %v1815 = vld [vmem:[%s9 + $0x380] sm:$0xff]
        %v1816 = vld [vmem:[%s9 + $0x388] sm:$0xff]
        %v1817 = vld [vmem:[%s9 + $0x390] sm:$0xff]
        %v1818 = vld [vmem:[%s9 + $0x398] sm:$0xff]
        %v1819 = vld [vmem:[%s9 + $0x3a0] sm:$0xff]
        %v1820 = vld [vmem:[%s9 + $0x3a8] sm:$0xff]
        %v1821 = vld [vmem:[%s9 + $0x3b0] sm:$0xff]
        %v1822 = vld [vmem:[%s9 + $0x3b8] sm:$0xff]
        %v1823 = vld [vmem:[%s9 + $0x3c0] sm:$0xff]
        %v1824 = vld [vmem:[%s9 + $0x3c8] sm:$0xff]
        %v1825 = vld [vmem:[%s9 + $0x3d0] sm:$0xff]
        %v1826 = vld [vmem:[%s9 + $0x3d8] sm:$0xff]
        %v1827 = vld [vmem:[%s9 + $0x3e0] sm:$0xff]
        %v1828 = vld [vmem:[%s9 + $0x3e8] sm:$0xff]
        %v1829 = vld [vmem:[%s9 + $0x3f0] sm:$0xff]
        %v1830 = vld [vmem:[%s9 + $0x3f8] sm:$0xff]
        %v1831 = vld [vmem:[%s9 + $0x400] sm:$0xff]
        %v1832 = vld [vmem:[%s9 + $0x408] sm:$0xff]
        %v1833 = vld [vmem:[%s9 + $0x410] sm:$0xff]
        %v1834 = vld [vmem:[%s9 + $0x418] sm:$0xff]
        %v1835 = vld [vmem:[%s9 + $0x420] sm:$0xff]
        %v1836 = vld [vmem:[%s9 + $0x428] sm:$0xff]
        %v1837 = vld [vmem:[%s9 + $0x430] sm:$0xff]
        %v1838 = vld [vmem:[%s9 + $0x438] sm:$0xff]
        %v1839 = vld [vmem:[%s9 + $0x440] sm:$0xff]
        %v1840 = vld [vmem:[%s9 + $0x448] sm:$0xff]
        %v1841 = vld [vmem:[%s9 + $0x450] sm:$0xff]
        %v1842 = vld [vmem:[%s9 + $0x458] sm:$0xff]
        %v1843 = vld [vmem:[%s9 + $0x460] sm:$0xff]
        %v1844 = vld [vmem:[%s9 + $0x468] sm:$0xff]
        %v1845 = vld [vmem:[%s9 + $0x470] sm:$0xff]
        %v1846 = vld [vmem:[%s9 + $0x478] sm:$0xff]
        %v1847 = vld [vmem:[%s9 + $0x480] sm:$0xff]
        %v1848 = vld [vmem:[%s9 + $0x488] sm:$0xff]
        %v1849 = vld [vmem:[%s9 + $0x490] sm:$0xff]
        %v1850 = vld [vmem:[%s9 + $0x498] sm:$0xff]
        %v1851 = vld [vmem:[%s9 + $0x4a0] sm:$0xff]
        %v1852 = vld [vmem:[%s9 + $0x4a8] sm:$0xff]
        %v1853 = vld [vmem:[%s9 + $0x4b0] sm:$0xff]
        %v1854 = vld [vmem:[%s9 + $0x4b8] sm:$0xff]
        %v1855 = vld [vmem:[%s9 + $0x4c0] sm:$0xff]
        %v1856 = vld [vmem:[%s9 + $0x4c8] sm:$0xff]
        %v1857 = vld [vmem:[%s9 + $0x4d0] sm:$0xff]
        %v1858 = vld [vmem:[%s9 + $0x4d8] sm:$0xff]
        %v1859 = vld [vmem:[%s9 + $0x4e0] sm:$0xff]
        %v1860 = vld [vmem:[%s9 + $0x4e8] sm:$0xff]
        %v1861 = vld [vmem:[%s9 + $0x4f0] sm:$0xff]
        %v1862 = vld [vmem:[%s9 + $0x4f8] sm:$0xff]
        %v1863 = vld [vmem:[%s9 + $0x500] sm:$0xff]
        %v1864 = vld [vmem:[%s9 + $0x508] sm:$0xff]
        %v1865 = vld [vmem:[%s9 + $0x510] sm:$0xff]
        %v1866 = vld [vmem:[%s9 + $0x518] sm:$0xff]
        %v1867 = vld [vmem:[%s9 + $0x520] sm:$0xff]
        %v1868 = vld [vmem:[%s9 + $0x528] sm:$0xff]
        %v1869 = vld [vmem:[%s9 + $0x530] sm:$0xff]
        %v1870 = vld [vmem:[%s9 + $0x538] sm:$0xff]
        %v1871 = vld [vmem:[%s9 + $0x540] sm:$0xff]
        %v1872 = vld [vmem:[%s9 + $0x548] sm:$0xff]
        %v1873 = vld [vmem:[%s9 + $0x550] sm:$0xff]
        %v1874 = vld [vmem:[%s9 + $0x558] sm:$0xff]
        %v1875 = vld [vmem:[%s9 + $0x560] sm:$0xff]
        %v1876 = vld [vmem:[%s9 + $0x568] sm:$0xff]
        %v1877 = vld [vmem:[%s9 + $0x570] sm:$0xff]
        %v1878 = vld [vmem:[%s9 + $0x578] sm:$0xff]
        %v1879 = vld [vmem:[%s9 + $0x580] sm:$0xff]
        %v1880 = vld [vmem:[%s9 + $0x588] sm:$0xff]
        %v1881 = vld [vmem:[%s9 + $0x590] sm:$0xff]
        %v1882 = vld [vmem:[%s9 + $0x598] sm:$0xff]
        %v1883 = vld [vmem:[%s9 + $0x5a0] sm:$0xff]
        %v1884 = vld [vmem:[%s9 + $0x5a8] sm:$0xff]
        %v1885 = vld [vmem:[%s9 + $0x5b0] sm:$0xff]
        %v1886 = vld [vmem:[%s9 + $0x5b8] sm:$0xff]
        %v1887 = vld [vmem:[%s9 + $0x5c0] sm:$0xff]
        %v1888 = vld [vmem:[%s9 + $0x5c8] sm:$0xff]
        %v1889 = vld [vmem:[%s9 + $0x5d0] sm:$0xff]
        %v1890 = vld [vmem:[%s9 + $0x5d8] sm:$0xff]
        %v1891 = vld [vmem:[%s9 + $0x5e0] sm:$0xff]
        %v1892 = vld [vmem:[%s9 + $0x5e8] sm:$0xff]
        %v1893 = vld [vmem:[%s9 + $0x5f0] sm:$0xff]
        %v1894 = vld [vmem:[%s9 + $0x5f8] sm:$0xff]
        %v1895 = vld [vmem:[%s9 + $0x600] sm:$0xff]
        %v1896 = vld [vmem:[%s9 + $0x608] sm:$0xff]
        %v1897 = vld [vmem:[%s9 + $0x610] sm:$0xff]
        %v1898 = vld [vmem:[%s9 + $0x618] sm:$0xff]
        %v1899 = vld [vmem:[%s9 + $0x620] sm:$0xff]
        %v1900 = vld [vmem:[%s9 + $0x628] sm:$0xff]
        %v1901 = vld [vmem:[%s9 + $0x630] sm:$0xff]
        %v1902 = vld [vmem:[%s9 + $0x638] sm:$0xff]
        %v1903 = vld [vmem:[%s9 + $0x640] sm:$0xff]
        %v1904 = vld [vmem:[%s9 + $0x648] sm:$0xff]
        %v1905 = vld [vmem:[%s9 + $0x650] sm:$0xff]
        %v1906 = vld [vmem:[%s9 + $0x658] sm:$0xff]
        %v1907 = vld [vmem:[%s9 + $0x660] sm:$0xff]
        %v1908 = vld [vmem:[%s9 + $0x668] sm:$0xff]
        %v1909 = vld [vmem:[%s9 + $0x670] sm:$0xff]
        %v1910 = vld [vmem:[%s9 + $0x678] sm:$0xff]
        %v1911 = vld [vmem:[%s9 + $0x680] sm:$0xff]
        %v1912 = vld [vmem:[%s9 + $0x688] sm:$0xff]
        %v1913 = vld [vmem:[%s9 + $0x690] sm:$0xff]
        %v1914 = vld [vmem:[%s9 + $0x698] sm:$0xff]
        %v1915 = vld [vmem:[%s9 + $0x6a0] sm:$0xff]
        %v1916 = vld [vmem:[%s9 + $0x6a8] sm:$0xff]
        %v1917 = vld [vmem:[%s9 + $0x6b0] sm:$0xff]
        %v1918 = vld [vmem:[%s9 + $0x6b8] sm:$0xff]
        %v1919 = vld [vmem:[%s9 + $0x6c0] sm:$0xff]
        %v1920 = vld [vmem:[%s9 + $0x6c8] sm:$0xff]
        %v1921 = vld [vmem:[%s9 + $0x6d0] sm:$0xff]
        %v1922 = vld [vmem:[%s9 + $0x6d8] sm:$0xff]
        %v1923 = vld [vmem:[%s9 + $0x6e0] sm:$0xff]
        %v1924 = vld [vmem:[%s9 + $0x6e8] sm:$0xff]
        %v1925 = vld [vmem:[%s9 + $0x6f0] sm:$0xff]
        %v1926 = vld [vmem:[%s9 + $0x6f8] sm:$0xff]
        %v1927 = vld [vmem:[%s9 + $0x700] sm:$0xff]
        %v1928 = vld [vmem:[%s9 + $0x708] sm:$0xff]
        %v1929 = vld [vmem:[%s9 + $0x710] sm:$0xff]
        %v1930 = vld [vmem:[%s9 + $0x718] sm:$0xff]
        %v1931 = vld [vmem:[%s9 + $0x720] sm:$0xff]
        %v1932 = vld [vmem:[%s9 + $0x728] sm:$0xff]
        %v1933 = vld [vmem:[%s9 + $0x730] sm:$0xff]
        %v1934 = vld [vmem:[%s9 + $0x738] sm:$0xff]
        %v1935 = vld [vmem:[%s9 + $0x740] sm:$0xff]
        %v1936 = vld [vmem:[%s9 + $0x748] sm:$0xff]
        %v1937 = vld [vmem:[%s9 + $0x750] sm:$0xff]
        %v1938 = vld [vmem:[%s9 + $0x758] sm:$0xff]
        %v1939 = vld [vmem:[%s9 + $0x760] sm:$0xff]
        %v1940 = vld [vmem:[%s9 + $0x768] sm:$0xff]
        %v1941 = vld [vmem:[%s9 + $0x770] sm:$0xff]
        %v1942 = vld [vmem:[%s9 + $0x778] sm:$0xff]
        %v1943 = vld [vmem:[%s9 + $0x780] sm:$0xff]
        %v1944 = vld [vmem:[%s9 + $0x788] sm:$0xff]
        %v1945 = vld [vmem:[%s9 + $0x790] sm:$0xff]
        %v1946 = vld [vmem:[%s9 + $0x798] sm:$0xff]
        %v1947 = vld [vmem:[%s9 + $0x7a0] sm:$0xff]
        %v1948 = vld [vmem:[%s9 + $0x7a8] sm:$0xff]
        %v1949 = vld [vmem:[%s9 + $0x7b0] sm:$0xff]
        %v1950 = vld [vmem:[%s9 + $0x7b8] sm:$0xff]
        %v1951 = vld [vmem:[%s9 + $0x7c0] sm:$0xff]
        %v1952 = vld [vmem:[%s9 + $0x7c8] sm:$0xff]
        %v1953 = vld [vmem:[%s9 + $0x7d0] sm:$0xff]
        %v1954 = vld [vmem:[%s9 + $0x7d8] sm:$0xff]
        %v1955 = vld [vmem:[%s9 + $0x7e0] sm:$0xff]
        %v1956 = vld [vmem:[%s9 + $0x7e8] sm:$0xff]
        %v1957 = vld [vmem:[%s9 + $0x7f0] sm:$0xff]
        %v1958 = vld [vmem:[%s9 + $0x7f8] sm:$0xff]
        %1959 = vmatprep.subr.mxu0 0.0
        %1960 = vmatpush1.msra.mxu0 %v1703
        %1961 = vmatprep.subr.mxu0 0.0
        %1962 = vmatpush1.msra.mxu0 %v1704
        %1963 = vmatprep.subr.mxu0 0.0
        %1964 = vmatpush1.msra.mxu0 %v1705
        %1965 = vmatprep.subr.mxu0 0.0
        %1966 = vmatpush1.msra.mxu0 %v1706
        %1967 = vmatprep.subr.mxu0 0.0
        %1968 = vmatpush1.msra.mxu0 %v1707
        %1969 = vmatprep.subr.mxu0 0.0
        %1970 = vmatpush1.msra.mxu0 %v1708
        %1971 = vmatprep.subr.mxu0 0.0
        %1972 = vmatpush1.msra.mxu0 %v1709
        %1973 = vmatprep.subr.mxu0 0.0
        %1974 = vmatpush1.msra.mxu0 %v1710
        %1975 = vmatprep.subr.mxu0 0.0
        %1976 = vmatpush1.msra.mxu0 %v1711
        %1977 = vmatprep.subr.mxu0 0.0
        %1978 = vmatpush1.msra.mxu0 %v1712
        %1979 = vmatprep.subr.mxu0 0.0
        %1980 = vmatpush1.msra.mxu0 %v1713
        %1981 = vmatprep.subr.mxu0 0.0
        %1982 = vmatpush1.msra.mxu0 %v1714
        %1983 = vmatprep.subr.mxu0 0.0
        %1984 = vmatpush1.msra.mxu0 %v1715
        %1985 = vmatprep.subr.mxu0 0.0
        %1986 = vmatpush1.msra.mxu0 %v1716
        %1987 = vmatprep.subr.mxu0 0.0
        %1988 = vmatpush1.msra.mxu0 %v1717
        %1989 = vmatprep.subr.mxu0 0.0
        %1990 = vmatpush1.msra.mxu0 %v1718
        %1991 = vmatprep.subr.mxu0 0.0
        %1992 = vmatpush1.msra.mxu0 %v1719
        %1993 = vmatprep.subr.mxu0 0.0
        %1994 = vmatpush1.msra.mxu0 %v1720
        %1995 = vmatprep.subr.mxu0 0.0
        %1996 = vmatpush1.msra.mxu0 %v1721
        %1997 = vmatprep.subr.mxu0 0.0
        %1998 = vmatpush1.msra.mxu0 %v1722
        %1999 = vmatprep.subr.mxu0 0.0
        %2000 = vmatpush1.msra.mxu0 %v1723
        %2001 = vmatprep.subr.mxu0 0.0
        %2002 = vmatpush1.msra.mxu0 %v1724
        %2003 = vmatprep.subr.mxu0 0.0
        %2004 = vmatpush1.msra.mxu0 %v1725
        %2005 = vmatprep.subr.mxu0 0.0
        %2006 = vmatpush1.msra.mxu0 %v1726
        %2007 = vmatprep.subr.mxu0 0.0
        %2008 = vmatpush1.msra.mxu0 %v1727
        %2009 = vmatprep.subr.mxu0 0.0
        %2010 = vmatpush1.msra.mxu0 %v1728
        %2011 = vmatprep.subr.mxu0 0.0
        %2012 = vmatpush1.msra.mxu0 %v1729
        %2013 = vmatprep.subr.mxu0 0.0
        %2014 = vmatpush1.msra.mxu0 %v1730
        %2015 = vmatprep.subr.mxu0 0.0
        %2016 = vmatpush1.msra.mxu0 %v1731
        %2017 = vmatprep.subr.mxu0 0.0
        %2018 = vmatpush1.msra.mxu0 %v1732
        %2019 = vmatprep.subr.mxu0 0.0
        %2020 = vmatpush1.msra.mxu0 %v1733
        %2021 = vmatprep.subr.mxu0 0.0
        %2022 = vmatpush1.msra.mxu0 %v1734
        %2023 = vmatprep.mubr.f32.mxu0 %v1549
        %2024 = vmatmul.mubr.f32.gmra.mrb[0].mxu0 %v1548
        %v2025 = vpop.f32.mrb[0].mxu0
        %v2026 = vadd.f32 0.0, %v2025
        %v2027 = vpop.f32.mrb[0].mxu0
        %2028 = vdwg.mxu0
        %2029 = vmatprep.subr.mxu0 0.0
        %2030 = vmatpush1.msra.mxu0 %v1735
        %2031 = vmatprep.subr.mxu0 0.0
        %2032 = vmatpush1.msra.mxu0 %v1736
        %2033 = vmatprep.subr.mxu0 0.0
        %2034 = vmatpush1.msra.mxu0 %v1737
        %2035 = vmatprep.subr.mxu0 0.0
        %2036 = vmatpush1.msra.mxu0 %v1738
        %2037 = vmatprep.subr.mxu0 0.0
        %2038 = vmatpush1.msra.mxu0 %v1739
        %2039 = vmatprep.subr.mxu0 0.0
        %2040 = vmatpush1.msra.mxu0 %v1740
        %2041 = vmatprep.subr.mxu0 0.0
        %2042 = vmatpush1.msra.mxu0 %v1741
        %2043 = vmatprep.subr.mxu0 0.0
        %2044 = vmatpush1.msra.mxu0 %v1742
        %2045 = vmatprep.subr.mxu0 0.0
        %2046 = vmatpush1.msra.mxu0 %v1743
        %2047 = vmatprep.subr.mxu0 0.0
        %2048 = vmatpush1.msra.mxu0 %v1744
        %2049 = vmatprep.subr.mxu0 0.0
        %2050 = vmatpush1.msra.mxu0 %v1745
        %2051 = vmatprep.subr.mxu0 0.0
        %2052 = vmatpush1.msra.mxu0 %v1746
        %2053 = vmatprep.subr.mxu0 0.0
        %2054 = vmatpush1.msra.mxu0 %v1747
        %2055 = vmatprep.subr.mxu0 0.0
        %2056 = vmatpush1.msra.mxu0 %v1748
        %2057 = vmatprep.subr.mxu0 0.0
        %2058 = vmatpush1.msra.mxu0 %v1749
        %2059 = vmatprep.subr.mxu0 0.0
        %2060 = vmatpush1.msra.mxu0 %v1750
        %2061 = vmatprep.subr.mxu0 0.0
        %2062 = vmatpush1.msra.mxu0 %v1751
        %2063 = vmatprep.subr.mxu0 0.0
        %2064 = vmatpush1.msra.mxu0 %v1752
        %2065 = vmatprep.subr.mxu0 0.0
        %2066 = vmatpush1.msra.mxu0 %v1753
        %2067 = vmatprep.subr.mxu0 0.0
        %2068 = vmatpush1.msra.mxu0 %v1754
        %2069 = vmatprep.subr.mxu0 0.0
        %2070 = vmatpush1.msra.mxu0 %v1755
        %2071 = vmatprep.subr.mxu0 0.0
        %2072 = vmatpush1.msra.mxu0 %v1756
        %2073 = vmatprep.subr.mxu0 0.0
        %2074 = vmatpush1.msra.mxu0 %v1757
        %2075 = vmatprep.subr.mxu0 0.0
        %2076 = vmatpush1.msra.mxu0 %v1758
        %2077 = vmatprep.subr.mxu0 0.0
        %2078 = vmatpush1.msra.mxu0 %v1759
        %2079 = vmatprep.subr.mxu0 0.0
        %2080 = vmatpush1.msra.mxu0 %v1760
        %2081 = vmatprep.subr.mxu0 0.0
        %2082 = vmatpush1.msra.mxu0 %v1761
        %2083 = vmatprep.subr.mxu0 0.0
        %2084 = vmatpush1.msra.mxu0 %v1762
        %2085 = vmatprep.subr.mxu0 0.0
        %2086 = vmatpush1.msra.mxu0 %v1763
        %2087 = vmatprep.subr.mxu0 0.0
        %2088 = vmatpush1.msra.mxu0 %v1764
        %2089 = vmatprep.subr.mxu0 0.0
        %2090 = vmatpush1.msra.mxu0 %v1765
        %2091 = vmatprep.subr.mxu0 0.0
        %2092 = vmatpush1.msra.mxu0 %v1766
        %2093 = vmatprep.mubr.f32.mxu0 %v1551
        %2094 = vmatmul.mubr.f32.gmra.mrb[0].mxu0 %v1550
        %v2095 = vpop.f32.mrb[0].mxu0
        %v2096 = vadd.f32 %v2026, %v2095
        %v2097 = vpop.f32.mrb[0].mxu0
        %2098 = vdwg.mxu0
        %2099 = vmatprep.subr.mxu0 0.0
        %2100 = vmatpush1.msra.mxu0 %v1767
        %2101 = vmatprep.subr.mxu0 0.0
        %2102 = vmatpush1.msra.mxu0 %v1768
        %2103 = vmatprep.subr.mxu0 0.0
        %2104 = vmatpush1.msra.mxu0 %v1769
        %2105 = vmatprep.subr.mxu0 0.0
        %2106 = vmatpush1.msra.mxu0 %v1770
        %2107 = vmatprep.subr.mxu0 0.0
        %2108 = vmatpush1.msra.mxu0 %v1771
        %2109 = vmatprep.subr.mxu0 0.0
        %2110 = vmatpush1.msra.mxu0 %v1772
        %2111 = vmatprep.subr.mxu0 0.0
        %2112 = vmatpush1.msra.mxu0 %v1773
        %2113 = vmatprep.subr.mxu0 0.0
        %2114 = vmatpush1.msra.mxu0 %v1774
        %2115 = vmatprep.subr.mxu0 0.0
        %2116 = vmatpush1.msra.mxu0 %v1775
        %2117 = vmatprep.subr.mxu0 0.0
        %2118 = vmatpush1.msra.mxu0 %v1776
        %2119 = vmatprep.subr.mxu0 0.0
        %2120 = vmatpush1.msra.mxu0 %v1777
        %2121 = vmatprep.subr.mxu0 0.0
        %2122 = vmatpush1.msra.mxu0 %v1778
        %2123 = vmatprep.subr.mxu0 0.0
        %2124 = vmatpush1.msra.mxu0 %v1779
        %2125 = vmatprep.subr.mxu0 0.0
        %2126 = vmatpush1.msra.mxu0 %v1780
        %2127 = vmatprep.subr.mxu0 0.0
        %2128 = vmatpush1.msra.mxu0 %v1781
        %2129 = vmatprep.subr.mxu0 0.0
        %2130 = vmatpush1.msra.mxu0 %v1782
        %2131 = vmatprep.subr.mxu0 0.0
        %2132 = vmatpush1.msra.mxu0 %v1783
        %2133 = vmatprep.subr.mxu0 0.0
        %2134 = vmatpush1.msra.mxu0 %v1784
        %2135 = vmatprep.subr.mxu0 0.0
        %2136 = vmatpush1.msra.mxu0 %v1785
        %2137 = vmatprep.subr.mxu0 0.0
        %2138 = vmatpush1.msra.mxu0 %v1786
        %2139 = vmatprep.subr.mxu0 0.0
        %2140 = vmatpush1.msra.mxu0 %v1787
        %2141 = vmatprep.subr.mxu0 0.0
        %2142 = vmatpush1.msra.mxu0 %v1788
        %2143 = vmatprep.subr.mxu0 0.0
        %2144 = vmatpush1.msra.mxu0 %v1789
        %2145 = vmatprep.subr.mxu0 0.0
        %2146 = vmatpush1.msra.mxu0 %v1790
        %2147 = vmatprep.subr.mxu0 0.0
        %2148 = vmatpush1.msra.mxu0 %v1791
        %2149 = vmatprep.subr.mxu0 0.0
        %2150 = vmatpush1.msra.mxu0 %v1792
        %2151 = vmatprep.subr.mxu0 0.0
        %2152 = vmatpush1.msra.mxu0 %v1793
        %2153 = vmatprep.subr.mxu0 0.0
        %2154 = vmatpush1.msra.mxu0 %v1794
        %2155 = vmatprep.subr.mxu0 0.0
        %2156 = vmatpush1.msra.mxu0 %v1795
        %2157 = vmatprep.subr.mxu0 0.0
        %2158 = vmatpush1.msra.mxu0 %v1796
        %2159 = vmatprep.subr.mxu0 0.0
        %2160 = vmatpush1.msra.mxu0 %v1797
        %2161 = vmatprep.subr.mxu0 0.0
        %2162 = vmatpush1.msra.mxu0 %v1798
        %2163 = vmatprep.mubr.f32.mxu0 %v1598
        %2164 = vmatmul.mubr.f32.gmra.mrb[0].mxu0 %v1597
        %v2165 = vpop.f32.mrb[0].mxu0
        %v2166 = vadd.f32 %v2096, %v2165
        %v2167 = vpop.f32.mrb[0].mxu0
        %2168 = vdwg.mxu0
        %2169 = vmatprep.subr.mxu0 0.0
        %2170 = vmatpush1.msra.mxu0 %v1799
        %2171 = vmatprep.subr.mxu0 0.0
        %2172 = vmatpush1.msra.mxu0 %v1800
        %2173 = vmatprep.subr.mxu0 0.0
        %2174 = vmatpush1.msra.mxu0 %v1801
        %2175 = vmatprep.subr.mxu0 0.0
        %2176 = vmatpush1.msra.mxu0 %v1802
        %2177 = vmatprep.subr.mxu0 0.0
        %2178 = vmatpush1.msra.mxu0 %v1803
        %2179 = vmatprep.subr.mxu0 0.0
        %2180 = vmatpush1.msra.mxu0 %v1804
        %2181 = vmatprep.subr.mxu0 0.0
        %2182 = vmatpush1.msra.mxu0 %v1805
        %2183 = vmatprep.subr.mxu0 0.0
        %2184 = vmatpush1.msra.mxu0 %v1806
        %2185 = vmatprep.subr.mxu0 0.0
        %2186 = vmatpush1.msra.mxu0 %v1807
        %2187 = vmatprep.subr.mxu0 0.0
        %2188 = vmatpush1.msra.mxu0 %v1808
        %2189 = vmatprep.subr.mxu0 0.0
        %2190 = vmatpush1.msra.mxu0 %v1809
        %2191 = vmatprep.subr.mxu0 0.0
        %2192 = vmatpush1.msra.mxu0 %v1810
        %2193 = vmatprep.subr.mxu0 0.0
        %2194 = vmatpush1.msra.mxu0 %v1811
        %2195 = vmatprep.subr.mxu0 0.0
        %2196 = vmatpush1.msra.mxu0 %v1812
        %2197 = vmatprep.subr.mxu0 0.0
        %2198 = vmatpush1.msra.mxu0 %v1813
        %2199 = vmatprep.subr.mxu0 0.0
        %2200 = vmatpush1.msra.mxu0 %v1814
        %2201 = vmatprep.subr.mxu0 0.0
        %2202 = vmatpush1.msra.mxu0 %v1815
        %2203 = vmatprep.subr.mxu0 0.0
        %2204 = vmatpush1.msra.mxu0 %v1816
        %2205 = vmatprep.subr.mxu0 0.0
        %2206 = vmatpush1.msra.mxu0 %v1817
        %2207 = vmatprep.subr.mxu0 0.0
        %2208 = vmatpush1.msra.mxu0 %v1818
        %2209 = vmatprep.subr.mxu0 0.0
        %2210 = vmatpush1.msra.mxu0 %v1819
        %2211 = vmatprep.subr.mxu0 0.0
        %2212 = vmatpush1.msra.mxu0 %v1820
        %2213 = vmatprep.subr.mxu0 0.0
        %2214 = vmatpush1.msra.mxu0 %v1821
        %2215 = vmatprep.subr.mxu0 0.0
        %2216 = vmatpush1.msra.mxu0 %v1822
        %2217 = vmatprep.subr.mxu0 0.0
        %2218 = vmatpush1.msra.mxu0 %v1823
        %2219 = vmatprep.subr.mxu0 0.0
        %2220 = vmatpush1.msra.mxu0 %v1824
        %2221 = vmatprep.subr.mxu0 0.0
        %2222 = vmatpush1.msra.mxu0 %v1825
        %2223 = vmatprep.subr.mxu0 0.0
        %2224 = vmatpush1.msra.mxu0 %v1826
        %2225 = vmatprep.subr.mxu0 0.0
        %2226 = vmatpush1.msra.mxu0 %v1827
        %2227 = vmatprep.subr.mxu0 0.0
        %2228 = vmatpush1.msra.mxu0 %v1828
        %2229 = vmatprep.subr.mxu0 0.0
        %2230 = vmatpush1.msra.mxu0 %v1829
        %2231 = vmatprep.subr.mxu0 0.0
        %2232 = vmatpush1.msra.mxu0 %v1830
        %2233 = vmatprep.mubr.f32.mxu0 %v1600
        %2234 = vmatmul.mubr.f32.gmra.mrb[0].mxu0 %v1599
        %v2235 = vpop.f32.mrb[0].mxu0
        %v2236 = vadd.f32 %v2166, %v2235
        %v2237 = vpop.f32.mrb[0].mxu0
        %2238 = vdwg.mxu0
        %2239 = vmatprep.subr.mxu0 0.0
        %2240 = vmatpush1.msra.mxu0 %v1831
        %2241 = vmatprep.subr.mxu0 0.0
        %2242 = vmatpush1.msra.mxu0 %v1832
        %2243 = vmatprep.subr.mxu0 0.0
        %2244 = vmatpush1.msra.mxu0 %v1833
        %2245 = vmatprep.subr.mxu0 0.0
        %2246 = vmatpush1.msra.mxu0 %v1834
        %2247 = vmatprep.subr.mxu0 0.0
        %2248 = vmatpush1.msra.mxu0 %v1835
        %2249 = vmatprep.subr.mxu0 0.0
        %2250 = vmatpush1.msra.mxu0 %v1836
        %2251 = vmatprep.subr.mxu0 0.0
        %2252 = vmatpush1.msra.mxu0 %v1837
        %2253 = vmatprep.subr.mxu0 0.0
        %2254 = vmatpush1.msra.mxu0 %v1838
        %2255 = vmatprep.subr.mxu0 0.0
        %2256 = vmatpush1.msra.mxu0 %v1839
        %2257 = vmatprep.subr.mxu0 0.0
        %2258 = vmatpush1.msra.mxu0 %v1840
        %2259 = vmatprep.subr.mxu0 0.0
        %2260 = vmatpush1.msra.mxu0 %v1841
        %2261 = vmatprep.subr.mxu0 0.0
        %2262 = vmatpush1.msra.mxu0 %v1842
        %2263 = vmatprep.subr.mxu0 0.0
        %2264 = vmatpush1.msra.mxu0 %v1843
        %2265 = vmatprep.subr.mxu0 0.0
        %2266 = vmatpush1.msra.mxu0 %v1844
        %2267 = vmatprep.subr.mxu0 0.0
        %2268 = vmatpush1.msra.mxu0 %v1845
        %2269 = vmatprep.subr.mxu0 0.0
        %2270 = vmatpush1.msra.mxu0 %v1846
        %2271 = vmatprep.subr.mxu0 0.0
        %2272 = vmatpush1.msra.mxu0 %v1847
        %2273 = vmatprep.subr.mxu0 0.0
        %2274 = vmatpush1.msra.mxu0 %v1848
        %2275 = vmatprep.subr.mxu0 0.0
        %2276 = vmatpush1.msra.mxu0 %v1849
        %2277 = vmatprep.subr.mxu0 0.0
        %2278 = vmatpush1.msra.mxu0 %v1850
        %2279 = vmatprep.subr.mxu0 0.0
        %2280 = vmatpush1.msra.mxu0 %v1851
        %2281 = vmatprep.subr.mxu0 0.0
        %2282 = vmatpush1.msra.mxu0 %v1852
        %2283 = vmatprep.subr.mxu0 0.0
        %2284 = vmatpush1.msra.mxu0 %v1853
        %2285 = vmatprep.subr.mxu0 0.0
        %2286 = vmatpush1.msra.mxu0 %v1854
        %2287 = vmatprep.subr.mxu0 0.0
        %2288 = vmatpush1.msra.mxu0 %v1855
        %2289 = vmatprep.subr.mxu0 0.0
        %2290 = vmatpush1.msra.mxu0 %v1856
        %2291 = vmatprep.subr.mxu0 0.0
        %2292 = vmatpush1.msra.mxu0 %v1857
        %2293 = vmatprep.subr.mxu0 0.0
        %2294 = vmatpush1.msra.mxu0 %v1858
        %2295 = vmatprep.subr.mxu0 0.0
        %2296 = vmatpush1.msra.mxu0 %v1859
        %2297 = vmatprep.subr.mxu0 0.0
        %2298 = vmatpush1.msra.mxu0 %v1860
        %2299 = vmatprep.subr.mxu0 0.0
        %2300 = vmatpush1.msra.mxu0 %v1861
        %2301 = vmatprep.subr.mxu0 0.0
        %2302 = vmatpush1.msra.mxu0 %v1862
        %2303 = vmatprep.mubr.f32.mxu0 %v1647
        %2304 = vmatmul.mubr.f32.gmra.mrb[0].mxu0 %v1646
        %v2305 = vpop.f32.mrb[0].mxu0
        %v2306 = vadd.f32 %v2236, %v2305
        %v2307 = vpop.f32.mrb[0].mxu0
        %2308 = vdwg.mxu0
        %2309 = vmatprep.subr.mxu0 0.0
        %2310 = vmatpush1.msra.mxu0 %v1863
        %2311 = vmatprep.subr.mxu0 0.0
        %2312 = vmatpush1.msra.mxu0 %v1864
        %2313 = vmatprep.subr.mxu0 0.0
        %2314 = vmatpush1.msra.mxu0 %v1865
        %2315 = vmatprep.subr.mxu0 0.0
        %2316 = vmatpush1.msra.mxu0 %v1866
        %2317 = vmatprep.subr.mxu0 0.0
        %2318 = vmatpush1.msra.mxu0 %v1867
        %2319 = vmatprep.subr.mxu0 0.0
        %2320 = vmatpush1.msra.mxu0 %v1868
        %2321 = vmatprep.subr.mxu0 0.0
        %2322 = vmatpush1.msra.mxu0 %v1869
        %2323 = vmatprep.subr.mxu0 0.0
        %2324 = vmatpush1.msra.mxu0 %v1870
        %2325 = vmatprep.subr.mxu0 0.0
        %2326 = vmatpush1.msra.mxu0 %v1871
        %2327 = vmatprep.subr.mxu0 0.0
        %2328 = vmatpush1.msra.mxu0 %v1872
        %2329 = vmatprep.subr.mxu0 0.0
        %2330 = vmatpush1.msra.mxu0 %v1873
        %2331 = vmatprep.subr.mxu0 0.0
        %2332 = vmatpush1.msra.mxu0 %v1874
        %2333 = vmatprep.subr.mxu0 0.0
        %2334 = vmatpush1.msra.mxu0 %v1875
        %2335 = vmatprep.subr.mxu0 0.0
        %2336 = vmatpush1.msra.mxu0 %v1876
        %2337 = vmatprep.subr.mxu0 0.0
        %2338 = vmatpush1.msra.mxu0 %v1877
        %2339 = vmatprep.subr.mxu0 0.0
        %2340 = vmatpush1.msra.mxu0 %v1878
        %2341 = vmatprep.subr.mxu0 0.0
        %2342 = vmatpush1.msra.mxu0 %v1879
        %2343 = vmatprep.subr.mxu0 0.0
        %2344 = vmatpush1.msra.mxu0 %v1880
        %2345 = vmatprep.subr.mxu0 0.0
        %2346 = vmatpush1.msra.mxu0 %v1881
        %2347 = vmatprep.subr.mxu0 0.0
        %2348 = vmatpush1.msra.mxu0 %v1882
        %2349 = vmatprep.subr.mxu0 0.0
        %2350 = vmatpush1.msra.mxu0 %v1883
        %2351 = vmatprep.subr.mxu0 0.0
        %2352 = vmatpush1.msra.mxu0 %v1884
        %2353 = vmatprep.subr.mxu0 0.0
        %2354 = vmatpush1.msra.mxu0 %v1885
        %2355 = vmatprep.subr.mxu0 0.0
        %2356 = vmatpush1.msra.mxu0 %v1886
        %2357 = vmatprep.subr.mxu0 0.0
        %2358 = vmatpush1.msra.mxu0 %v1887
        %2359 = vmatprep.subr.mxu0 0.0
        %2360 = vmatpush1.msra.mxu0 %v1888
        %2361 = vmatprep.subr.mxu0 0.0
        %2362 = vmatpush1.msra.mxu0 %v1889
        %2363 = vmatprep.subr.mxu0 0.0
        %2364 = vmatpush1.msra.mxu0 %v1890
        %2365 = vmatprep.subr.mxu0 0.0
        %2366 = vmatpush1.msra.mxu0 %v1891
        %2367 = vmatprep.subr.mxu0 0.0
        %2368 = vmatpush1.msra.mxu0 %v1892
        %2369 = vmatprep.subr.mxu0 0.0
        %2370 = vmatpush1.msra.mxu0 %v1893
        %2371 = vmatprep.subr.mxu0 0.0
        %2372 = vmatpush1.msra.mxu0 %v1894
        %2373 = vmatprep.mubr.f32.mxu0 %v1649
        %2374 = vmatmul.mubr.f32.gmra.mrb[0].mxu0 %v1648
        %v2375 = vpop.f32.mrb[0].mxu0
        %v2376 = vadd.f32 %v2306, %v2375
        %v2377 = vpop.f32.mrb[0].mxu0
        %2378 = vdwg.mxu0
        %2379 = vmatprep.subr.mxu0 0.0
        %2380 = vmatpush1.msra.mxu0 %v1895
        %2381 = vmatprep.subr.mxu0 0.0
        %2382 = vmatpush1.msra.mxu0 %v1896
        %2383 = vmatprep.subr.mxu0 0.0
        %2384 = vmatpush1.msra.mxu0 %v1897
        %2385 = vmatprep.subr.mxu0 0.0
        %2386 = vmatpush1.msra.mxu0 %v1898
        %2387 = vmatprep.subr.mxu0 0.0
        %2388 = vmatpush1.msra.mxu0 %v1899
        %2389 = vmatprep.subr.mxu0 0.0
        %2390 = vmatpush1.msra.mxu0 %v1900
        %2391 = vmatprep.subr.mxu0 0.0
        %2392 = vmatpush1.msra.mxu0 %v1901
        %2393 = vmatprep.subr.mxu0 0.0
        %2394 = vmatpush1.msra.mxu0 %v1902
        %2395 = vmatprep.subr.mxu0 0.0
        %2396 = vmatpush1.msra.mxu0 %v1903
        %2397 = vmatprep.subr.mxu0 0.0
        %2398 = vmatpush1.msra.mxu0 %v1904
        %2399 = vmatprep.subr.mxu0 0.0
        %2400 = vmatpush1.msra.mxu0 %v1905
        %2401 = vmatprep.subr.mxu0 0.0
        %2402 = vmatpush1.msra.mxu0 %v1906
        %2403 = vmatprep.subr.mxu0 0.0
        %2404 = vmatpush1.msra.mxu0 %v1907
        %2405 = vmatprep.subr.mxu0 0.0
        %2406 = vmatpush1.msra.mxu0 %v1908
        %2407 = vmatprep.subr.mxu0 0.0
        %2408 = vmatpush1.msra.mxu0 %v1909
        %2409 = vmatprep.subr.mxu0 0.0
        %2410 = vmatpush1.msra.mxu0 %v1910
        %2411 = vmatprep.subr.mxu0 0.0
        %2412 = vmatpush1.msra.mxu0 %v1911
        %2413 = vmatprep.subr.mxu0 0.0
        %2414 = vmatpush1.msra.mxu0 %v1912
        %2415 = vmatprep.subr.mxu0 0.0
        %2416 = vmatpush1.msra.mxu0 %v1913
        %2417 = vmatprep.subr.mxu0 0.0
        %2418 = vmatpush1.msra.mxu0 %v1914
        %2419 = vmatprep.subr.mxu0 0.0
        %2420 = vmatpush1.msra.mxu0 %v1915
        %2421 = vmatprep.subr.mxu0 0.0
        %2422 = vmatpush1.msra.mxu0 %v1916
        %2423 = vmatprep.subr.mxu0 0.0
        %2424 = vmatpush1.msra.mxu0 %v1917
        %2425 = vmatprep.subr.mxu0 0.0
        %2426 = vmatpush1.msra.mxu0 %v1918
        %2427 = vmatprep.subr.mxu0 0.0
        %2428 = vmatpush1.msra.mxu0 %v1919
        %2429 = vmatprep.subr.mxu0 0.0
        %2430 = vmatpush1.msra.mxu0 %v1920
        %2431 = vmatprep.subr.mxu0 0.0
        %2432 = vmatpush1.msra.mxu0 %v1921
        %2433 = vmatprep.subr.mxu0 0.0
        %2434 = vmatpush1.msra.mxu0 %v1922
        %2435 = vmatprep.subr.mxu0 0.0
        %2436 = vmatpush1.msra.mxu0 %v1923
        %2437 = vmatprep.subr.mxu0 0.0
        %2438 = vmatpush1.msra.mxu0 %v1924
        %2439 = vmatprep.subr.mxu0 0.0
        %2440 = vmatpush1.msra.mxu0 %v1925
        %2441 = vmatprep.subr.mxu0 0.0
        %2442 = vmatpush1.msra.mxu0 %v1926
        %2443 = vmatprep.mubr.f32.mxu0 %v1696
        %2444 = vmatmul.mubr.f32.gmra.mrb[0].mxu0 %v1695
        %v2445 = vpop.f32.mrb[0].mxu0
        %v2446 = vadd.f32 %v2376, %v2445
        %v2447 = vpop.f32.mrb[0].mxu0
        %2448 = vdwg.mxu0
        %2449 = vmatprep.subr.mxu0 0.0
        %2450 = vmatpush1.msra.mxu0 %v1927
        %2451 = vmatprep.subr.mxu0 0.0
        %2452 = vmatpush1.msra.mxu0 %v1928
        %2453 = vmatprep.subr.mxu0 0.0
        %2454 = vmatpush1.msra.mxu0 %v1929
        %2455 = vmatprep.subr.mxu0 0.0
        %2456 = vmatpush1.msra.mxu0 %v1930
        %2457 = vmatprep.subr.mxu0 0.0
        %2458 = vmatpush1.msra.mxu0 %v1931
        %2459 = vmatprep.subr.mxu0 0.0
        %2460 = vmatpush1.msra.mxu0 %v1932
        %2461 = vmatprep.subr.mxu0 0.0
        %2462 = vmatpush1.msra.mxu0 %v1933
        %2463 = vmatprep.subr.mxu0 0.0
        %2464 = vmatpush1.msra.mxu0 %v1934
        %2465 = vmatprep.subr.mxu0 0.0
        %2466 = vmatpush1.msra.mxu0 %v1935
        %2467 = vmatprep.subr.mxu0 0.0
        %2468 = vmatpush1.msra.mxu0 %v1936
        %2469 = vmatprep.subr.mxu0 0.0
        %2470 = vmatpush1.msra.mxu0 %v1937
        %2471 = vmatprep.subr.mxu0 0.0
        %2472 = vmatpush1.msra.mxu0 %v1938
        %2473 = vmatprep.subr.mxu0 0.0
        %2474 = vmatpush1.msra.mxu0 %v1939
        %2475 = vmatprep.subr.mxu0 0.0
        %2476 = vmatpush1.msra.mxu0 %v1940
        %2477 = vmatprep.subr.mxu0 0.0
        %2478 = vmatpush1.msra.mxu0 %v1941
        %2479 = vmatprep.subr.mxu0 0.0
        %2480 = vmatpush1.msra.mxu0 %v1942
        %2481 = vmatprep.subr.mxu0 0.0
        %2482 = vmatpush1.msra.mxu0 %v1943
        %2483 = vmatprep.subr.mxu0 0.0
        %2484 = vmatpush1.msra.mxu0 %v1944
        %2485 = vmatprep.subr.mxu0 0.0
        %2486 = vmatpush1.msra.mxu0 %v1945
        %2487 = vmatprep.subr.mxu0 0.0
        %2488 = vmatpush1.msra.mxu0 %v1946
        %2489 = vmatprep.subr.mxu0 0.0
        %2490 = vmatpush1.msra.mxu0 %v1947
        %2491 = vmatprep.subr.mxu0 0.0
        %2492 = vmatpush1.msra.mxu0 %v1948
        %2493 = vmatprep.subr.mxu0 0.0
        %2494 = vmatpush1.msra.mxu0 %v1949
        %2495 = vmatprep.subr.mxu0 0.0
        %2496 = vmatpush1.msra.mxu0 %v1950
        %2497 = vmatprep.subr.mxu0 0.0
        %2498 = vmatpush1.msra.mxu0 %v1951
        %2499 = vmatprep.subr.mxu0 0.0
        %2500 = vmatpush1.msra.mxu0 %v1952
        %2501 = vmatprep.subr.mxu0 0.0
        %2502 = vmatpush1.msra.mxu0 %v1953
        %2503 = vmatprep.subr.mxu0 0.0
        %2504 = vmatpush1.msra.mxu0 %v1954
        %2505 = vmatprep.subr.mxu0 0.0
        %2506 = vmatpush1.msra.mxu0 %v1955
        %2507 = vmatprep.subr.mxu0 0.0
        %2508 = vmatpush1.msra.mxu0 %v1956
        %2509 = vmatprep.subr.mxu0 0.0
        %2510 = vmatpush1.msra.mxu0 %v1957
        %2511 = vmatprep.subr.mxu0 0.0
        %2512 = vmatpush1.msra.mxu0 %v1958
        %2513 = vmatprep.mubr.f32.mxu0 %v1698
        %2514 = vmatmul.mubr.f32.gmra.mrb[0].mxu0 %v1697
        %v2515 = vpop.f32.mrb[0].mxu0
        %v2516 = vadd.f32 %v2446, %v2515
        %v2517 = vpop.f32.mrb[0].mxu0
        %2518 = vdwg.mxu0
        %s2519 = smul.u32 %s30, 8
        %v2520 = vlaneseq
        %v2521 = vshrl.u32 %v2520, 7
        %v2522 = vstv %s2519
        %v2523 = vadd.s32 %v2522, %v2521
        %vm2524 = vcmp.lt.s32.totalorder %v2523, 20
        %v2525 = vsel %vm2524, 1, 0
        %v2526 = vcvt.s32.f32 %v2525
        %v2527 = vsub.f32 %v2516, %v782
        %v2528 = vmul.f32 %v2527, %v2526
        %v2529 = vmul.f32 %v2528, %v2528
        %v2530 = vsel %vm529, %v2529, 0.0
        %2531 = vadd.xlane.f32.xlu0 %v2530
        %v2532 = vpop.xlane.xlu0 %2531
        %v2533 = vrot.slane %v2532, 4
        %v2534 = vadd.f32 %v2532, %v2533
        %v2535 = vrot.slane %v2534, 2
        %v2536 = vadd.f32 %v2534, %v2535
        %v2537 = vrot.slane %v2536, 1
        %v2538 = vadd.f32 %v2536, %v2537
        %s2539 = vtos %v2538
        %v2540 = vmul.f32 %v1699, %v2526
        %v2541 = vmul.f32 %v1700, %v2526
        %v2542 = vmul.f32 %v1701, %v2526
        %v2543 = vmul.f32 %v1702, %v2526
        %v2544 = vrot.slane %v2540, 4
        %v2545 = vadd.f32 %v2540, %v2544
        %v2546 = vrot.slane %v2545, 2
        %v2547 = vadd.f32 %v2545, %v2546
        %v2548 = vrot.slane %v2547, 1
        %v2549 = vadd.f32 %v2547, %v2548
        %v2550 = vrot.slane %v2541, 4
        %v2551 = vadd.f32 %v2541, %v2550
        %v2552 = vrot.slane %v2551, 2
        %v2553 = vadd.f32 %v2551, %v2552
        %v2554 = vrot.slane %v2553, 1
        %v2555 = vadd.f32 %v2553, %v2554
        %v2556 = vrot.slane %v2542, 4
        %v2557 = vadd.f32 %v2542, %v2556
        %v2558 = vrot.slane %v2557, 2
        %v2559 = vadd.f32 %v2557, %v2558
        %v2560 = vrot.slane %v2559, 1
        %v2561 = vadd.f32 %v2559, %v2560
        %v2562 = vrot.slane %v2543, 4
        %v2563 = vadd.f32 %v2543, %v2562
        %v2564 = vrot.slane %v2563, 2
        %v2565 = vadd.f32 %v2563, %v2564
        %v2566 = vrot.slane %v2565, 1
        %v2567 = vadd.f32 %v2565, %v2566
        %v2568 = vmax.f32 %v2516, 0.0
        %v2569 = vld [vmem:[%s10] sm:$0xf]
        %v2570 = vld [vmem:[%s10 + $0x4] sm:$0xf]
        %v2571 = vld [vmem:[%s10 + $0x8] sm:$0xf]
        %v2572 = vld [vmem:[%s10 + $0xc] sm:$0xf]
        %v2573 = vpack.c.bf16 %v2568, %v2568
        %v2578 = vunpack.c.l.b16 %v2569
        %v2579 = vunpack.c.l.b16 %v2570
        %v2580 = vunpack.c.l.b16 %v2571
        %v2581 = vunpack.c.l.b16 %v2572
        %v2582 = vpack.c.b16 %v2579, %v2578
        %v2583 = vpack.c.b16 %v2581, %v2580
        %v2587 = vsel %vm529, %v2573, 0
        %2589 = vmatprep.subr.bf16.mxu0 0
        %2590 = vmatpush1.bf16.msra.mxu0 %v2582
        %2591 = vmatprep.subr.bf16.mxu0 0
        %2592 = vmatpush1.bf16.msra.mxu0 %v2583
        %2593 = vmatprep.subr.bf16.mxu0 0
        %2594 = vmatpush1.bf16.msra.mxu0 0
        %2595 = vmatprep.subr.bf16.mxu0 0
        %2596 = vmatpush1.bf16.msra.mxu0 0
        %2597 = vmatprep.subr.bf16.mxu0 0
        %2598 = vmatpush1.bf16.msra.mxu0 0
        %2599 = vmatprep.subr.bf16.mxu0 0
        %2600 = vmatpush1.bf16.msra.mxu0 0
        %2601 = vmatprep.subr.bf16.mxu0 0
        %2602 = vmatpush1.bf16.msra.mxu0 0
        %2603 = vmatprep.subr.bf16.mxu0 0
        %2604 = vmatpush1.bf16.msra.mxu0 0
        %2605 = vmatprep.subr.bf16.mxu0 0
        %2606 = vmatpush1.bf16.msra.mxu0 0
        %2607 = vmatprep.subr.bf16.mxu0 0
        %2608 = vmatpush1.bf16.msra.mxu0 0
        %2609 = vmatprep.subr.bf16.mxu0 0
        %2610 = vmatpush1.bf16.msra.mxu0 0
        %2611 = vmatprep.subr.bf16.mxu0 0
        %2612 = vmatpush1.bf16.msra.mxu0 0
        %2613 = vmatprep.subr.bf16.mxu0 0
        %2614 = vmatpush1.bf16.msra.mxu0 0
        %2615 = vmatprep.subr.bf16.mxu0 0
        %2616 = vmatpush1.bf16.msra.mxu0 0
        %2617 = vmatprep.subr.bf16.mxu0 0
        %2618 = vmatpush1.bf16.msra.mxu0 0
        %2619 = vmatprep.subr.bf16.mxu0 0
        %2620 = vmatpush1.bf16.msra.mxu0 0
        %2621 = vmatprep.mubr.bf16.mxu0 0
        %2622 = vmatmul.mubr.bf16.gmra.mrb[0].mxu0 %v2587
        %v2623 = vpop.f32.mrb[0].mxu0
        %v2624 = vadd.f32 0.0, %v2623
        %v2625 = vpop.f32.mrb[0].mxu0
        %v2626 = vpop.f32.mrb[0].mxu0
        %v2627 = vpop.f32.mrb[0].mxu0
        %2628 = vdwg.mxu0
        %v2629 = vadd.f32 %v2516, %v2624
        %v2630 = vld [vmem:[%s11] sm:$0x1]
        %v2632 = vlaneseq
        %v2633 = vshrl.u32 %v2632, 7
        %v2634 = vsub.s32 0, %v2633
        %v2635 = vrot.slane %v2630, %v2634
        %v2637 = vadd.f32 %v2629, %v2635
        %v2638 = vmax.f32 %v2637, 0.0
        %s2639 = scalar_lea.vmem %s10, 16
        %v2640 = vld [vmem:[%s2639] sm:$0xf]
        %v2641 = vld [vmem:[%s2639 + $0x4] sm:$0xf]
        %v2642 = vld [vmem:[%s2639 + $0x8] sm:$0xf]
        %v2643 = vld [vmem:[%s2639 + $0xc] sm:$0xf]
        %v2644 = vpack.c.bf16 %v2638, %v2638
        %v2649 = vunpack.c.l.b16 %v2640
        %v2650 = vunpack.c.l.b16 %v2641
        %v2651 = vunpack.c.l.b16 %v2642
        %v2652 = vunpack.c.l.b16 %v2643
        %v2653 = vpack.c.b16 %v2650, %v2649
        %v2654 = vpack.c.b16 %v2652, %v2651
        %v2658 = vsel %vm529, %v2644, 0
        %2660 = vmatprep.subr.bf16.mxu0 0
        %2661 = vmatpush1.bf16.msra.mxu0 %v2653
        %2662 = vmatprep.subr.bf16.mxu0 0
        %2663 = vmatpush1.bf16.msra.mxu0 %v2654
        %2664 = vmatprep.subr.bf16.mxu0 0
        %2665 = vmatpush1.bf16.msra.mxu0 0
        %2666 = vmatprep.subr.bf16.mxu0 0
        %2667 = vmatpush1.bf16.msra.mxu0 0
        %2668 = vmatprep.subr.bf16.mxu0 0
        %2669 = vmatpush1.bf16.msra.mxu0 0
        %2670 = vmatprep.subr.bf16.mxu0 0
        %2671 = vmatpush1.bf16.msra.mxu0 0
        %2672 = vmatprep.subr.bf16.mxu0 0
        %2673 = vmatpush1.bf16.msra.mxu0 0
        %2674 = vmatprep.subr.bf16.mxu0 0
        %2675 = vmatpush1.bf16.msra.mxu0 0
        %2676 = vmatprep.subr.bf16.mxu0 0
        %2677 = vmatpush1.bf16.msra.mxu0 0
        %2678 = vmatprep.subr.bf16.mxu0 0
        %2679 = vmatpush1.bf16.msra.mxu0 0
        %2680 = vmatprep.subr.bf16.mxu0 0
        %2681 = vmatpush1.bf16.msra.mxu0 0
        %2682 = vmatprep.subr.bf16.mxu0 0
        %2683 = vmatpush1.bf16.msra.mxu0 0
        %2684 = vmatprep.subr.bf16.mxu0 0
        %2685 = vmatpush1.bf16.msra.mxu0 0
        %2686 = vmatprep.subr.bf16.mxu0 0
        %2687 = vmatpush1.bf16.msra.mxu0 0
        %2688 = vmatprep.subr.bf16.mxu0 0
        %2689 = vmatpush1.bf16.msra.mxu0 0
        %2690 = vmatprep.subr.bf16.mxu0 0
        %2691 = vmatpush1.bf16.msra.mxu0 0
        %2692 = vmatprep.mubr.bf16.mxu0 0
        %2693 = vmatmul.mubr.bf16.gmra.mrb[0].mxu0 %v2658
        %v2694 = vpop.f32.mrb[0].mxu0
        %v2695 = vadd.f32 0.0, %v2694
        %v2696 = vpop.f32.mrb[0].mxu0
        %v2697 = vpop.f32.mrb[0].mxu0
        %v2698 = vpop.f32.mrb[0].mxu0
        %2699 = vdwg.mxu0
        %v2700 = vadd.f32 %v2637, %v2695
        %s2701 = scalar_lea.vmem %s11, 1
        %v2702 = vld [vmem:[%s2701] sm:$0x1]
        %v2704 = vlaneseq
        %v2705 = vshrl.u32 %v2704, 7
        %v2706 = vsub.s32 0, %v2705
        %v2707 = vrot.slane %v2702, %v2706
        %v2709 = vadd.f32 %v2700, %v2707
        %v2710 = vmax.f32 %v2709, 0.0
        %s2711 = scalar_lea.vmem %s10, 32
        %v2712 = vld [vmem:[%s2711] sm:$0xf]
        %v2713 = vld [vmem:[%s2711 + $0x4] sm:$0xf]
        %v2714 = vld [vmem:[%s2711 + $0x8] sm:$0xf]
        %v2715 = vld [vmem:[%s2711 + $0xc] sm:$0xf]
        %v2716 = vpack.c.bf16 %v2710, %v2710
        %v2721 = vunpack.c.l.b16 %v2712
        %v2722 = vunpack.c.l.b16 %v2713
        %v2723 = vunpack.c.l.b16 %v2714
        %v2724 = vunpack.c.l.b16 %v2715
        %v2725 = vpack.c.b16 %v2722, %v2721
        %v2726 = vpack.c.b16 %v2724, %v2723
        %v2730 = vsel %vm529, %v2716, 0
        %2732 = vmatprep.subr.bf16.mxu0 0
        %2733 = vmatpush1.bf16.msra.mxu0 %v2725
        %2734 = vmatprep.subr.bf16.mxu0 0
        %2735 = vmatpush1.bf16.msra.mxu0 %v2726
        %2736 = vmatprep.subr.bf16.mxu0 0
        %2737 = vmatpush1.bf16.msra.mxu0 0
        %2738 = vmatprep.subr.bf16.mxu0 0
        %2739 = vmatpush1.bf16.msra.mxu0 0
        %2740 = vmatprep.subr.bf16.mxu0 0
        %2741 = vmatpush1.bf16.msra.mxu0 0
        %2742 = vmatprep.subr.bf16.mxu0 0
        %2743 = vmatpush1.bf16.msra.mxu0 0
        %2744 = vmatprep.subr.bf16.mxu0 0
        %2745 = vmatpush1.bf16.msra.mxu0 0
        %2746 = vmatprep.subr.bf16.mxu0 0
        %2747 = vmatpush1.bf16.msra.mxu0 0
        %2748 = vmatprep.subr.bf16.mxu0 0
        %2749 = vmatpush1.bf16.msra.mxu0 0
        %2750 = vmatprep.subr.bf16.mxu0 0
        %2751 = vmatpush1.bf16.msra.mxu0 0
        %2752 = vmatprep.subr.bf16.mxu0 0
        %2753 = vmatpush1.bf16.msra.mxu0 0
        %2754 = vmatprep.subr.bf16.mxu0 0
        %2755 = vmatpush1.bf16.msra.mxu0 0
        %2756 = vmatprep.subr.bf16.mxu0 0
        %2757 = vmatpush1.bf16.msra.mxu0 0
        %2758 = vmatprep.subr.bf16.mxu0 0
        %2759 = vmatpush1.bf16.msra.mxu0 0
        %2760 = vmatprep.subr.bf16.mxu0 0
        %2761 = vmatpush1.bf16.msra.mxu0 0
        %2762 = vmatprep.subr.bf16.mxu0 0
        %2763 = vmatpush1.bf16.msra.mxu0 0
        %2764 = vmatprep.mubr.bf16.mxu0 0
        %2765 = vmatmul.mubr.bf16.gmra.mrb[0].mxu0 %v2730
        %v2766 = vpop.f32.mrb[0].mxu0
        %v2767 = vadd.f32 0.0, %v2766
        %v2768 = vpop.f32.mrb[0].mxu0
        %v2769 = vpop.f32.mrb[0].mxu0
        %v2770 = vpop.f32.mrb[0].mxu0
        %2771 = vdwg.mxu0
        %v2772 = vadd.f32 %v2709, %v2767
        %s2773 = scalar_lea.vmem %s11, 2
        %v2774 = vld [vmem:[%s2773] sm:$0x1]
        %v2776 = vlaneseq
        %v2777 = vshrl.u32 %v2776, 7
        %v2778 = vsub.s32 0, %v2777
        %v2779 = vrot.slane %v2774, %v2778
        %v2781 = vadd.f32 %v2772, %v2779
        %v2782 = vld [vmem:[%s12] sm:$0xf]
        %v2783 = vld [vmem:[%s12 + $0x4] sm:$0xf]
        %v2784 = vld [vmem:[%s12 + $0x8] sm:$0xf]
        %v2785 = vld [vmem:[%s12 + $0xc] sm:$0xf]
        %v2786 = vpack.c.bf16 %v2781, %v2781
        %v2787 = vld [vmem:[%s13] sm:$0x1]
        %v2789 = vlaneseq
        %v2790 = vshrl.u32 %v2789, 7
        %v2791 = vsub.s32 0, %v2790
        %v2792 = vrot.slane %v2787, %v2791
        %v2798 = vunpack.c.l.b16 %v2782
        %v2799 = vunpack.c.l.b16 %v2783
        %v2800 = vunpack.c.l.b16 %v2784
        %v2801 = vunpack.c.l.b16 %v2785
        %v2802 = vpack.c.b16 %v2799, %v2798
        %v2803 = vpack.c.b16 %v2801, %v2800
        %v2807 = vsel %vm529, %v2786, 0
        %2809 = vmatprep.subr.bf16.mxu0 0
        %2810 = vmatpush1.bf16.msra.mxu0 %v2802
        %2811 = vmatprep.subr.bf16.mxu0 0
        %2812 = vmatpush1.bf16.msra.mxu0 %v2803
        %2813 = vmatprep.subr.bf16.mxu0 0
        %2814 = vmatpush1.bf16.msra.mxu0 0
        %2815 = vmatprep.subr.bf16.mxu0 0
        %2816 = vmatpush1.bf16.msra.mxu0 0
        %2817 = vmatprep.subr.bf16.mxu0 0
        %2818 = vmatpush1.bf16.msra.mxu0 0
        %2819 = vmatprep.subr.bf16.mxu0 0
        %2820 = vmatpush1.bf16.msra.mxu0 0
        %2821 = vmatprep.subr.bf16.mxu0 0
        %2822 = vmatpush1.bf16.msra.mxu0 0
        %2823 = vmatprep.subr.bf16.mxu0 0
        %2824 = vmatpush1.bf16.msra.mxu0 0
        %2825 = vmatprep.subr.bf16.mxu0 0
        %2826 = vmatpush1.bf16.msra.mxu0 0
        %2827 = vmatprep.subr.bf16.mxu0 0
        %2828 = vmatpush1.bf16.msra.mxu0 0
        %2829 = vmatprep.subr.bf16.mxu0 0
        %2830 = vmatpush1.bf16.msra.mxu0 0
        %2831 = vmatprep.subr.bf16.mxu0 0
        %2832 = vmatpush1.bf16.msra.mxu0 0
        %2833 = vmatprep.subr.bf16.mxu0 0
        %2834 = vmatpush1.bf16.msra.mxu0 0
        %2835 = vmatprep.subr.bf16.mxu0 0
        %2836 = vmatpush1.bf16.msra.mxu0 0
        %2837 = vmatprep.subr.bf16.mxu0 0
        %2838 = vmatpush1.bf16.msra.mxu0 0
        %2839 = vmatprep.subr.bf16.mxu0 0
        %2840 = vmatpush1.bf16.msra.mxu0 0
        %2841 = vmatprep.mubr.bf16.mxu0 0
        %2842 = vmatmul.mubr.bf16.gmra.mrb[0].mxu0 %v2807
        %v2843 = vpop.f32.mrb[0].mxu0
        %v2844 = vadd.f32 %v2792, %v2843
        %v2845 = vpop.f32.mrb[0].mxu0
        %v2846 = vpop.f32.mrb[0].mxu0
        %v2847 = vpop.f32.mrb[0].mxu0
        %2848 = vdwg.mxu0
        %v2849 = vxor.u32 %v2844, 2147483648
        %v2850 = vmul.f32 %v2849, 1.442695
        %v2851 = vpow.pop %v2850
        %v2852 = vadd.f32 %v2851, 1.0
        %v2853 = vrcp.pop %v2852
        %v2854 = vmul.f32 1.0, %v2853
        %2855 = vst.msk [vmem:[%s486] sm:$0xff] %vm529, %v2854
        %v2856 = vstv %s2539
        %2857 = vst [vmem:[%s502] sm:$0xff] %v2549
        %2858 = vst [vmem:[%s502 + $0x8] sm:$0xff] %v2555
        %2859 = vst [vmem:[%s502 + $0x10] sm:$0xff] %v2561
        %2860 = vst [vmem:[%s502 + $0x18] sm:$0xff] %v2567
        %2861 = vst [vmem:[%s502 + $0x20] sm:$0xff] %v2856
        %s2862 = sand.u32 %s337, 1
        %s2863 = scalar_lea.sflag [#allocation3], %s2862
        %s2864 = sand.u32 %s337, 1
        %s2865 = smul.addr %s2864, 8
        %s2866 = scalar_lea.vmem [#allocation2], %s2865
        %p2867 = scmp.lt.s32.totalorder %s30, 2
        %s2868 = scalar_select %p2867, %s30, 2
        %s2869 = smul.addr %s2868, 5
        %s2870 = smul.addr %s2869, 8
        %s2871 = scalar_lea.vmem %s15, %s2870
        // Predicated region
        $region77: #{vqvae_forward.1} parent=75 // pred_check
          %p2872 = pneg %p347
        $region78: #{vqvae_forward.1} parent=75 // pred_check_branch
          %2874 = sbr.rel (%p2872) target = $region80
        $region79: #{vqvae_forward.1} parent=75 // pred_region
          %s2876 = ssub.s32 128, 128
          %2877 = vsyncadd %s2863, %s2876
          %s2878 = smul.addr %s30, 128
          %s2879 = scalar_lea.hbm %s14, %s2878
          %s2881 = sshll.u32 %s2866, 4
          %s2882 = int_to_ptr.vmem [resolvable:$true] %s2881
          %2884 = dma.vmem_to_hbm [thread:$0]  %s2882, 128, %s2879, %s2863
        $region80: #{vqvae_forward.1} parent=75 // pred_fallthru
          _
        // Predicated region
        $region81: #{vqvae_forward.1} parent=75 // pred_check
          %p2885 = pneg %p373
        $region82: #{vqvae_forward.1} parent=75 // pred_check_branch
          %2887 = sbr.rel (%p2885) target = $region84
        $region83: #{vqvae_forward.1} parent=75 // pred_region
          _
        $region84: #{vqvae_forward.1} parent=75 // pred_fallthru
          _
      $region76: #{vqvae_forward.1} parent=5 // pred_fallthru
        _
      %p2888 = scmp.le.s32.totalorder 2, %s25
      // Predicated region
      $region85: #{vqvae_forward.1} parent=5 // pred_check
        %p2889 = pneg %p2888
      $region86: #{vqvae_forward.1} parent=5 // pred_check_branch
        %2891 = sbr.rel (%p2889) target = $region88
      $region87: #{vqvae_forward.1} parent=5 // pred_region
        %s2892 = ssub.s32 %s25, 2
        // Predicated region
        $region89: #{vqvae_forward.1} parent=87 // pred_check
          %p2893 = pneg %p353
        $region90: #{vqvae_forward.1} parent=87 // pred_check_branch
          %2895 = sbr.rel (%p2893) target = $region92
        $region91: #{vqvae_forward.1} parent=87 // pred_region
          %s2896 = sand.u32 %s338, 1
          %s2897 = scalar_lea.sflag [#allocation3], %s2896
          %s2898 = sand.u32 %s338, 1
          %s2899 = smul.addr %s2898, 8
          %s2900 = scalar_lea.vmem [#allocation2], %s2899
          %2901 = dma.done %s2897, 128
        $region92: #{vqvae_forward.1} parent=87 // pred_fallthru
          _
        // Predicated region
        $region93: #{vqvae_forward.1} parent=87 // pred_check
          %p2902 = pneg %p379
        $region94: #{vqvae_forward.1} parent=87 // pred_check_branch
          %2904 = sbr.rel (%p2902) target = $region96
        $region95: #{vqvae_forward.1} parent=87 // pred_region
          %p2905 = scmp.lt.s32.totalorder %s31, 2
          %s2906 = scalar_select %p2905, %s31, 2
          %s2907 = smul.addr %s2906, 5
          %s2908 = smul.addr %s2907, 8
          %s2909 = scalar_lea.vmem %s15, %s2908
        $region96: #{vqvae_forward.1} parent=87 // pred_fallthru
          _
      $region88: #{vqvae_forward.1} parent=5 // pred_fallthru
        _
    $region6: #{vqvae_forward.1} parent=1 // loop_footer
      %s29 = sadd.s32 1, %s25
    $region7: #{vqvae_forward.1} parent=1 // loop_footer_branch
      %24 = sbr.rel target = $region3
    $region8: #{vqvae_forward.1} parent=1 // loop_exit
      _
    %2910 = vsyncpa [#allocation3], 1
    %s2911 = scalar_lea.sflag [#allocation3], 1
    %2912 = vsyncpa %s2911, 1

</llo_original>
